<compile_context>
chip_gen: v6e
topology: v6e:2x2x1
jax: 0.10.0
libtpu: 0.0.40
codegen_flags: <defaults>
</compile_context>

<pallas_src>
import functools

import jax
import jax.numpy as jnp
from jax.experimental import pallas as pl
from jax.experimental.pallas import tpu as pltpu

# Layer widths of DeepDeepSurv('cmb')
LAYER_DIMS = [344, 300, 300, 300, 300, 300, 300, 150, 42, 1]
NUM_LAYERS = len(LAYER_DIMS) - 1      # 9 Linear layers
NUM_MXU_LAYERS = NUM_LAYERS - 1       # last (42 -> 1) layer runs on VPU/XLU

SELU_ALPHA = 1.6732632423543772
SELU_SCALE = 1.0507009873554805


def _selu(x):
    # f32 SELU: scale * (x if x > 0 else alpha * (exp(x) - 1)).
    # exp is clamped on the dead branch so padded/garbage rows never make inf.
    safe = jnp.minimum(x, 0.0)
    return SELU_SCALE * jnp.where(x > 0, x, SELU_ALPHA * (jnp.exp(safe) - 1.0))


def _round_up(n, m):
    return ((n + m - 1) // m) * m


def _mlp_kernel(x_ref, *refs):
    """refs = (w1, b1, ..., w8, b8, w9_row, b9, o_ref).

    w1..w8 : bf16 [in, out]   -> MXU matmuls with f32 accumulation
    b1..b8 : f32  [1, out]
    w9_row : f32  [1, 42]     -> final layer as VPU multiply + XLU lane-reduce
    b9     : f32  [1, 1]
    """
    o_ref = refs[-1]
    p = refs[:-1]

    h = x_ref[...]                      # [TM, 344] f32
    for layer in range(NUM_MXU_LAYERS):
        w = p[2 * layer][...]           # bf16 [in, out], VMEM-resident
        b = p[2 * layer + 1][...]       # f32  [1, out]
        h = jnp.dot(h.astype(jnp.bfloat16), w,
                    preferred_element_type=jnp.float32)
        h = _selu(h + b)                # bias-add + SELU in f32

    # Final 42 -> 1 layer on VPU/XLU instead of an N=1 MXU pass.
    w_last = p[-2][...]                 # [1, 42] f32
    b_last = p[-1][...]                 # [1, 1]  f32
    out = jnp.sum(h * w_last, axis=-1, keepdims=True) + b_last
    # NOTE: [TM, 1] is a lane-sparse (masked) store; large TM amortizes it.
    o_ref[...] = out.astype(o_ref.dtype)


def prepare_params(params):
    """Convert the f32 param list [W1, b1, ..., W9, b9] (W_k: [in,out],
    b_k: [1,out]) into the kernel layout: bf16 weights for the 8 MXU layers,
    f32 biases, and the last layer as an f32 row vector [1, 42] + [1, 1]."""
    kparams = []
    for layer in range(NUM_MXU_LAYERS):
        w, b = params[2 * layer], params[2 * layer + 1]
        kparams.append(jnp.asarray(w, jnp.float32).astype(jnp.bfloat16))
        kparams.append(jnp.asarray(b, jnp.float32).reshape(1, -1))
    w_last, b_last = params[-2], params[-1]       # [42, 1], [1, 1]
    kparams.append(jnp.asarray(w_last, jnp.float32).reshape(1, LAYER_DIMS[-2]))
    kparams.append(jnp.asarray(b_last, jnp.float32).reshape(1, 1))
    return kparams


@functools.partial(jax.jit, static_argnames=("tm",))
def deep_deep_surv_forward(x, kernel_params, tm=None):
    """x: [B, 344] f32; kernel_params: output of prepare_params()."""
    B = x.shape[0]
    if tm is None:
        # 256-row tiles match the 256-wide MXU on v6e/v7x (>=2x the 128-wide
        # v5e MXU) and amortize per-grid-step overhead; tiny batches get one
        # sublane-aligned tile.
        tm = 256 if B >= 256 else max(8, _round_up(B, 8))
    grid = (pl.cdiv(B, tm),)

    x_spec = pl.BlockSpec((tm, LAYER_DIMS[0]), lambda i: (i, 0))
    out_spec = pl.BlockSpec((tm, LAYER_DIMS[-1]), lambda i: (i, 0))
    # Full-array blocks with a constant index_map: parameters are DMA'd once
    # and stay VMEM-resident while the x/out tiles pipeline through the grid.
    param_specs = [pl.BlockSpec(p.shape, lambda i: (0, 0)) for p in kernel_params]

    return pl.pallas_call(
        _mlp_kernel,
        out_shape=jax.ShapeDtypeStruct((B, LAYER_DIMS[-1]), jnp.float32),
        grid=grid,
        in_specs=[x_spec] + param_specs,
        out_specs=out_spec,
        compiler_params=pltpu.CompilerParams(
            dimension_semantics=("parallel",),   # megacore sharding on v7x
            vmem_limit_bytes=16 << 20,           # ~2x actual need at TM=256
        ),
    )(x, *kernel_params)


def init_params(key):
    """Deterministic init mirroring PyTorch nn.Linear defaults
    (uniform(-1/sqrt(fan_in), 1/sqrt(fan_in)) for weight and bias), f32."""
    params = []
    for i in range(NUM_LAYERS):
        fan_in, fan_out = LAYER_DIMS[i], LAYER_DIMS[i + 1]
        key, kw, kb = jax.random.split(key, 3)
        bound = 1.0 / jnp.sqrt(jnp.float32(fan_in))
        # Stored as [in, out] (transposed vs. PyTorch's [out, in]).
        w = jax.random.uniform(kw, (fan_in, fan_out), jnp.float32, -bound, bound)
        b = jax.random.uniform(kb, (1, fan_out), jnp.float32, -bound, bound)
        params.extend([w, b])
    return params


def reference_forward_f32(x, params):
    """Pure-f32 JAX reference (PyTorch semantics)."""
    h = x
    for layer in range(NUM_LAYERS):
        w, b = params[2 * layer], params[2 * layer + 1]
        h = h @ w + b
        if layer < NUM_LAYERS - 1:
            h = _selu(h)
    return h


def reference_forward_kernel_math(x, kernel_params):
    """Mirrors the kernel's exact math (bf16 MXU operands, f32 accumulation,
    f32 bias/SELU, VPU final layer) for a tight-tolerance check."""
    h = x.astype(jnp.float32)
    for layer in range(NUM_MXU_LAYERS):
        w = kernel_params[2 * layer]
        b = kernel_params[2 * layer + 1]
        h = jnp.dot(h.astype(jnp.bfloat16), w, preferred_element_type=jnp.float32)
        h = _selu(h + b)
    w_last, b_last = kernel_params[-2], kernel_params[-1]
    return jnp.sum(h * w_last, axis=-1, keepdims=True) + b_last


if __name__ == "__main__":
    key = jax.random.PRNGKey(0)
    key, kx = jax.random.split(key)

    B = 20  # small batch; tm=8 -> grid=(3,), exercises an uneven last tile
    x = jax.random.normal(kx, (B, LAYER_DIMS[0]), jnp.float32)
    params = init_params(key)
    kparams = prepare_params(params)

    out = deep_deep_surv_forward(x, kparams, tm=8)
    out = jax.block_until_ready(out)
    assert out.shape == (B, 1), out.shape

    # Exact-math check (same bf16 weights / f32 accumulation as the kernel).
    ref_exact = reference_forward_kernel_math(x, kparams)
    err = jnp.max(jnp.abs(out - ref_exact))
    assert jnp.allclose(out, ref_exact, atol=1e-3, rtol=1e-3), f"max abs err {err}"

    # Looser check against the pure-f32 PyTorch-equivalent reference
    # (bf16 weights accumulate a small, bounded error over 9 layers).
    ref_f32 = reference_forward_f32(x, params)
    err32 = jnp.max(jnp.abs(out - ref_f32))
    assert jnp.allclose(out, ref_f32, atol=1e-1, rtol=1e-1), f"max abs err {err32}"

    print("KERNEL_OK")
</pallas_src>

<mosaic_0001>
module attributes {stable_mosaic.version = 11 : i64} {
  func.func @_mlp_kernel(%arg0: i32, %arg1: memref<8x344xf32, #tpu.memory_space<vmem>>, %arg2: memref<344x300xbf16, #tpu.memory_space<vmem>>, %arg3: memref<1x300xf32, #tpu.memory_space<vmem>>, %arg4: memref<300x300xbf16, #tpu.memory_space<vmem>>, %arg5: memref<1x300xf32, #tpu.memory_space<vmem>>, %arg6: memref<300x300xbf16, #tpu.memory_space<vmem>>, %arg7: memref<1x300xf32, #tpu.memory_space<vmem>>, %arg8: memref<300x300xbf16, #tpu.memory_space<vmem>>, %arg9: memref<1x300xf32, #tpu.memory_space<vmem>>, %arg10: memref<300x300xbf16, #tpu.memory_space<vmem>>, %arg11: memref<1x300xf32, #tpu.memory_space<vmem>>, %arg12: memref<300x300xbf16, #tpu.memory_space<vmem>>, %arg13: memref<1x300xf32, #tpu.memory_space<vmem>>, %arg14: memref<300x150xbf16, #tpu.memory_space<vmem>>, %arg15: memref<1x150xf32, #tpu.memory_space<vmem>>, %arg16: memref<150x42xbf16, #tpu.memory_space<vmem>>, %arg17: memref<1x42xf32, #tpu.memory_space<vmem>>, %arg18: memref<1x42xf32, #tpu.memory_space<vmem>>, %arg19: memref<1x1xf32, #tpu.memory_space<vmem>>, %arg20: memref<8x1xf32, #tpu.memory_space<vmem>>) attributes {dimension_semantics = [#tpu.dimension_semantics<parallel>], iteration_bounds = array<i64: 3>, scalar_prefetch = 0 : i64, scratch_operands = 0 : i64, tpu.core_type = #tpu.core_type<tc>, window_params = [{transform_indices = @transform_0, window_bounds = array<i64: 8, 344>}, {pipeline_mode = #tpu.pipeline_mode<synchronous>, transform_indices = @transform_1, window_bounds = array<i64: 344, 300>}, {pipeline_mode = #tpu.pipeline_mode<synchronous>, transform_indices = @transform_2, window_bounds = array<i64: 1, 300>}, {pipeline_mode = #tpu.pipeline_mode<synchronous>, transform_indices = @transform_3, window_bounds = array<i64: 300, 300>}, {pipeline_mode = #tpu.pipeline_mode<synchronous>, transform_indices = @transform_4, window_bounds = array<i64: 1, 300>}, {pipeline_mode = #tpu.pipeline_mode<synchronous>, transform_indices = @transform_5, window_bounds = array<i64: 300, 300>}, {pipeline_mode = #tpu.pipeline_mode<synchronous>, transform_indices = @transform_6, window_bounds = array<i64: 1, 300>}, {pipeline_mode = #tpu.pipeline_mode<synchronous>, transform_indices = @transform_7, window_bounds = array<i64: 300, 300>}, {pipeline_mode = #tpu.pipeline_mode<synchronous>, transform_indices = @transform_8, window_bounds = array<i64: 1, 300>}, {pipeline_mode = #tpu.pipeline_mode<synchronous>, transform_indices = @transform_9, window_bounds = array<i64: 300, 300>}, {pipeline_mode = #tpu.pipeline_mode<synchronous>, transform_indices = @transform_10, window_bounds = array<i64: 1, 300>}, {pipeline_mode = #tpu.pipeline_mode<synchronous>, transform_indices = @transform_11, window_bounds = array<i64: 300, 300>}, {pipeline_mode = #tpu.pipeline_mode<synchronous>, transform_indices = @transform_12, window_bounds = array<i64: 1, 300>}, {pipeline_mode = #tpu.pipeline_mode<synchronous>, transform_indices = @transform_13, window_bounds = array<i64: 300, 150>}, {pipeline_mode = #tpu.pipeline_mode<synchronous>, transform_indices = @transform_14, window_bounds = array<i64: 1, 150>}, {pipeline_mode = #tpu.pipeline_mode<synchronous>, transform_indices = @transform_15, window_bounds = array<i64: 150, 42>}, {pipeline_mode = #tpu.pipeline_mode<synchronous>, transform_indices = @transform_16, window_bounds = array<i64: 1, 42>}, {pipeline_mode = #tpu.pipeline_mode<synchronous>, transform_indices = @transform_17, window_bounds = array<i64: 1, 42>}, {pipeline_mode = #tpu.pipeline_mode<synchronous>, transform_indices = @transform_18, window_bounds = array<i64: 1, 1>}, {transform_indices = @transform_19, window_bounds = array<i64: 8, 1>}]} {
    %c0 = arith.constant 0 : index
    %c0_0 = arith.constant 0 : index
    %0 = vector.load %arg1[%c0, %c0_0] : memref<8x344xf32, #tpu.memory_space<vmem>>, vector<8x344xf32>
    %c0_1 = arith.constant 0 : index
    %c0_2 = arith.constant 0 : index
    %1 = vector.load %arg2[%c0_1, %c0_2] : memref<344x300xbf16, #tpu.memory_space<vmem>>, vector<344x300xbf16>
    %c0_3 = arith.constant 0 : index
    %c0_4 = arith.constant 0 : index
    %2 = vector.load %arg3[%c0_3, %c0_4] : memref<1x300xf32, #tpu.memory_space<vmem>>, vector<1x300xf32>
    %3 = arith.truncf %0 : vector<8x344xf32> to vector<8x344xbf16>
    %cst = arith.constant dense<0.000000e+00> : vector<8x300xf32>
    %4 = tpu.matmul %3, %1, %cst {dimension_numbers = #tpu.dot_dimension_numbers<[1], [0], [0], [1], [0, 0, 1, 1], [], []>} : vector<8x344xbf16>, vector<344x300xbf16>, vector<8x300xf32> -> vector<8x300xf32>
    %5 = vector.broadcast %2 : vector<1x300xf32> to vector<8x300xf32>
    %6 = arith.addf %4, %5 : vector<8x300xf32>
    %cst_5 = arith.constant 0.000000e+00 : f32
    %7 = vector.broadcast %cst_5 : f32 to vector<8x300xf32>
    %8 = arith.minimumf %6, %7 : vector<8x300xf32>
    %cst_6 = arith.constant 0.000000e+00 : f32
    %9 = vector.broadcast %cst_6 : f32 to vector<8x300xf32>
    %10 = arith.cmpf ogt, %6, %9 : vector<8x300xf32>
    %11 = math.exp %8 : vector<8x300xf32>
    %cst_7 = arith.constant 1.000000e+00 : f32
    %12 = vector.broadcast %cst_7 : f32 to vector<8x300xf32>
    %13 = arith.subf %11, %12 : vector<8x300xf32>
    %cst_8 = arith.constant 1.67326319 : f32
    %14 = vector.broadcast %cst_8 : f32 to vector<8x300xf32>
    %15 = arith.mulf %14, %13 : vector<8x300xf32>
    %16 = arith.select %10, %6, %15 : vector<8x300xi1>, vector<8x300xf32>
    %cst_9 = arith.constant 1.05070102 : f32
    %17 = vector.broadcast %cst_9 : f32 to vector<8x300xf32>
    %18 = arith.mulf %17, %16 : vector<8x300xf32>
    %c0_10 = arith.constant 0 : index
    %c0_11 = arith.constant 0 : index
    %19 = vector.load %arg4[%c0_10, %c0_11] : memref<300x300xbf16, #tpu.memory_space<vmem>>, vector<300x300xbf16>
    %c0_12 = arith.constant 0 : index
    %c0_13 = arith.constant 0 : index
    %20 = vector.load %arg5[%c0_12, %c0_13] : memref<1x300xf32, #tpu.memory_space<vmem>>, vector<1x300xf32>
    %21 = arith.truncf %18 : vector<8x300xf32> to vector<8x300xbf16>
    %cst_14 = arith.constant dense<0.000000e+00> : vector<8x300xf32>
    %22 = tpu.matmul %21, %19, %cst_14 {dimension_numbers = #tpu.dot_dimension_numbers<[1], [0], [0], [1], [0, 0, 1, 1], [], []>} : vector<8x300xbf16>, vector<300x300xbf16>, vector<8x300xf32> -> vector<8x300xf32>
    %23 = vector.broadcast %20 : vector<1x300xf32> to vector<8x300xf32>
    %24 = arith.addf %22, %23 : vector<8x300xf32>
    %cst_15 = arith.constant 0.000000e+00 : f32
    %25 = vector.broadcast %cst_15 : f32 to vector<8x300xf32>
    %26 = arith.minimumf %24, %25 : vector<8x300xf32>
    %cst_16 = arith.constant 0.000000e+00 : f32
    %27 = vector.broadcast %cst_16 : f32 to vector<8x300xf32>
    %28 = arith.cmpf ogt, %24, %27 : vector<8x300xf32>
    %29 = math.exp %26 : vector<8x300xf32>
    %cst_17 = arith.constant 1.000000e+00 : f32
    %30 = vector.broadcast %cst_17 : f32 to vector<8x300xf32>
    %31 = arith.subf %29, %30 : vector<8x300xf32>
    %cst_18 = arith.constant 1.67326319 : f32
    %32 = vector.broadcast %cst_18 : f32 to vector<8x300xf32>
    %33 = arith.mulf %32, %31 : vector<8x300xf32>
    %34 = arith.select %28, %24, %33 : vector<8x300xi1>, vector<8x300xf32>
    %cst_19 = arith.constant 1.05070102 : f32
    %35 = vector.broadcast %cst_19 : f32 to vector<8x300xf32>
    %36 = arith.mulf %35, %34 : vector<8x300xf32>
    %c0_20 = arith.constant 0 : index
    %c0_21 = arith.constant 0 : index
    %37 = vector.load %arg6[%c0_20, %c0_21] : memref<300x300xbf16, #tpu.memory_space<vmem>>, vector<300x300xbf16>
    %c0_22 = arith.constant 0 : index
    %c0_23 = arith.constant 0 : index
    %38 = vector.load %arg7[%c0_22, %c0_23] : memref<1x300xf32, #tpu.memory_space<vmem>>, vector<1x300xf32>
    %39 = arith.truncf %36 : vector<8x300xf32> to vector<8x300xbf16>
    %cst_24 = arith.constant dense<0.000000e+00> : vector<8x300xf32>
    %40 = tpu.matmul %39, %37, %cst_24 {dimension_numbers = #tpu.dot_dimension_numbers<[1], [0], [0], [1], [0, 0, 1, 1], [], []>} : vector<8x300xbf16>, vector<300x300xbf16>, vector<8x300xf32> -> vector<8x300xf32>
    %41 = vector.broadcast %38 : vector<1x300xf32> to vector<8x300xf32>
    %42 = arith.addf %40, %41 : vector<8x300xf32>
    %cst_25 = arith.constant 0.000000e+00 : f32
    %43 = vector.broadcast %cst_25 : f32 to vector<8x300xf32>
    %44 = arith.minimumf %42, %43 : vector<8x300xf32>
    %cst_26 = arith.constant 0.000000e+00 : f32
    %45 = vector.broadcast %cst_26 : f32 to vector<8x300xf32>
    %46 = arith.cmpf ogt, %42, %45 : vector<8x300xf32>
    %47 = math.exp %44 : vector<8x300xf32>
    %cst_27 = arith.constant 1.000000e+00 : f32
    %48 = vector.broadcast %cst_27 : f32 to vector<8x300xf32>
    %49 = arith.subf %47, %48 : vector<8x300xf32>
    %cst_28 = arith.constant 1.67326319 : f32
    %50 = vector.broadcast %cst_28 : f32 to vector<8x300xf32>
    %51 = arith.mulf %50, %49 : vector<8x300xf32>
    %52 = arith.select %46, %42, %51 : vector<8x300xi1>, vector<8x300xf32>
    %cst_29 = arith.constant 1.05070102 : f32
    %53 = vector.broadcast %cst_29 : f32 to vector<8x300xf32>
    %54 = arith.mulf %53, %52 : vector<8x300xf32>
    %c0_30 = arith.constant 0 : index
    %c0_31 = arith.constant 0 : index
    %55 = vector.load %arg8[%c0_30, %c0_31] : memref<300x300xbf16, #tpu.memory_space<vmem>>, vector<300x300xbf16>
    %c0_32 = arith.constant 0 : index
    %c0_33 = arith.constant 0 : index
    %56 = vector.load %arg9[%c0_32, %c0_33] : memref<1x300xf32, #tpu.memory_space<vmem>>, vector<1x300xf32>
    %57 = arith.truncf %54 : vector<8x300xf32> to vector<8x300xbf16>
    %cst_34 = arith.constant dense<0.000000e+00> : vector<8x300xf32>
    %58 = tpu.matmul %57, %55, %cst_34 {dimension_numbers = #tpu.dot_dimension_numbers<[1], [0], [0], [1], [0, 0, 1, 1], [], []>} : vector<8x300xbf16>, vector<300x300xbf16>, vector<8x300xf32> -> vector<8x300xf32>
    %59 = vector.broadcast %56 : vector<1x300xf32> to vector<8x300xf32>
    %60 = arith.addf %58, %59 : vector<8x300xf32>
    %cst_35 = arith.constant 0.000000e+00 : f32
    %61 = vector.broadcast %cst_35 : f32 to vector<8x300xf32>
    %62 = arith.minimumf %60, %61 : vector<8x300xf32>
    %cst_36 = arith.constant 0.000000e+00 : f32
    %63 = vector.broadcast %cst_36 : f32 to vector<8x300xf32>
    %64 = arith.cmpf ogt, %60, %63 : vector<8x300xf32>
    %65 = math.exp %62 : vector<8x300xf32>
    %cst_37 = arith.constant 1.000000e+00 : f32
    %66 = vector.broadcast %cst_37 : f32 to vector<8x300xf32>
    %67 = arith.subf %65, %66 : vector<8x300xf32>
    %cst_38 = arith.constant 1.67326319 : f32
    %68 = vector.broadcast %cst_38 : f32 to vector<8x300xf32>
    %69 = arith.mulf %68, %67 : vector<8x300xf32>
    %70 = arith.select %64, %60, %69 : vector<8x300xi1>, vector<8x300xf32>
    %cst_39 = arith.constant 1.05070102 : f32
    %71 = vector.broadcast %cst_39 : f32 to vector<8x300xf32>
    %72 = arith.mulf %71, %70 : vector<8x300xf32>
    %c0_40 = arith.constant 0 : index
    %c0_41 = arith.constant 0 : index
    %73 = vector.load %arg10[%c0_40, %c0_41] : memref<300x300xbf16, #tpu.memory_space<vmem>>, vector<300x300xbf16>
    %c0_42 = arith.constant 0 : index
    %c0_43 = arith.constant 0 : index
    %74 = vector.load %arg11[%c0_42, %c0_43] : memref<1x300xf32, #tpu.memory_space<vmem>>, vector<1x300xf32>
    %75 = arith.truncf %72 : vector<8x300xf32> to vector<8x300xbf16>
    %cst_44 = arith.constant dense<0.000000e+00> : vector<8x300xf32>
    %76 = tpu.matmul %75, %73, %cst_44 {dimension_numbers = #tpu.dot_dimension_numbers<[1], [0], [0], [1], [0, 0, 1, 1], [], []>} : vector<8x300xbf16>, vector<300x300xbf16>, vector<8x300xf32> -> vector<8x300xf32>
    %77 = vector.broadcast %74 : vector<1x300xf32> to vector<8x300xf32>
    %78 = arith.addf %76, %77 : vector<8x300xf32>
    %cst_45 = arith.constant 0.000000e+00 : f32
    %79 = vector.broadcast %cst_45 : f32 to vector<8x300xf32>
    %80 = arith.minimumf %78, %79 : vector<8x300xf32>
    %cst_46 = arith.constant 0.000000e+00 : f32
    %81 = vector.broadcast %cst_46 : f32 to vector<8x300xf32>
    %82 = arith.cmpf ogt, %78, %81 : vector<8x300xf32>
    %83 = math.exp %80 : vector<8x300xf32>
    %cst_47 = arith.constant 1.000000e+00 : f32
    %84 = vector.broadcast %cst_47 : f32 to vector<8x300xf32>
    %85 = arith.subf %83, %84 : vector<8x300xf32>
    %cst_48 = arith.constant 1.67326319 : f32
    %86 = vector.broadcast %cst_48 : f32 to vector<8x300xf32>
    %87 = arith.mulf %86, %85 : vector<8x300xf32>
    %88 = arith.select %82, %78, %87 : vector<8x300xi1>, vector<8x300xf32>
    %cst_49 = arith.constant 1.05070102 : f32
    %89 = vector.broadcast %cst_49 : f32 to vector<8x300xf32>
    %90 = arith.mulf %89, %88 : vector<8x300xf32>
    %c0_50 = arith.constant 0 : index
    %c0_51 = arith.constant 0 : index
    %91 = vector.load %arg12[%c0_50, %c0_51] : memref<300x300xbf16, #tpu.memory_space<vmem>>, vector<300x300xbf16>
    %c0_52 = arith.constant 0 : index
    %c0_53 = arith.constant 0 : index
    %92 = vector.load %arg13[%c0_52, %c0_53] : memref<1x300xf32, #tpu.memory_space<vmem>>, vector<1x300xf32>
    %93 = arith.truncf %90 : vector<8x300xf32> to vector<8x300xbf16>
    %cst_54 = arith.constant dense<0.000000e+00> : vector<8x300xf32>
    %94 = tpu.matmul %93, %91, %cst_54 {dimension_numbers = #tpu.dot_dimension_numbers<[1], [0], [0], [1], [0, 0, 1, 1], [], []>} : vector<8x300xbf16>, vector<300x300xbf16>, vector<8x300xf32> -> vector<8x300xf32>
    %95 = vector.broadcast %92 : vector<1x300xf32> to vector<8x300xf32>
    %96 = arith.addf %94, %95 : vector<8x300xf32>
    %cst_55 = arith.constant 0.000000e+00 : f32
    %97 = vector.broadcast %cst_55 : f32 to vector<8x300xf32>
    %98 = arith.minimumf %96, %97 : vector<8x300xf32>
    %cst_56 = arith.constant 0.000000e+00 : f32
    %99 = vector.broadcast %cst_56 : f32 to vector<8x300xf32>
    %100 = arith.cmpf ogt, %96, %99 : vector<8x300xf32>
    %101 = math.exp %98 : vector<8x300xf32>
    %cst_57 = arith.constant 1.000000e+00 : f32
    %102 = vector.broadcast %cst_57 : f32 to vector<8x300xf32>
    %103 = arith.subf %101, %102 : vector<8x300xf32>
    %cst_58 = arith.constant 1.67326319 : f32
    %104 = vector.broadcast %cst_58 : f32 to vector<8x300xf32>
    %105 = arith.mulf %104, %103 : vector<8x300xf32>
    %106 = arith.select %100, %96, %105 : vector<8x300xi1>, vector<8x300xf32>
    %cst_59 = arith.constant 1.05070102 : f32
    %107 = vector.broadcast %cst_59 : f32 to vector<8x300xf32>
    %108 = arith.mulf %107, %106 : vector<8x300xf32>
    %c0_60 = arith.constant 0 : index
    %c0_61 = arith.constant 0 : index
    %109 = vector.load %arg14[%c0_60, %c0_61] : memref<300x150xbf16, #tpu.memory_space<vmem>>, vector<300x150xbf16>
    %c0_62 = arith.constant 0 : index
    %c0_63 = arith.constant 0 : index
    %110 = vector.load %arg15[%c0_62, %c0_63] : memref<1x150xf32, #tpu.memory_space<vmem>>, vector<1x150xf32>
    %111 = arith.truncf %108 : vector<8x300xf32> to vector<8x300xbf16>
    %cst_64 = arith.constant dense<0.000000e+00> : vector<8x150xf32>
    %112 = tpu.matmul %111, %109, %cst_64 {dimension_numbers = #tpu.dot_dimension_numbers<[1], [0], [0], [1], [0, 0, 1, 1], [], []>} : vector<8x300xbf16>, vector<300x150xbf16>, vector<8x150xf32> -> vector<8x150xf32>
    %113 = vector.broadcast %110 : vector<1x150xf32> to vector<8x150xf32>
    %114 = arith.addf %112, %113 : vector<8x150xf32>
    %cst_65 = arith.constant 0.000000e+00 : f32
    %115 = vector.broadcast %cst_65 : f32 to vector<8x150xf32>
    %116 = arith.minimumf %114, %115 : vector<8x150xf32>
    %cst_66 = arith.constant 0.000000e+00 : f32
    %117 = vector.broadcast %cst_66 : f32 to vector<8x150xf32>
    %118 = arith.cmpf ogt, %114, %117 : vector<8x150xf32>
    %119 = math.exp %116 : vector<8x150xf32>
    %cst_67 = arith.constant 1.000000e+00 : f32
    %120 = vector.broadcast %cst_67 : f32 to vector<8x150xf32>
    %121 = arith.subf %119, %120 : vector<8x150xf32>
    %cst_68 = arith.constant 1.67326319 : f32
    %122 = vector.broadcast %cst_68 : f32 to vector<8x150xf32>
    %123 = arith.mulf %122, %121 : vector<8x150xf32>
    %124 = arith.select %118, %114, %123 : vector<8x150xi1>, vector<8x150xf32>
    %cst_69 = arith.constant 1.05070102 : f32
    %125 = vector.broadcast %cst_69 : f32 to vector<8x150xf32>
    %126 = arith.mulf %125, %124 : vector<8x150xf32>
    %c0_70 = arith.constant 0 : index
    %c0_71 = arith.constant 0 : index
    %127 = vector.load %arg16[%c0_70, %c0_71] : memref<150x42xbf16, #tpu.memory_space<vmem>>, vector<150x42xbf16>
    %c0_72 = arith.constant 0 : index
    %c0_73 = arith.constant 0 : index
    %128 = vector.load %arg17[%c0_72, %c0_73] : memref<1x42xf32, #tpu.memory_space<vmem>>, vector<1x42xf32>
    %129 = arith.truncf %126 : vector<8x150xf32> to vector<8x150xbf16>
    %cst_74 = arith.constant dense<0.000000e+00> : vector<8x42xf32>
    %130 = tpu.matmul %129, %127, %cst_74 {dimension_numbers = #tpu.dot_dimension_numbers<[1], [0], [0], [1], [0, 0, 1, 1], [], []>} : vector<8x150xbf16>, vector<150x42xbf16>, vector<8x42xf32> -> vector<8x42xf32>
    %131 = vector.broadcast %128 : vector<1x42xf32> to vector<8x42xf32>
    %132 = arith.addf %130, %131 : vector<8x42xf32>
    %cst_75 = arith.constant 0.000000e+00 : f32
    %133 = vector.broadcast %cst_75 : f32 to vector<8x42xf32>
    %134 = arith.minimumf %132, %133 : vector<8x42xf32>
    %cst_76 = arith.constant 0.000000e+00 : f32
    %135 = vector.broadcast %cst_76 : f32 to vector<8x42xf32>
    %136 = arith.cmpf ogt, %132, %135 : vector<8x42xf32>
    %137 = math.exp %134 : vector<8x42xf32>
    %cst_77 = arith.constant 1.000000e+00 : f32
    %138 = vector.broadcast %cst_77 : f32 to vector<8x42xf32>
    %139 = arith.subf %137, %138 : vector<8x42xf32>
    %cst_78 = arith.constant 1.67326319 : f32
    %140 = vector.broadcast %cst_78 : f32 to vector<8x42xf32>
    %141 = arith.mulf %140, %139 : vector<8x42xf32>
    %142 = arith.select %136, %132, %141 : vector<8x42xi1>, vector<8x42xf32>
    %cst_79 = arith.constant 1.05070102 : f32
    %143 = vector.broadcast %cst_79 : f32 to vector<8x42xf32>
    %144 = arith.mulf %143, %142 : vector<8x42xf32>
    %c0_80 = arith.constant 0 : index
    %c0_81 = arith.constant 0 : index
    %145 = vector.load %arg18[%c0_80, %c0_81] : memref<1x42xf32, #tpu.memory_space<vmem>>, vector<1x42xf32>
    %c0_82 = arith.constant 0 : index
    %c0_83 = arith.constant 0 : index
    %146 = vector.load %arg19[%c0_82, %c0_83] : memref<1x1xf32, #tpu.memory_space<vmem>>, vector<1x1xf32>
    %147 = vector.broadcast %145 : vector<1x42xf32> to vector<8x42xf32>
    %148 = arith.mulf %144, %147 : vector<8x42xf32>
    %cst_84 = arith.constant dense<0.000000e+00> : vector<8xf32>
    %149 = vector.multi_reduction <add>, %148, %cst_84 [1] : vector<8x42xf32> to vector<8xf32>
    %150 = vector.shape_cast %149 : vector<8xf32> to vector<8x1xf32>
    %151 = vector.broadcast %146 : vector<1x1xf32> to vector<8x1xf32>
    %152 = arith.addf %150, %151 : vector<8x1xf32>
    %c0_85 = arith.constant 0 : index
    %c0_86 = arith.constant 0 : index
    %153 = vector.load %arg20[%c0_85, %c0_86] : memref<8x1xf32, #tpu.memory_space<vmem>>, vector<8x1xf32>
    tpu.vector_store %arg20[%c0_85, %c0_86], %152 {strides = array<i32>} : memref<8x1xf32, #tpu.memory_space<vmem>>, vector<8x1xf32>,
    return
  }
  func.func @transform_0(%arg0: i32) -> (i32, i32) {
    %c0_i32 = arith.constant 0 : i32
    %c0_i32_0 = arith.constant 0 : i32
    return %arg0, %c0_i32 : i32, i32
  }
  func.func @transform_1(%arg0: i32) -> (i32, i32) {
    %c0_i32 = arith.constant 0 : i32
    %c0_i32_0 = arith.constant 0 : i32
    %c0_i32_1 = arith.constant 0 : i32
    return %c0_i32, %c0_i32_0 : i32, i32
  }
  func.func @transform_2(%arg0: i32) -> (i32, i32) {
    %c0_i32 = arith.constant 0 : i32
    %c0_i32_0 = arith.constant 0 : i32
    %c0_i32_1 = arith.constant 0 : i32
    return %c0_i32, %c0_i32_0 : i32, i32
  }
  func.func @transform_3(%arg0: i32) -> (i32, i32) {
    %c0_i32 = arith.constant 0 : i32
    %c0_i32_0 = arith.constant 0 : i32
    %c0_i32_1 = arith.constant 0 : i32
    return %c0_i32, %c0_i32_0 : i32, i32
  }
  func.func @transform_4(%arg0: i32) -> (i32, i32) {
    %c0_i32 = arith.constant 0 : i32
    %c0_i32_0 = arith.constant 0 : i32
    %c0_i32_1 = arith.constant 0 : i32
    return %c0_i32, %c0_i32_0 : i32, i32
  }
  func.func @transform_5(%arg0: i32) -> (i32, i32) {
    %c0_i32 = arith.constant 0 : i32
    %c0_i32_0 = arith.constant 0 : i32
    %c0_i32_1 = arith.constant 0 : i32
    return %c0_i32, %c0_i32_0 : i32, i32
  }
  func.func @transform_6(%arg0: i32) -> (i32, i32) {
    %c0_i32 = arith.constant 0 : i32
    %c0_i32_0 = arith.constant 0 : i32
    %c0_i32_1 = arith.constant 0 : i32
    return %c0_i32, %c0_i32_0 : i32, i32
  }
  func.func @transform_7(%arg0: i32) -> (i32, i32) {
    %c0_i32 = arith.constant 0 : i32
    %c0_i32_0 = arith.constant 0 : i32
    %c0_i32_1 = arith.constant 0 : i32
    return %c0_i32, %c0_i32_0 : i32, i32
  }
  func.func @transform_8(%arg0: i32) -> (i32, i32) {
    %c0_i32 = arith.constant 0 : i32
    %c0_i32_0 = arith.constant 0 : i32
    %c0_i32_1 = arith.constant 0 : i32
    return %c0_i32, %c0_i32_0 : i32, i32
  }
  func.func @transform_9(%arg0: i32) -> (i32, i32) {
    %c0_i32 = arith.constant 0 : i32
    %c0_i32_0 = arith.constant 0 : i32
    %c0_i32_1 = arith.constant 0 : i32
    return %c0_i32, %c0_i32_0 : i32, i32
  }
  func.func @transform_10(%arg0: i32) -> (i32, i32) {
    %c0_i32 = arith.constant 0 : i32
    %c0_i32_0 = arith.constant 0 : i32
    %c0_i32_1 = arith.constant 0 : i32
    return %c0_i32, %c0_i32_0 : i32, i32
  }
  func.func @transform_11(%arg0: i32) -> (i32, i32) {
    %c0_i32 = arith.constant 0 : i32
    %c0_i32_0 = arith.constant 0 : i32
    %c0_i32_1 = arith.constant 0 : i32
    return %c0_i32, %c0_i32_0 : i32, i32
  }
  func.func @transform_12(%arg0: i32) -> (i32, i32) {
    %c0_i32 = arith.constant 0 : i32
    %c0_i32_0 = arith.constant 0 : i32
    %c0_i32_1 = arith.constant 0 : i32
    return %c0_i32, %c0_i32_0 : i32, i32
  }
  func.func @transform_13(%arg0: i32) -> (i32, i32) {
    %c0_i32 = arith.constant 0 : i32
    %c0_i32_0 = arith.constant 0 : i32
    %c0_i32_1 = arith.constant 0 : i32
    return %c0_i32, %c0_i32_0 : i32, i32
  }
  func.func @transform_14(%arg0: i32) -> (i32, i32) {
    %c0_i32 = arith.constant 0 : i32
    %c0_i32_0 = arith.constant 0 : i32
    %c0_i32_1 = arith.constant 0 : i32
    return %c0_i32, %c0_i32_0 : i32, i32
  }
  func.func @transform_15(%arg0: i32) -> (i32, i32) {
    %c0_i32 = arith.constant 0 : i32
    %c0_i32_0 = arith.constant 0 : i32
    %c0_i32_1 = arith.constant 0 : i32
    return %c0_i32, %c0_i32_0 : i32, i32
  }
  func.func @transform_16(%arg0: i32) -> (i32, i32) {
    %c0_i32 = arith.constant 0 : i32
    %c0_i32_0 = arith.constant 0 : i32
    %c0_i32_1 = arith.constant 0 : i32
    return %c0_i32, %c0_i32_0 : i32, i32
  }
  func.func @transform_17(%arg0: i32) -> (i32, i32) {
    %c0_i32 = arith.constant 0 : i32
    %c0_i32_0 = arith.constant 0 : i32
    %c0_i32_1 = arith.constant 0 : i32
    return %c0_i32, %c0_i32_0 : i32, i32
  }
  func.func @transform_18(%arg0: i32) -> (i32, i32) {
    %c0_i32 = arith.constant 0 : i32
    %c0_i32_0 = arith.constant 0 : i32
    %c0_i32_1 = arith.constant 0 : i32
    return %c0_i32, %c0_i32_0 : i32, i32
  }
  func.func @transform_19(%arg0: i32) -> (i32, i32) {
    %c0_i32 = arith.constant 0 : i32
    %c0_i32_0 = arith.constant 0 : i32
    return %arg0, %c0_i32 : i32, i32
  }
}

</mosaic_0001>

<llo_original>
// kernel: deep_deep_surv_forward.1
$region0: #{deep_deep_surv_forward.1}
  #allocation0 [shape = 'u32[]', space=smem, size = 0x4, offset = 0x4, fixed_abs, tag = 'smem constant byte address 0x4 - core index']
  #allocation1 [shape = 'u32[144,128]{1,0:T(1,128)}', space=vmem, size = 0x12000, scoped, tag = 'internal scratch']
  #allocation2 [shape = 'f32[1,1]{1,0:T(1,128)S(1)}', space=vmem, size = 0x200, scoped, tag = 'scoped memory for deep_deep_surv_forward.1']
  %s0 = inlined_call_operand.vmem [shape: f32[20,344], index: 0, kind: input, shape index: {}]
  %s1 = inlined_call_operand.vmem [shape: bf16[344,300], index: 1, kind: input, shape index: {}]
  %s2 = inlined_call_operand.vmem [shape: f32[1,300], index: 2, kind: input, shape index: {}]
  %s3 = inlined_call_operand.vmem [shape: bf16[300,300], index: 3, kind: input, shape index: {}]
  %s4 = inlined_call_operand.vmem [shape: f32[1,300], index: 4, kind: input, shape index: {}]
  %s5 = inlined_call_operand.vmem [shape: bf16[300,300], index: 5, kind: input, shape index: {}]
  %s6 = inlined_call_operand.vmem [shape: f32[1,300], index: 6, kind: input, shape index: {}]
  %s7 = inlined_call_operand.hbm [shape: bf16[300,300], index: 7, kind: input, shape index: {}]
  %s8 = inlined_call_operand.vmem [shape: f32[1,300], index: 8, kind: input, shape index: {}]
  %s9 = inlined_call_operand.hbm [shape: bf16[300,300], index: 9, kind: input, shape index: {}]
  %s10 = inlined_call_operand.vmem [shape: f32[1,300], index: 10, kind: input, shape index: {}]
  %s11 = inlined_call_operand.hbm [shape: bf16[300,300], index: 11, kind: input, shape index: {}]
  %s12 = inlined_call_operand.vmem [shape: f32[1,300], index: 12, kind: input, shape index: {}]
  %s13 = inlined_call_operand.vmem [shape: bf16[300,150], index: 13, kind: input, shape index: {}]
  %s14 = inlined_call_operand.vmem [shape: f32[1,150], index: 14, kind: input, shape index: {}]
  %s15 = inlined_call_operand.vmem [shape: bf16[150,42], index: 15, kind: input, shape index: {}]
  %s16 = inlined_call_operand.vmem [shape: f32[1,42], index: 16, kind: input, shape index: {}]
  %s17 = inlined_call_operand.vmem [shape: f32[1,42], index: 17, kind: input, shape index: {}]
  %s18 = inlined_call_operand.<no memory space> [shape: f32[1,1], index: 18, kind: input, shape index: {}]
  %s19 = inlined_call_operand.vmem [shape: f32[20,1], index: 19, kind: output, shape index: {}]
  %s20 = sld [smem:[#allocation0]]
  $region121: #{deep_deep_surv_forward.1} parent=0
    _
  %s22 = ssub.s32 1, %s20
  %s23 = scalar_select 0, %s22, %s20
  %v24 = vstv %s18
  %25 = vst [vmem:[#allocation2] sm:$0x1] %v24
  $region1: #{deep_deep_surv_forward.1} parent=0
    #allocation3 [shape = 'u8[233472]{0}', space=vmem, size = 0x39000, scoped, tag = 'input window, operand 7, single buffered']
    #allocation4 [shape = 's32[2]{0}', space=sflag, size = 0x8, scoped, tag = 'scoped memory for deep_deep_surv_forward.1']
    #allocation5 [shape = 'u8[233472]{0}', space=vmem, size = 0x39000, scoped, tag = 'input window, operand 9, single buffered']
    #allocation6 [shape = 's32[1]{0}', space=sflag, size = 0x4, scoped, tag = 'scoped memory for deep_deep_surv_forward.1']
    #allocation7 [shape = 'u8[233472]{0}', space=vmem, size = 0x39000, scoped, tag = 'input window, operand 11, single buffered']
    %26 = vsyncpa [#allocation4], 0
    %27 = vsyncpa [#allocation6], 0
    loop: start=0, step=1, limit=5
    $region2: #{deep_deep_surv_forward.1} parent=1 // loop_pre_header
      _
    $region3: #{deep_deep_surv_forward.1} parent=1 // loop_header
      %s29 = sphi 0, %s33
      %p30 = scmp.ge.s32.totalorder %s29, 5
      %s39 = sphi 0, %s41
      %s42 = sphi 0, %s39
      %s43 = sphi 0, %s42
      %s59 = sphi 0, %s43
      %s63 = sphi 0, %s63
      %s65 = sphi 0, %s63
      %s66 = sphi 0, %s65
      %s80 = sphi 0, %s66
      %s84 = sphi 0, %s84
      %s86 = sphi 0, %s84
      %s87 = sphi 0, %s86
      %s101 = sphi 0, %s87
      %s105 = sphi 0, %s105
      %s107 = sphi 0, %s105
      %s108 = sphi 0, %s107
      %s122 = sphi 0, %s108
      %s126 = sphi 0, %s126
      %s128 = sphi 0, %s126
      %s129 = sphi 0, %s128
      %s143 = sphi 0, %s129
      %s147 = sphi 0, %s147
      %s149 = sphi 0, %s147
      %s150 = sphi 0, %s149
      %s164 = sphi 0, %s150
      %s168 = sphi 0, %s168
      %s170 = sphi 0, %s168
      %s171 = sphi 0, %s170
      %s185 = sphi 0, %s171
      %s189 = sphi 0, %s189
      %s191 = sphi 0, %s189
      %s192 = sphi 0, %s191
      %s206 = sphi 0, %s192
      %s210 = sphi 0, %s210
      %s212 = sphi 0, %s210
      %s213 = sphi 0, %s212
      %s227 = sphi 0, %s213
      %s231 = sphi 0, %s231
      %s233 = sphi 0, %s231
      %s234 = sphi 0, %s233
      %s248 = sphi 0, %s234
      %s252 = sphi 0, %s252
      %s254 = sphi 0, %s252
      %s255 = sphi 0, %s254
      %s269 = sphi 0, %s255
      %s273 = sphi 0, %s273
      %s275 = sphi 0, %s273
      %s276 = sphi 0, %s275
      %s290 = sphi 0, %s276
      %s294 = sphi 0, %s294
      %s296 = sphi 0, %s294
      %s297 = sphi 0, %s296
      %s311 = sphi 0, %s297
      %s315 = sphi 0, %s315
      %s317 = sphi 0, %s315
      %s318 = sphi 0, %s317
      %s332 = sphi 0, %s318
      %s336 = sphi 0, %s336
      %s338 = sphi 0, %s336
      %s339 = sphi 0, %s338
      %s353 = sphi 0, %s339
      %s357 = sphi 0, %s357
      %s359 = sphi 0, %s357
      %s360 = sphi 0, %s359
      %s374 = sphi 0, %s360
      %s378 = sphi 0, %s378
      %s380 = sphi 0, %s378
      %s381 = sphi 0, %s380
      %s395 = sphi 0, %s381
      %s399 = sphi 0, %s399
      %s401 = sphi 0, %s399
      %s402 = sphi 0, %s401
      %s416 = sphi 0, %s402
      %s420 = sphi 0, %s420
      %s422 = sphi 0, %s420
      %s423 = sphi 0, %s422
      %s437 = sphi 0, %s423
      %s443 = sphi 0, %s445
      %s446 = sphi 0, %s443
      %s447 = sphi 0, %s446
      %s463 = sphi 0, %s447
    $region4: #{deep_deep_surv_forward.1} parent=1 // loop_header_branch
      %32 = sbr.rel (%p30) target = $region8
    $region5: #{deep_deep_surv_forward.1} parent=1 // loop_body
      %s34 = ssub.s32 %s29, 1
      %s35 = ssub.s32 %s29, 2
      %s36 = sadd.s32 %s29, 1
      %s37 = ssub.s32 %s29, %s36
      %p38 = scmp.eq.s32.totalorder %s37, 0
      %s40 = sadd.s32 %s39, 1
      %s41 = scalar_select %p38, %s39, %s40
      %p44 = pneg %p38
      %p45 = scmp.eq.s32.totalorder %s29, 2
      %p46 = por %p44, %p45
      %p47 = scmp.ne.s32.totalorder %s39, %s42
      %p48 = scmp.eq.s32.totalorder %s29, 0
      %p49 = por %p47, %p48
      %p50 = scmp.ne.s32.totalorder %s39, %s42
      %p51 = scmp.eq.s32.totalorder %s34, 2
      %p52 = por %p50, %p51
      %p53 = scmp.ne.s32.totalorder %s42, %s43
      %p54 = scmp.eq.s32.totalorder %s34, 0
      %p55 = por %p53, %p54
      %p56 = scmp.ne.s32.totalorder %s42, %s43
      %p57 = scmp.eq.s32.totalorder %s35, 2
      %p58 = por %p56, %p57
      %p60 = scmp.ne.s32.totalorder %s43, %s59
      %p61 = scmp.eq.s32.totalorder %s35, 0
      %p62 = por %p60, %p61
      %s64 = sadd.s32 %s63, 1
      %p67 = scmp.eq.s32.totalorder %s29, 2
      %p68 = scmp.ne.s32.totalorder %s63, %s65
      %p69 = scmp.eq.s32.totalorder %s29, 0
      %p70 = por %p68, %p69
      %p71 = scmp.ne.s32.totalorder %s63, %s65
      %p72 = scmp.eq.s32.totalorder %s34, 2
      %p73 = por %p71, %p72
      %p74 = scmp.ne.s32.totalorder %s65, %s66
      %p75 = scmp.eq.s32.totalorder %s34, 0
      %p76 = por %p74, %p75
      %p77 = scmp.ne.s32.totalorder %s65, %s66
      %p78 = scmp.eq.s32.totalorder %s35, 2
      %p79 = por %p77, %p78
      %p81 = scmp.ne.s32.totalorder %s66, %s80
      %p82 = scmp.eq.s32.totalorder %s35, 0
      %p83 = por %p81, %p82
      %s85 = sadd.s32 %s84, 1
      %p88 = scmp.eq.s32.totalorder %s29, 2
      %p89 = scmp.ne.s32.totalorder %s84, %s86
      %p90 = scmp.eq.s32.totalorder %s29, 0
      %p91 = por %p89, %p90
      %p92 = scmp.ne.s32.totalorder %s84, %s86
      %p93 = scmp.eq.s32.totalorder %s34, 2
      %p94 = por %p92, %p93
      %p95 = scmp.ne.s32.totalorder %s86, %s87
      %p96 = scmp.eq.s32.totalorder %s34, 0
      %p97 = por %p95, %p96
      %p98 = scmp.ne.s32.totalorder %s86, %s87
      %p99 = scmp.eq.s32.totalorder %s35, 2
      %p100 = por %p98, %p99
      %p102 = scmp.ne.s32.totalorder %s87, %s101
      %p103 = scmp.eq.s32.totalorder %s35, 0
      %p104 = por %p102, %p103
      %s106 = sadd.s32 %s105, 1
      %p109 = scmp.eq.s32.totalorder %s29, 2
      %p110 = scmp.ne.s32.totalorder %s105, %s107
      %p111 = scmp.eq.s32.totalorder %s29, 0
      %p112 = por %p110, %p111
      %p113 = scmp.ne.s32.totalorder %s105, %s107
      %p114 = scmp.eq.s32.totalorder %s34, 2
      %p115 = por %p113, %p114
      %p116 = scmp.ne.s32.totalorder %s107, %s108
      %p117 = scmp.eq.s32.totalorder %s34, 0
      %p118 = por %p116, %p117
      %p119 = scmp.ne.s32.totalorder %s107, %s108
      %p120 = scmp.eq.s32.totalorder %s35, 2
      %p121 = por %p119, %p120
      %p123 = scmp.ne.s32.totalorder %s108, %s122
      %p124 = scmp.eq.s32.totalorder %s35, 0
      %p125 = por %p123, %p124
      %s127 = sadd.s32 %s126, 1
      %p130 = scmp.eq.s32.totalorder %s29, 2
      %p131 = scmp.ne.s32.totalorder %s126, %s128
      %p132 = scmp.eq.s32.totalorder %s29, 0
      %p133 = por %p131, %p132
      %p134 = scmp.ne.s32.totalorder %s126, %s128
      %p135 = scmp.eq.s32.totalorder %s34, 2
      %p136 = por %p134, %p135
      %p137 = scmp.ne.s32.totalorder %s128, %s129
      %p138 = scmp.eq.s32.totalorder %s34, 0
      %p139 = por %p137, %p138
      %p140 = scmp.ne.s32.totalorder %s128, %s129
      %p141 = scmp.eq.s32.totalorder %s35, 2
      %p142 = por %p140, %p141
      %p144 = scmp.ne.s32.totalorder %s129, %s143
      %p145 = scmp.eq.s32.totalorder %s35, 0
      %p146 = por %p144, %p145
      %s148 = sadd.s32 %s147, 1
      %p151 = scmp.eq.s32.totalorder %s29, 2
      %p152 = scmp.ne.s32.totalorder %s147, %s149
      %p153 = scmp.eq.s32.totalorder %s29, 0
      %p154 = por %p152, %p153
      %p155 = scmp.ne.s32.totalorder %s147, %s149
      %p156 = scmp.eq.s32.totalorder %s34, 2
      %p157 = por %p155, %p156
      %p158 = scmp.ne.s32.totalorder %s149, %s150
      %p159 = scmp.eq.s32.totalorder %s34, 0
      %p160 = por %p158, %p159
      %p161 = scmp.ne.s32.totalorder %s149, %s150
      %p162 = scmp.eq.s32.totalorder %s35, 2
      %p163 = por %p161, %p162
      %p165 = scmp.ne.s32.totalorder %s150, %s164
      %p166 = scmp.eq.s32.totalorder %s35, 0
      %p167 = por %p165, %p166
      %s169 = sadd.s32 %s168, 1
      %p172 = scmp.eq.s32.totalorder %s29, 2
      %p173 = scmp.ne.s32.totalorder %s168, %s170
      %p174 = scmp.eq.s32.totalorder %s29, 0
      %p175 = por %p173, %p174
      %p176 = scmp.ne.s32.totalorder %s168, %s170
      %p177 = scmp.eq.s32.totalorder %s34, 2
      %p178 = por %p176, %p177
      %p179 = scmp.ne.s32.totalorder %s170, %s171
      %p180 = scmp.eq.s32.totalorder %s34, 0
      %p181 = por %p179, %p180
      %p182 = scmp.ne.s32.totalorder %s170, %s171
      %p183 = scmp.eq.s32.totalorder %s35, 2
      %p184 = por %p182, %p183
      %p186 = scmp.ne.s32.totalorder %s171, %s185
      %p187 = scmp.eq.s32.totalorder %s35, 0
      %p188 = por %p186, %p187
      %s190 = sadd.s32 %s189, 1
      %p193 = scmp.eq.s32.totalorder %s29, 2
      %p194 = scmp.ne.s32.totalorder %s189, %s191
      %p195 = scmp.eq.s32.totalorder %s29, 0
      %p196 = por %p194, %p195
      %p197 = scmp.ne.s32.totalorder %s189, %s191
      %p198 = scmp.eq.s32.totalorder %s34, 2
      %p199 = por %p197, %p198
      %p200 = scmp.ne.s32.totalorder %s191, %s192
      %p201 = scmp.eq.s32.totalorder %s34, 0
      %p202 = por %p200, %p201
      %p203 = scmp.ne.s32.totalorder %s191, %s192
      %p204 = scmp.eq.s32.totalorder %s35, 2
      %p205 = por %p203, %p204
      %p207 = scmp.ne.s32.totalorder %s192, %s206
      %p208 = scmp.eq.s32.totalorder %s35, 0
      %p209 = por %p207, %p208
      %s211 = sadd.s32 %s210, 1
      %p214 = scmp.eq.s32.totalorder %s29, 2
      %p215 = scmp.ne.s32.totalorder %s210, %s212
      %p216 = scmp.eq.s32.totalorder %s29, 0
      %p217 = por %p215, %p216
      %p218 = scmp.ne.s32.totalorder %s210, %s212
      %p219 = scmp.eq.s32.totalorder %s34, 2
      %p220 = por %p218, %p219
      %p221 = scmp.ne.s32.totalorder %s212, %s213
      %p222 = scmp.eq.s32.totalorder %s34, 0
      %p223 = por %p221, %p222
      %p224 = scmp.ne.s32.totalorder %s212, %s213
      %p225 = scmp.eq.s32.totalorder %s35, 2
      %p226 = por %p224, %p225
      %p228 = scmp.ne.s32.totalorder %s213, %s227
      %p229 = scmp.eq.s32.totalorder %s35, 0
      %p230 = por %p228, %p229
      %s232 = sadd.s32 %s231, 1
      %p235 = scmp.eq.s32.totalorder %s29, 2
      %p236 = scmp.ne.s32.totalorder %s231, %s233
      %p237 = scmp.eq.s32.totalorder %s29, 0
      %p238 = por %p236, %p237
      %p239 = scmp.ne.s32.totalorder %s231, %s233
      %p240 = scmp.eq.s32.totalorder %s34, 2
      %p241 = por %p239, %p240
      %p242 = scmp.ne.s32.totalorder %s233, %s234
      %p243 = scmp.eq.s32.totalorder %s34, 0
      %p244 = por %p242, %p243
      %p245 = scmp.ne.s32.totalorder %s233, %s234
      %p246 = scmp.eq.s32.totalorder %s35, 2
      %p247 = por %p245, %p246
      %p249 = scmp.ne.s32.totalorder %s234, %s248
      %p250 = scmp.eq.s32.totalorder %s35, 0
      %p251 = por %p249, %p250
      %s253 = sadd.s32 %s252, 1
      %p256 = scmp.eq.s32.totalorder %s29, 2
      %p257 = scmp.ne.s32.totalorder %s252, %s254
      %p258 = scmp.eq.s32.totalorder %s29, 0
      %p259 = por %p257, %p258
      %p260 = scmp.ne.s32.totalorder %s252, %s254
      %p261 = scmp.eq.s32.totalorder %s34, 2
      %p262 = por %p260, %p261
      %p263 = scmp.ne.s32.totalorder %s254, %s255
      %p264 = scmp.eq.s32.totalorder %s34, 0
      %p265 = por %p263, %p264
      %p266 = scmp.ne.s32.totalorder %s254, %s255
      %p267 = scmp.eq.s32.totalorder %s35, 2
      %p268 = por %p266, %p267
      %p270 = scmp.ne.s32.totalorder %s255, %s269
      %p271 = scmp.eq.s32.totalorder %s35, 0
      %p272 = por %p270, %p271
      %s274 = sadd.s32 %s273, 1
      %p277 = scmp.eq.s32.totalorder %s29, 2
      %p278 = scmp.ne.s32.totalorder %s273, %s275
      %p279 = scmp.eq.s32.totalorder %s29, 0
      %p280 = por %p278, %p279
      %p281 = scmp.ne.s32.totalorder %s273, %s275
      %p282 = scmp.eq.s32.totalorder %s34, 2
      %p283 = por %p281, %p282
      %p284 = scmp.ne.s32.totalorder %s275, %s276
      %p285 = scmp.eq.s32.totalorder %s34, 0
      %p286 = por %p284, %p285
      %p287 = scmp.ne.s32.totalorder %s275, %s276
      %p288 = scmp.eq.s32.totalorder %s35, 2
      %p289 = por %p287, %p288
      %p291 = scmp.ne.s32.totalorder %s276, %s290
      %p292 = scmp.eq.s32.totalorder %s35, 0
      %p293 = por %p291, %p292
      %s295 = sadd.s32 %s294, 1
      %p298 = scmp.eq.s32.totalorder %s29, 2
      %p299 = scmp.ne.s32.totalorder %s294, %s296
      %p300 = scmp.eq.s32.totalorder %s29, 0
      %p301 = por %p299, %p300
      %p302 = scmp.ne.s32.totalorder %s294, %s296
      %p303 = scmp.eq.s32.totalorder %s34, 2
      %p304 = por %p302, %p303
      %p305 = scmp.ne.s32.totalorder %s296, %s297
      %p306 = scmp.eq.s32.totalorder %s34, 0
      %p307 = por %p305, %p306
      %p308 = scmp.ne.s32.totalorder %s296, %s297
      %p309 = scmp.eq.s32.totalorder %s35, 2
      %p310 = por %p308, %p309
      %p312 = scmp.ne.s32.totalorder %s297, %s311
      %p313 = scmp.eq.s32.totalorder %s35, 0
      %p314 = por %p312, %p313
      %s316 = sadd.s32 %s315, 1
      %p319 = scmp.eq.s32.totalorder %s29, 2
      %p320 = scmp.ne.s32.totalorder %s315, %s317
      %p321 = scmp.eq.s32.totalorder %s29, 0
      %p322 = por %p320, %p321
      %p323 = scmp.ne.s32.totalorder %s315, %s317
      %p324 = scmp.eq.s32.totalorder %s34, 2
      %p325 = por %p323, %p324
      %p326 = scmp.ne.s32.totalorder %s317, %s318
      %p327 = scmp.eq.s32.totalorder %s34, 0
      %p328 = por %p326, %p327
      %p329 = scmp.ne.s32.totalorder %s317, %s318
      %p330 = scmp.eq.s32.totalorder %s35, 2
      %p331 = por %p329, %p330
      %p333 = scmp.ne.s32.totalorder %s318, %s332
      %p334 = scmp.eq.s32.totalorder %s35, 0
      %p335 = por %p333, %p334
      %s337 = sadd.s32 %s336, 1
      %p340 = scmp.eq.s32.totalorder %s29, 2
      %p341 = scmp.ne.s32.totalorder %s336, %s338
      %p342 = scmp.eq.s32.totalorder %s29, 0
      %p343 = por %p341, %p342
      %p344 = scmp.ne.s32.totalorder %s336, %s338
      %p345 = scmp.eq.s32.totalorder %s34, 2
      %p346 = por %p344, %p345
      %p347 = scmp.ne.s32.totalorder %s338, %s339
      %p348 = scmp.eq.s32.totalorder %s34, 0
      %p349 = por %p347, %p348
      %p350 = scmp.ne.s32.totalorder %s338, %s339
      %p351 = scmp.eq.s32.totalorder %s35, 2
      %p352 = por %p350, %p351
      %p354 = scmp.ne.s32.totalorder %s339, %s353
      %p355 = scmp.eq.s32.totalorder %s35, 0
      %p356 = por %p354, %p355
      %s358 = sadd.s32 %s357, 1
      %p361 = scmp.eq.s32.totalorder %s29, 2
      %p362 = scmp.ne.s32.totalorder %s357, %s359
      %p363 = scmp.eq.s32.totalorder %s29, 0
      %p364 = por %p362, %p363
      %p365 = scmp.ne.s32.totalorder %s357, %s359
      %p366 = scmp.eq.s32.totalorder %s34, 2
      %p367 = por %p365, %p366
      %p368 = scmp.ne.s32.totalorder %s359, %s360
      %p369 = scmp.eq.s32.totalorder %s34, 0
      %p370 = por %p368, %p369
      %p371 = scmp.ne.s32.totalorder %s359, %s360
      %p372 = scmp.eq.s32.totalorder %s35, 2
      %p373 = por %p371, %p372
      %p375 = scmp.ne.s32.totalorder %s360, %s374
      %p376 = scmp.eq.s32.totalorder %s35, 0
      %p377 = por %p375, %p376
      %s379 = sadd.s32 %s378, 1
      %p382 = scmp.eq.s32.totalorder %s29, 2
      %p383 = scmp.ne.s32.totalorder %s378, %s380
      %p384 = scmp.eq.s32.totalorder %s29, 0
      %p385 = por %p383, %p384
      %p386 = scmp.ne.s32.totalorder %s378, %s380
      %p387 = scmp.eq.s32.totalorder %s34, 2
      %p388 = por %p386, %p387
      %p389 = scmp.ne.s32.totalorder %s380, %s381
      %p390 = scmp.eq.s32.totalorder %s34, 0
      %p391 = por %p389, %p390
      %p392 = scmp.ne.s32.totalorder %s380, %s381
      %p393 = scmp.eq.s32.totalorder %s35, 2
      %p394 = por %p392, %p393
      %p396 = scmp.ne.s32.totalorder %s381, %s395
      %p397 = scmp.eq.s32.totalorder %s35, 0
      %p398 = por %p396, %p397
      %s400 = sadd.s32 %s399, 1
      %p403 = scmp.eq.s32.totalorder %s29, 2
      %p404 = scmp.ne.s32.totalorder %s399, %s401
      %p405 = scmp.eq.s32.totalorder %s29, 0
      %p406 = por %p404, %p405
      %p407 = scmp.ne.s32.totalorder %s399, %s401
      %p408 = scmp.eq.s32.totalorder %s34, 2
      %p409 = por %p407, %p408
      %p410 = scmp.ne.s32.totalorder %s401, %s402
      %p411 = scmp.eq.s32.totalorder %s34, 0
      %p412 = por %p410, %p411
      %p413 = scmp.ne.s32.totalorder %s401, %s402
      %p414 = scmp.eq.s32.totalorder %s35, 2
      %p415 = por %p413, %p414
      %p417 = scmp.ne.s32.totalorder %s402, %s416
      %p418 = scmp.eq.s32.totalorder %s35, 0
      %p419 = por %p417, %p418
      %s421 = sadd.s32 %s420, 1
      %p424 = scmp.eq.s32.totalorder %s29, 2
      %p425 = scmp.ne.s32.totalorder %s420, %s422
      %p426 = scmp.eq.s32.totalorder %s29, 0
      %p427 = por %p425, %p426
      %p428 = scmp.ne.s32.totalorder %s420, %s422
      %p429 = scmp.eq.s32.totalorder %s34, 2
      %p430 = por %p428, %p429
      %p431 = scmp.ne.s32.totalorder %s422, %s423
      %p432 = scmp.eq.s32.totalorder %s34, 0
      %p433 = por %p431, %p432
      %p434 = scmp.ne.s32.totalorder %s422, %s423
      %p435 = scmp.eq.s32.totalorder %s35, 2
      %p436 = por %p434, %p435
      %p438 = scmp.ne.s32.totalorder %s423, %s437
      %p439 = scmp.eq.s32.totalorder %s35, 0
      %p440 = por %p438, %p439
      %s441 = ssub.s32 %s29, %s36
      %p442 = scmp.eq.s32.totalorder %s441, 0
      %s444 = sadd.s32 %s443, 1
      %s445 = scalar_select %p442, %s443, %s444
      %p448 = pneg %p442
      %p449 = scmp.eq.s32.totalorder %s29, 2
      %p450 = por %p448, %p449
      %p451 = scmp.ne.s32.totalorder %s443, %s446
      %p452 = scmp.eq.s32.totalorder %s29, 0
      %p453 = por %p451, %p452
      %p454 = scmp.ne.s32.totalorder %s443, %s446
      %p455 = scmp.eq.s32.totalorder %s34, 2
      %p456 = por %p454, %p455
      %p457 = scmp.ne.s32.totalorder %s446, %s447
      %p458 = scmp.eq.s32.totalorder %s34, 0
      %p459 = por %p457, %p458
      %p460 = scmp.ne.s32.totalorder %s446, %s447
      %p461 = scmp.eq.s32.totalorder %s35, 2
      %p462 = por %p460, %p461
      %p464 = scmp.ne.s32.totalorder %s447, %s463
      %p465 = scmp.eq.s32.totalorder %s35, 0
      %p466 = por %p464, %p465
      %p467 = scmp.le.s32.totalorder 1, %s29
      %p468 = scmp.lt.s32.totalorder %s29, 4
      %p469 = pnand %p467, %p468
      %p470 = pneg %p469
      // Predicated region
      $region9: #{deep_deep_surv_forward.1} parent=5 // pred_check
        _
      $region10: #{deep_deep_surv_forward.1} parent=5 // pred_check_branch
        %472 = sbr.rel (%p469) target = $region12
      $region11: #{deep_deep_surv_forward.1} parent=5 // pred_region
        %s473 = ssub.s32 %s29, 1
        // Predicated region
        $region13: #{deep_deep_surv_forward.1} parent=11 // pred_check
          %p474 = pneg %p76
        $region14: #{deep_deep_surv_forward.1} parent=11 // pred_check_branch
          %476 = sbr.rel (%p474) target = $region16
        $region15: #{deep_deep_surv_forward.1} parent=11 // pred_region
          _
        $region16: #{deep_deep_surv_forward.1} parent=11 // pred_fallthru
          _
        // Predicated region
        $region17: #{deep_deep_surv_forward.1} parent=11 // pred_check
          %p477 = pneg %p97
        $region18: #{deep_deep_surv_forward.1} parent=11 // pred_check_branch
          %479 = sbr.rel (%p477) target = $region20
        $region19: #{deep_deep_surv_forward.1} parent=11 // pred_region
          _
        $region20: #{deep_deep_surv_forward.1} parent=11 // pred_fallthru
          _
        // Predicated region
        $region21: #{deep_deep_surv_forward.1} parent=11 // pred_check
          %p480 = pneg %p118
        $region22: #{deep_deep_surv_forward.1} parent=11 // pred_check_branch
          %482 = sbr.rel (%p480) target = $region24
        $region23: #{deep_deep_surv_forward.1} parent=11 // pred_region
          _
        $region24: #{deep_deep_surv_forward.1} parent=11 // pred_fallthru
          _
        // Predicated region
        $region25: #{deep_deep_surv_forward.1} parent=11 // pred_check
          %p483 = pneg %p139
        $region26: #{deep_deep_surv_forward.1} parent=11 // pred_check_branch
          %485 = sbr.rel (%p483) target = $region28
        $region27: #{deep_deep_surv_forward.1} parent=11 // pred_region
          _
        $region28: #{deep_deep_surv_forward.1} parent=11 // pred_fallthru
          _
        // Predicated region
        $region29: #{deep_deep_surv_forward.1} parent=11 // pred_check
          %p486 = pneg %p160
        $region30: #{deep_deep_surv_forward.1} parent=11 // pred_check_branch
          %488 = sbr.rel (%p486) target = $region32
        $region31: #{deep_deep_surv_forward.1} parent=11 // pred_region
          _
        $region32: #{deep_deep_surv_forward.1} parent=11 // pred_fallthru
          _
        // Predicated region
        $region33: #{deep_deep_surv_forward.1} parent=11 // pred_check
          %p489 = pneg %p181
        $region34: #{deep_deep_surv_forward.1} parent=11 // pred_check_branch
          %491 = sbr.rel (%p489) target = $region36
        $region35: #{deep_deep_surv_forward.1} parent=11 // pred_region
          _
        $region36: #{deep_deep_surv_forward.1} parent=11 // pred_fallthru
          _
        // Predicated region
        $region37: #{deep_deep_surv_forward.1} parent=11 // pred_check
          %p492 = pneg %p202
        $region38: #{deep_deep_surv_forward.1} parent=11 // pred_check_branch
          %494 = sbr.rel (%p492) target = $region40
        $region39: #{deep_deep_surv_forward.1} parent=11 // pred_region
          %s496 = ssub.s32 7296, 7296
          %497 = vsyncadd [#allocation4], %s496
          %s498 = sshll.u32 [#allocation3], 4
          %s499 = int_to_ptr.vmem [resolvable:$true] %s498
          %504 = dma.hbm_to_vmem [thread:$0]  %s7, 7296, %s499, [#allocation4], 192, 192, 12
        $region40: #{deep_deep_surv_forward.1} parent=11 // pred_fallthru
          _
        // Predicated region
        $region41: #{deep_deep_surv_forward.1} parent=11 // pred_check
          %p505 = pneg %p223
        $region42: #{deep_deep_surv_forward.1} parent=11 // pred_check_branch
          %507 = sbr.rel (%p505) target = $region44
        $region43: #{deep_deep_surv_forward.1} parent=11 // pred_region
          _
        $region44: #{deep_deep_surv_forward.1} parent=11 // pred_fallthru
          _
        // Predicated region
        $region45: #{deep_deep_surv_forward.1} parent=11 // pred_check
          %p508 = pneg %p244
        $region46: #{deep_deep_surv_forward.1} parent=11 // pred_check_branch
          %510 = sbr.rel (%p508) target = $region48
        $region47: #{deep_deep_surv_forward.1} parent=11 // pred_region
          %s512 = ssub.s32 7296, 7296
          %513 = vsyncadd [#allocation6], %s512
          %s514 = sshll.u32 [#allocation5], 4
          %s515 = int_to_ptr.vmem [resolvable:$true] %s514
          %520 = dma.hbm_to_vmem [thread:$0]  %s9, 7296, %s515, [#allocation6], 192, 192, 12
        $region48: #{deep_deep_surv_forward.1} parent=11 // pred_fallthru
          _
        // Predicated region
        $region49: #{deep_deep_surv_forward.1} parent=11 // pred_check
          %p521 = pneg %p265
        $region50: #{deep_deep_surv_forward.1} parent=11 // pred_check_branch
          %523 = sbr.rel (%p521) target = $region52
        $region51: #{deep_deep_surv_forward.1} parent=11 // pred_region
          _
        $region52: #{deep_deep_surv_forward.1} parent=11 // pred_fallthru
          _
        // Predicated region
        $region53: #{deep_deep_surv_forward.1} parent=11 // pred_check
          %p524 = pneg %p286
        $region54: #{deep_deep_surv_forward.1} parent=11 // pred_check_branch
          %526 = sbr.rel (%p524) target = $region56
        $region55: #{deep_deep_surv_forward.1} parent=11 // pred_region
          %s528 = ssub.s32 7296, 7296
          %529 = vsyncadd [#allocation6], %s528
          %s530 = sshll.u32 [#allocation7], 4
          %s531 = int_to_ptr.vmem [resolvable:$true] %s530
          %536 = dma.hbm_to_vmem [thread:$0]  %s11, 7296, %s531, [#allocation6], 192, 192, 12
        $region56: #{deep_deep_surv_forward.1} parent=11 // pred_fallthru
          _
        // Predicated region
        $region57: #{deep_deep_surv_forward.1} parent=11 // pred_check
          %p537 = pneg %p307
        $region58: #{deep_deep_surv_forward.1} parent=11 // pred_check_branch
          %539 = sbr.rel (%p537) target = $region60
        $region59: #{deep_deep_surv_forward.1} parent=11 // pred_region
          _
        $region60: #{deep_deep_surv_forward.1} parent=11 // pred_fallthru
          _
        // Predicated region
        $region61: #{deep_deep_surv_forward.1} parent=11 // pred_check
          %p540 = pneg %p328
        $region62: #{deep_deep_surv_forward.1} parent=11 // pred_check_branch
          %542 = sbr.rel (%p540) target = $region64
        $region63: #{deep_deep_surv_forward.1} parent=11 // pred_region
          _
        $region64: #{deep_deep_surv_forward.1} parent=11 // pred_fallthru
          _
        // Predicated region
        $region65: #{deep_deep_surv_forward.1} parent=11 // pred_check
          %p543 = pneg %p349
        $region66: #{deep_deep_surv_forward.1} parent=11 // pred_check_branch
          %545 = sbr.rel (%p543) target = $region68
        $region67: #{deep_deep_surv_forward.1} parent=11 // pred_region
          _
        $region68: #{deep_deep_surv_forward.1} parent=11 // pred_fallthru
          _
        // Predicated region
        $region69: #{deep_deep_surv_forward.1} parent=11 // pred_check
          %p546 = pneg %p370
        $region70: #{deep_deep_surv_forward.1} parent=11 // pred_check_branch
          %548 = sbr.rel (%p546) target = $region72
        $region71: #{deep_deep_surv_forward.1} parent=11 // pred_region
          _
        $region72: #{deep_deep_surv_forward.1} parent=11 // pred_fallthru
          _
        // Predicated region
        $region73: #{deep_deep_surv_forward.1} parent=11 // pred_check
          %p549 = pneg %p391
        $region74: #{deep_deep_surv_forward.1} parent=11 // pred_check_branch
          %551 = sbr.rel (%p549) target = $region76
        $region75: #{deep_deep_surv_forward.1} parent=11 // pred_region
          _
        $region76: #{deep_deep_surv_forward.1} parent=11 // pred_fallthru
          _
        // Predicated region
        $region77: #{deep_deep_surv_forward.1} parent=11 // pred_check
          %p552 = pneg %p412
        $region78: #{deep_deep_surv_forward.1} parent=11 // pred_check_branch
          %554 = sbr.rel (%p552) target = $region80
        $region79: #{deep_deep_surv_forward.1} parent=11 // pred_region
          _
        $region80: #{deep_deep_surv_forward.1} parent=11 // pred_fallthru
          _
        // Predicated region
        $region81: #{deep_deep_surv_forward.1} parent=11 // pred_check
          %p555 = pneg %p433
        $region82: #{deep_deep_surv_forward.1} parent=11 // pred_check_branch
          %557 = sbr.rel (%p555) target = $region84
        $region83: #{deep_deep_surv_forward.1} parent=11 // pred_region
          _
        $region84: #{deep_deep_surv_forward.1} parent=11 // pred_fallthru
          _
      $region12: #{deep_deep_surv_forward.1} parent=5 // pred_fallthru
        _
      %p558 = scmp.lt.s32.totalorder %s29, 3
      // Predicated region
      $region85: #{deep_deep_surv_forward.1} parent=5 // pred_check
        %p559 = pneg %p558
      $region86: #{deep_deep_surv_forward.1} parent=5 // pred_check_branch
        %561 = sbr.rel (%p559) target = $region88
      $region87: #{deep_deep_surv_forward.1} parent=5 // pred_region
        // Predicated region
        $region89: #{deep_deep_surv_forward.1} parent=87 // pred_check
          %p562 = pneg %p49
        $region90: #{deep_deep_surv_forward.1} parent=87 // pred_check_branch
          %564 = sbr.rel (%p562) target = $region92
        $region91: #{deep_deep_surv_forward.1} parent=87 // pred_region
          %p565 = scmp.lt.s32.totalorder %s29, 2
          %s566 = scalar_select %p565, %s29, 2
          %s567 = smul.addr %s566, 3
          %s568 = smul.addr %s567, 8
          %s569 = scalar_lea.vmem %s0, %s568
        $region92: #{deep_deep_surv_forward.1} parent=87 // pred_fallthru
          _
      $region88: #{deep_deep_surv_forward.1} parent=5 // pred_fallthru
        _
      %p570 = scmp.le.s32.totalorder 1, %s29
      %p571 = scmp.lt.s32.totalorder %s29, 4
      %p572 = pnand %p570, %p571
      %p573 = pneg %p572
      // Predicated region
      $region93: #{deep_deep_surv_forward.1} parent=5 // pred_check
        _
      $region94: #{deep_deep_surv_forward.1} parent=5 // pred_check_branch
        %575 = sbr.rel (%p572) target = $region96
      $region95: #{deep_deep_surv_forward.1} parent=5 // pred_region
        %s576 = ssub.s32 %s29, 1
        // Predicated region
        $region97: #{deep_deep_surv_forward.1} parent=95 // pred_check
          %p577 = pneg %p202
        $region98: #{deep_deep_surv_forward.1} parent=95 // pred_check_branch
          %579 = sbr.rel (%p577) target = $region100
        $region99: #{deep_deep_surv_forward.1} parent=95 // pred_region
          %580 = dma.done [#allocation4], 7296
        $region100: #{deep_deep_surv_forward.1} parent=95 // pred_fallthru
          _
        // Predicated region
        $region101: #{deep_deep_surv_forward.1} parent=95 // pred_check
          %p581 = pneg %p244
        $region102: #{deep_deep_surv_forward.1} parent=95 // pred_check_branch
          %583 = sbr.rel (%p581) target = $region104
        $region103: #{deep_deep_surv_forward.1} parent=95 // pred_region
          %584 = dma.done [#allocation6], 7296
        $region104: #{deep_deep_surv_forward.1} parent=95 // pred_fallthru
          _
        // Predicated region
        $region105: #{deep_deep_surv_forward.1} parent=95 // pred_check
          %p585 = pneg %p286
        $region106: #{deep_deep_surv_forward.1} parent=95 // pred_check_branch
          %587 = sbr.rel (%p585) target = $region108
        $region107: #{deep_deep_surv_forward.1} parent=95 // pred_region
          %588 = dma.done [#allocation6], 7296
        $region108: #{deep_deep_surv_forward.1} parent=95 // pred_fallthru
          _
        %p589 = scmp.lt.s32.totalorder %s34, 2
        %s590 = scalar_select %p589, %s34, 2
        %s591 = smul.addr %s590, 3
        %s592 = smul.addr %s591, 8
        %s593 = scalar_lea.vmem %s0, %s592
        %p594 = pneg %p55
        %p595 = pneg %p52
        %p596 = pneg %p76
        %p597 = pneg %p73
        %p598 = pneg %p97
        %p599 = pneg %p94
        %p600 = pneg %p118
        %p601 = pneg %p115
        %p602 = pneg %p139
        %p603 = pneg %p136
        %p604 = pneg %p160
        %p605 = pneg %p157
        %p606 = pneg %p181
        %p607 = pneg %p178
        %p608 = pneg %p202
        %p609 = pneg %p199
        %p610 = pneg %p223
        %p611 = pneg %p220
        %p612 = pneg %p244
        %p613 = pneg %p241
        %p614 = pneg %p265
        %p615 = pneg %p262
        %p616 = pneg %p286
        %p617 = pneg %p283
        %p618 = pneg %p307
        %p619 = pneg %p304
        %p620 = pneg %p328
        %p621 = pneg %p325
        %p622 = pneg %p349
        %p623 = pneg %p346
        %p624 = pneg %p370
        %p625 = pneg %p367
        %p626 = pneg %p391
        %p627 = pneg %p388
        %p628 = pneg %p412
        %p629 = pneg %p409
        %p630 = pneg %p433
        %p631 = pneg %p430
        %p632 = pneg %p459
        %p633 = pneg %p456
        %p634 = scmp.lt.s32.totalorder %s34, 2
        %s635 = scalar_select %p634, %s34, 2
        %s636 = smul.addr %s635, 8
        %s637 = scalar_lea.vmem %s19, %s636
        %p638 = scmp.lt.s32.totalorder %s34, 2
        %s639 = scalar_select %p638, %s34, 2
        %s640 = smul.addr %s639, 3
        %s641 = smul.addr %s640, 8
        %s642 = scalar_lea.vmem %s0, %s641
        %p643 = scmp.lt.s32.totalorder %s34, 2
        %s644 = scalar_select %p643, %s34, 2
        %s645 = smul.addr %s644, 8
        %s646 = scalar_lea.vmem %s19, %s645
        %v648 = vld [vmem:[%s642] sm:$0xff]
        %v649 = vld [vmem:[%s642 + $0x8] sm:$0xff]
        %v650 = vld [vmem:[%s642 + $0x10] sm:$0xff]
        %v651 = vld [vmem:[%s1] sm:$0xff]
        %v652 = vld [vmem:[%s1 + $0x8] sm:$0xf]
        %v653 = vld [vmem:[%s1 + $0xc] sm:$0xff]
        %v654 = vld [vmem:[%s1 + $0x14] sm:$0xf]
        %v655 = vld [vmem:[%s1 + $0x18] sm:$0xff]
        %v656 = vld [vmem:[%s1 + $0x20] sm:$0xf]
        %v657 = vld [vmem:[%s1 + $0x24] sm:$0xff]
        %v658 = vld [vmem:[%s1 + $0x2c] sm:$0xf]
        %v659 = vld [vmem:[%s1 + $0x30] sm:$0xff]
        %v660 = vld [vmem:[%s1 + $0x38] sm:$0xf]
        %v661 = vld [vmem:[%s1 + $0x3c] sm:$0xff]
        %v662 = vld [vmem:[%s1 + $0x44] sm:$0xf]
        %v663 = vld [vmem:[%s1 + $0x48] sm:$0xff]
        %v664 = vld [vmem:[%s1 + $0x50] sm:$0xf]
        %v665 = vld [vmem:[%s1 + $0x54] sm:$0xff]
        %v666 = vld [vmem:[%s1 + $0x5c] sm:$0xf]
        %v667 = vld [vmem:[%s1 + $0x60] sm:$0xff]
        %v668 = vld [vmem:[%s1 + $0x68] sm:$0xf]
        %v669 = vld [vmem:[%s1 + $0x6c] sm:$0xff]
        %v670 = vld [vmem:[%s1 + $0x74] sm:$0xf]
        %v671 = vld [vmem:[%s1 + $0x78] sm:$0xff]
        %v672 = vld [vmem:[%s1 + $0x80] sm:$0xf]
        %v673 = vld [vmem:[%s1 + $0x84] sm:$0xff]
        %v674 = vld [vmem:[%s1 + $0x8c] sm:$0xf]
        %v675 = vld [vmem:[%s1 + $0x90] sm:$0xff]
        %v676 = vld [vmem:[%s1 + $0x98] sm:$0xf]
        %v677 = vld [vmem:[%s1 + $0x9c] sm:$0xff]
        %v678 = vld [vmem:[%s1 + $0xa4] sm:$0xf]
        %v679 = vld [vmem:[%s1 + $0xa8] sm:$0xff]
        %v680 = vld [vmem:[%s1 + $0xb0] sm:$0xf]
        %v681 = vld [vmem:[%s1 + $0xb4] sm:$0xff]
        %v682 = vld [vmem:[%s1 + $0xbc] sm:$0xf]
        %v683 = vld [vmem:[%s1 + $0xc0] sm:$0xff]
        %v684 = vld [vmem:[%s1 + $0xc8] sm:$0xf]
        %v685 = vld [vmem:[%s1 + $0xcc] sm:$0xff]
        %v686 = vld [vmem:[%s1 + $0xd4] sm:$0xf]
        %v687 = vld [vmem:[%s1 + $0xd8] sm:$0xff]
        %v688 = vld [vmem:[%s1 + $0xe0] sm:$0xf]
        %v689 = vld [vmem:[%s1 + $0xe4] sm:$0xff]
        %v690 = vld [vmem:[%s1 + $0xec] sm:$0xf]
        %v691 = vld [vmem:[%s1 + $0xf0] sm:$0xff]
        %v692 = vld [vmem:[%s1 + $0xf8] sm:$0xf]
        %v693 = vld [vmem:[%s1 + $0xfc] sm:$0xff]
        %v694 = vld [vmem:[%s1 + $0x104] sm:$0xf]
        %v695 = vld [vmem:[%s1 + $0x108] sm:$0xff]
        %v696 = vld [vmem:[%s1 + $0x110] sm:$0xf]
        %v697 = vld [vmem:[%s1 + $0x114] sm:$0xff]
        %v698 = vld [vmem:[%s1 + $0x11c] sm:$0xf]
        %v699 = vld [vmem:[%s1 + $0x120] sm:$0xff]
        %v700 = vld [vmem:[%s1 + $0x128] sm:$0xf]
        %v701 = vld [vmem:[%s1 + $0x12c] sm:$0xff]
        %v702 = vld [vmem:[%s1 + $0x134] sm:$0xf]
        %v703 = vld [vmem:[%s1 + $0x138] sm:$0xff]
        %v704 = vld [vmem:[%s1 + $0x140] sm:$0xf]
        %v705 = vld [vmem:[%s1 + $0x144] sm:$0xff]
        %v706 = vld [vmem:[%s1 + $0x14c] sm:$0xf]
        %v707 = vld [vmem:[%s1 + $0x150] sm:$0xff]
        %v708 = vld [vmem:[%s1 + $0x158] sm:$0xf]
        %v709 = vld [vmem:[%s1 + $0x15c] sm:$0xff]
        %v710 = vld [vmem:[%s1 + $0x164] sm:$0xf]
        %v711 = vld [vmem:[%s1 + $0x168] sm:$0xff]
        %v712 = vld [vmem:[%s1 + $0x170] sm:$0xf]
        %v713 = vld [vmem:[%s1 + $0x174] sm:$0xff]
        %v714 = vld [vmem:[%s1 + $0x17c] sm:$0xf]
        %v715 = vld [vmem:[%s1 + $0x180] sm:$0xff]
        %v716 = vld [vmem:[%s1 + $0x188] sm:$0xf]
        %v717 = vld [vmem:[%s1 + $0x18c] sm:$0xff]
        %v718 = vld [vmem:[%s1 + $0x194] sm:$0xf]
        %v719 = vld [vmem:[%s1 + $0x198] sm:$0xff]
        %v720 = vld [vmem:[%s1 + $0x1a0] sm:$0xf]
        %v721 = vld [vmem:[%s1 + $0x1a4] sm:$0xff]
        %v722 = vld [vmem:[%s1 + $0x1ac] sm:$0xf]
        %v723 = vld [vmem:[%s1 + $0x1b0] sm:$0xff]
        %v724 = vld [vmem:[%s1 + $0x1b8] sm:$0xf]
        %v725 = vld [vmem:[%s1 + $0x1bc] sm:$0xff]
        %v726 = vld [vmem:[%s1 + $0x1c4] sm:$0xf]
        %v727 = vld [vmem:[%s1 + $0x1c8] sm:$0xff]
        %v728 = vld [vmem:[%s1 + $0x1d0] sm:$0xf]
        %v729 = vld [vmem:[%s1 + $0x1d4] sm:$0xff]
        %v730 = vld [vmem:[%s1 + $0x1dc] sm:$0xf]
        %v731 = vld [vmem:[%s1 + $0x1e0] sm:$0xff]
        %v732 = vld [vmem:[%s1 + $0x1e8] sm:$0xf]
        %v733 = vld [vmem:[%s1 + $0x1ec] sm:$0xff]
        %v734 = vld [vmem:[%s1 + $0x1f4] sm:$0xf]
        %v735 = vld [vmem:[%s1 + $0x1f8] sm:$0xff]
        %v736 = vld [vmem:[%s1 + $0x200] sm:$0xf]
        %v737 = vld [vmem:[%s2] sm:$0x7]
        %v738 = vpack.c.bf16 %v648, %v648
        %v739 = vpack.c.bf16 %v649, %v649
        %v740 = vpack.c.bf16 %v650, %v650
        %v742 = vlaneseq
        %v743 = vshrl.u32 %v742, 7
        %v744 = vsub.s32 0, %v743
        %v745 = vrot.slane %v737, %v744
        %v746 = vlaneseq
        %v747 = vshrl.u32 %v746, 7
        %v748 = vsub.s32 1, %v747
        %v749 = vrot.slane %v737, %v748
        %v750 = vlaneseq
        %v751 = vshrl.u32 %v750, 7
        %v752 = vsub.s32 2, %v751
        %v753 = vrot.slane %v737, %v752
        %v843 = vunpack.c.l.b16 %v651
        %v844 = vunpack.c.h.b16 %v651
        %v845 = vunpack.c.l.b16 %v652
        %v846 = vunpack.c.l.b16 %v653
        %v847 = vunpack.c.h.b16 %v653
        %v848 = vunpack.c.l.b16 %v654
        %v849 = vunpack.c.l.b16 %v655
        %v850 = vunpack.c.h.b16 %v655
        %v851 = vunpack.c.l.b16 %v656
        %v852 = vunpack.c.l.b16 %v657
        %v853 = vunpack.c.h.b16 %v657
        %v854 = vunpack.c.l.b16 %v658
        %v855 = vunpack.c.l.b16 %v659
        %v856 = vunpack.c.h.b16 %v659
        %v857 = vunpack.c.l.b16 %v660
        %v858 = vunpack.c.l.b16 %v661
        %v859 = vunpack.c.h.b16 %v661
        %v860 = vunpack.c.l.b16 %v662
        %v861 = vunpack.c.l.b16 %v663
        %v862 = vunpack.c.h.b16 %v663
        %v863 = vunpack.c.l.b16 %v664
        %v864 = vunpack.c.l.b16 %v665
        %v865 = vunpack.c.h.b16 %v665
        %v866 = vunpack.c.l.b16 %v666
        %v867 = vunpack.c.l.b16 %v667
        %v868 = vunpack.c.h.b16 %v667
        %v869 = vunpack.c.l.b16 %v668
        %v870 = vunpack.c.l.b16 %v669
        %v871 = vunpack.c.h.b16 %v669
        %v872 = vunpack.c.l.b16 %v670
        %v873 = vunpack.c.l.b16 %v671
        %v874 = vunpack.c.h.b16 %v671
        %v875 = vunpack.c.l.b16 %v672
        %v876 = vunpack.c.l.b16 %v673
        %v877 = vunpack.c.h.b16 %v673
        %v878 = vunpack.c.l.b16 %v674
        %v879 = vunpack.c.l.b16 %v675
        %v880 = vunpack.c.h.b16 %v675
        %v881 = vunpack.c.l.b16 %v676
        %v882 = vunpack.c.l.b16 %v677
        %v883 = vunpack.c.h.b16 %v677
        %v884 = vunpack.c.l.b16 %v678
        %v885 = vunpack.c.l.b16 %v679
        %v886 = vunpack.c.h.b16 %v679
        %v887 = vunpack.c.l.b16 %v680
        %v888 = vunpack.c.l.b16 %v681
        %v889 = vunpack.c.h.b16 %v681
        %v890 = vunpack.c.l.b16 %v682
        %v891 = vunpack.c.l.b16 %v683
        %v892 = vunpack.c.h.b16 %v683
        %v893 = vunpack.c.l.b16 %v684
        %v894 = vunpack.c.l.b16 %v685
        %v895 = vunpack.c.h.b16 %v685
        %v896 = vunpack.c.l.b16 %v686
        %v897 = vunpack.c.l.b16 %v687
        %v898 = vunpack.c.h.b16 %v687
        %v899 = vunpack.c.l.b16 %v688
        %v900 = vunpack.c.l.b16 %v689
        %v901 = vunpack.c.h.b16 %v689
        %v902 = vunpack.c.l.b16 %v690
        %v903 = vunpack.c.l.b16 %v691
        %v904 = vunpack.c.h.b16 %v691
        %v905 = vunpack.c.l.b16 %v692
        %v906 = vunpack.c.l.b16 %v693
        %v907 = vunpack.c.h.b16 %v693
        %v908 = vunpack.c.l.b16 %v694
        %v909 = vunpack.c.l.b16 %v695
        %v910 = vunpack.c.h.b16 %v695
        %v911 = vunpack.c.l.b16 %v696
        %v912 = vunpack.c.l.b16 %v697
        %v913 = vunpack.c.h.b16 %v697
        %v914 = vunpack.c.l.b16 %v698
        %v915 = vunpack.c.l.b16 %v699
        %v916 = vunpack.c.h.b16 %v699
        %v917 = vunpack.c.l.b16 %v700
        %v918 = vunpack.c.l.b16 %v701
        %v919 = vunpack.c.h.b16 %v701
        %v920 = vunpack.c.l.b16 %v702
        %v921 = vunpack.c.l.b16 %v703
        %v922 = vunpack.c.h.b16 %v703
        %v923 = vunpack.c.l.b16 %v704
        %v924 = vunpack.c.l.b16 %v705
        %v925 = vunpack.c.h.b16 %v705
        %v926 = vunpack.c.l.b16 %v706
        %v927 = vunpack.c.l.b16 %v707
        %v928 = vunpack.c.h.b16 %v707
        %v929 = vunpack.c.l.b16 %v708
        %v930 = vunpack.c.l.b16 %v709
        %v931 = vunpack.c.h.b16 %v709
        %v932 = vunpack.c.l.b16 %v710
        %v933 = vunpack.c.l.b16 %v711
        %v934 = vunpack.c.h.b16 %v711
        %v935 = vunpack.c.l.b16 %v712
        %v936 = vunpack.c.l.b16 %v713
        %v937 = vunpack.c.h.b16 %v713
        %v938 = vunpack.c.l.b16 %v714
        %v939 = vunpack.c.l.b16 %v715
        %v940 = vunpack.c.h.b16 %v715
        %v941 = vunpack.c.l.b16 %v716
        %v942 = vunpack.c.l.b16 %v717
        %v943 = vunpack.c.h.b16 %v717
        %v944 = vunpack.c.l.b16 %v718
        %v945 = vunpack.c.l.b16 %v719
        %v946 = vunpack.c.h.b16 %v719
        %v947 = vunpack.c.l.b16 %v720
        %v948 = vunpack.c.l.b16 %v721
        %v949 = vunpack.c.h.b16 %v721
        %v950 = vunpack.c.l.b16 %v722
        %v951 = vunpack.c.l.b16 %v723
        %v952 = vunpack.c.h.b16 %v723
        %v953 = vunpack.c.l.b16 %v724
        %v954 = vunpack.c.l.b16 %v725
        %v955 = vunpack.c.h.b16 %v725
        %v956 = vunpack.c.l.b16 %v726
        %v957 = vunpack.c.l.b16 %v727
        %v958 = vunpack.c.h.b16 %v727
        %v959 = vunpack.c.l.b16 %v728
        %v960 = vunpack.c.l.b16 %v729
        %v961 = vunpack.c.h.b16 %v729
        %v962 = vunpack.c.l.b16 %v730
        %v963 = vunpack.c.l.b16 %v731
        %v964 = vunpack.c.h.b16 %v731
        %v965 = vunpack.c.l.b16 %v732
        %v966 = vunpack.c.l.b16 %v733
        %v967 = vunpack.c.h.b16 %v733
        %v968 = vunpack.c.l.b16 %v734
        %v969 = vunpack.c.l.b16 %v735
        %v970 = vunpack.c.h.b16 %v735
        %v971 = vunpack.c.l.b16 %v736
        %v972 = vpack.c.b16 %v846, %v843
        %v973 = vpack.c.b16 %v847, %v844
        %v974 = vpack.c.b16 %v848, %v845
        %v975 = vpack.c.b16 %v852, %v849
        %v976 = vpack.c.b16 %v853, %v850
        %v977 = vpack.c.b16 %v854, %v851
        %v978 = vpack.c.b16 %v858, %v855
        %v979 = vpack.c.b16 %v859, %v856
        %v980 = vpack.c.b16 %v860, %v857
        %v981 = vpack.c.b16 %v864, %v861
        %v982 = vpack.c.b16 %v865, %v862
        %v983 = vpack.c.b16 %v866, %v863
        %v984 = vpack.c.b16 %v870, %v867
        %v985 = vpack.c.b16 %v871, %v868
        %v986 = vpack.c.b16 %v872, %v869
        %v987 = vpack.c.b16 %v876, %v873
        %v988 = vpack.c.b16 %v877, %v874
        %v989 = vpack.c.b16 %v878, %v875
        %v990 = vpack.c.b16 %v882, %v879
        %v991 = vpack.c.b16 %v883, %v880
        %v992 = vpack.c.b16 %v884, %v881
        %v993 = vpack.c.b16 %v888, %v885
        %v994 = vpack.c.b16 %v889, %v886
        %v995 = vpack.c.b16 %v890, %v887
        %v996 = vpack.c.b16 %v894, %v891
        %v997 = vpack.c.b16 %v895, %v892
        %v998 = vpack.c.b16 %v896, %v893
        %v999 = vpack.c.b16 %v900, %v897
        %v1000 = vpack.c.b16 %v901, %v898
        %v1001 = vpack.c.b16 %v902, %v899
        %v1002 = vpack.c.b16 %v906, %v903
        %v1003 = vpack.c.b16 %v907, %v904
        %v1004 = vpack.c.b16 %v908, %v905
        %v1005 = vpack.c.b16 %v912, %v909
        %v1006 = vpack.c.b16 %v913, %v910
        %v1007 = vpack.c.b16 %v914, %v911
        %v1008 = vpack.c.b16 %v918, %v915
        %v1009 = vpack.c.b16 %v919, %v916
        %v1010 = vpack.c.b16 %v920, %v917
        %v1011 = vpack.c.b16 %v924, %v921
        %v1012 = vpack.c.b16 %v925, %v922
        %v1013 = vpack.c.b16 %v926, %v923
        %v1014 = vpack.c.b16 %v930, %v927
        %v1015 = vpack.c.b16 %v931, %v928
        %v1016 = vpack.c.b16 %v932, %v929
        %v1017 = vpack.c.b16 %v936, %v933
        %v1018 = vpack.c.b16 %v937, %v934
        %v1019 = vpack.c.b16 %v938, %v935
        %v1020 = vpack.c.b16 %v942, %v939
        %v1021 = vpack.c.b16 %v943, %v940
        %v1022 = vpack.c.b16 %v944, %v941
        %v1023 = vpack.c.b16 %v948, %v945
        %v1024 = vpack.c.b16 %v949, %v946
        %v1025 = vpack.c.b16 %v950, %v947
        %v1026 = vpack.c.b16 %v954, %v951
        %v1027 = vpack.c.b16 %v955, %v952
        %v1028 = vpack.c.b16 %v956, %v953
        %v1029 = vpack.c.b16 %v960, %v957
        %v1030 = vpack.c.b16 %v961, %v958
        %v1031 = vpack.c.b16 %v962, %v959
        %v1032 = vpack.c.b16 %v966, %v963
        %v1033 = vpack.c.b16 %v967, %v964
        %v1034 = vpack.c.b16 %v968, %v965
        %v1035 = vpack.c.b16 %v969, %v969
        %v1036 = vpack.c.b16 %v970, %v970
        %v1037 = vpack.c.b16 %v971, %v971
        %vm1101 = vcmask 719872
        %v1103 = vsel %vm1101, %v740, 0
        %vm1105 = vcmask 1043456
        %v1107 = vsel %vm1105, %v1035, 0
        %v1110 = vsel %vm1105, %v1036, 0
        %v1113 = vsel %vm1105, %v1037, 0
        %1115 = vmatprep.subr.bf16.mxu0 %v994
        %1116 = vmatpush1.bf16.msra.mxu0 %v993
        %1117 = vmatprep.subr.bf16.mxu0 %v991
        %1118 = vmatpush1.bf16.msra.mxu0 %v990
        %1119 = vmatprep.subr.bf16.mxu0 %v988
        %1120 = vmatpush1.bf16.msra.mxu0 %v987
        %1121 = vmatprep.subr.bf16.mxu0 %v985
        %1122 = vmatpush1.bf16.msra.mxu0 %v984
        %1123 = vmatprep.subr.bf16.mxu0 %v982
        %1124 = vmatpush1.bf16.msra.mxu0 %v981
        %1125 = vmatprep.subr.bf16.mxu0 %v979
        %1126 = vmatpush1.bf16.msra.mxu0 %v978
        %1127 = vmatprep.subr.bf16.mxu0 %v976
        %1128 = vmatpush1.bf16.msra.mxu0 %v975
        %1129 = vmatprep.subr.bf16.mxu0 %v973
        %1130 = vmatpush1.bf16.msra.mxu0 %v972
        %1131 = vmatprep.subr.bf16.mxu0 %v1018
        %1132 = vmatpush2.bf16.msra.mxu0 %v1017
        %1133 = vmatprep.subr.bf16.mxu0 %v1015
        %1134 = vmatpush2.bf16.msra.mxu0 %v1014
        %1135 = vmatprep.subr.bf16.mxu0 %v1012
        %1136 = vmatpush2.bf16.msra.mxu0 %v1011
        %1137 = vmatprep.subr.bf16.mxu0 %v1009
        %1138 = vmatpush2.bf16.msra.mxu0 %v1008
        %1139 = vmatprep.subr.bf16.mxu0 %v1006
        %1140 = vmatpush2.bf16.msra.mxu0 %v1005
        %1141 = vmatprep.subr.bf16.mxu0 %v1003
        %1142 = vmatpush2.bf16.msra.mxu0 %v1002
        %1143 = vmatprep.subr.bf16.mxu0 %v1000
        %1144 = vmatpush2.bf16.msra.mxu0 %v999
        %1145 = vmatprep.subr.bf16.mxu0 %v997
        %1146 = vmatpush2.bf16.msra.mxu0 %v996
        %1147 = vmatprep.mubr.bf16.mxu0 %v739
        %1148 = vmatmul.mubr.bf16.gmra.mxu0 %v738
        %v1149 = vpop.f32.mrf.mxu0
        %v1150 = vadd.f32 %v745, %v1149
        %v1151 = vpop.f32.mrf.mxu0
        %v1152 = vadd.f32 %v749, %v1151
        %v1153 = vpop.f32.mrf.mxu0
        %v1154 = vpop.f32.mrf.mxu0
        %1155 = vdwg.mxu0
        %1156 = vmatprep.subr.bf16.mxu0 0
        %1157 = vmatpush1.bf16.msra.mxu0 0
        %1158 = vmatprep.subr.bf16.mxu0 0
        %1159 = vmatpush1.bf16.msra.mxu0 0
        %1160 = vmatprep.subr.bf16.mxu0 %v1110
        %1161 = vmatpush1.bf16.msra.mxu0 %v1107
        %1162 = vmatprep.subr.bf16.mxu0 %v1033
        %1163 = vmatpush1.bf16.msra.mxu0 %v1032
        %1164 = vmatprep.subr.bf16.mxu0 %v1030
        %1165 = vmatpush1.bf16.msra.mxu0 %v1029
        %1166 = vmatprep.subr.bf16.mxu0 %v1027
        %1167 = vmatpush1.bf16.msra.mxu0 %v1026
        %1168 = vmatprep.subr.bf16.mxu0 %v1024
        %1169 = vmatpush1.bf16.msra.mxu0 %v1023
        %1170 = vmatprep.subr.bf16.mxu0 %v1021
        %1171 = vmatpush1.bf16.msra.mxu0 %v1020
        %1172 = vmatprep.subr.bf16.mxu0 0
        %1173 = vmatpush2.bf16.msra.mxu0 0
        %1174 = vmatprep.subr.bf16.mxu0 0
        %1175 = vmatpush2.bf16.msra.mxu0 0
        %1176 = vmatprep.subr.bf16.mxu0 0
        %1177 = vmatpush2.bf16.msra.mxu0 0
        %1178 = vmatprep.subr.bf16.mxu0 0
        %1179 = vmatpush2.bf16.msra.mxu0 0
        %1180 = vmatprep.subr.bf16.mxu0 0
        %1181 = vmatpush2.bf16.msra.mxu0 0
        %1182 = vmatprep.subr.bf16.mxu0 0
        %1183 = vmatpush2.bf16.msra.mxu0 0
        %1184 = vmatprep.subr.bf16.mxu0 0
        %1185 = vmatpush2.bf16.msra.mxu0 0
        %1186 = vmatprep.subr.bf16.mxu0 0
        %1187 = vmatpush2.bf16.msra.mxu0 0
        %1188 = vmatprep.mubr.bf16.mxu0 0
        %1189 = vmatmul.mubr.bf16.gmra.mxu0 %v1103
        %v1190 = vpop.f32.mrf.mxu0
        %v1191 = vadd.f32 %v1150, %v1190
        %v1192 = vpop.f32.mrf.mxu0
        %v1193 = vadd.f32 %v1152, %v1192
        %v1194 = vpop.f32.mrf.mxu0
        %v1195 = vpop.f32.mrf.mxu0
        %1196 = vdwg.mxu0
        %1197 = vmatprep.subr.bf16.mxu0 0
        %1198 = vmatpush1.bf16.msra.mxu0 %v995
        %1199 = vmatprep.subr.bf16.mxu0 0
        %1200 = vmatpush1.bf16.msra.mxu0 %v992
        %1201 = vmatprep.subr.bf16.mxu0 0
        %1202 = vmatpush1.bf16.msra.mxu0 %v989
        %1203 = vmatprep.subr.bf16.mxu0 0
        %1204 = vmatpush1.bf16.msra.mxu0 %v986
        %1205 = vmatprep.subr.bf16.mxu0 0
        %1206 = vmatpush1.bf16.msra.mxu0 %v983
        %1207 = vmatprep.subr.bf16.mxu0 0
        %1208 = vmatpush1.bf16.msra.mxu0 %v980
        %1209 = vmatprep.subr.bf16.mxu0 0
        %1210 = vmatpush1.bf16.msra.mxu0 %v977
        %1211 = vmatprep.subr.bf16.mxu0 0
        %1212 = vmatpush1.bf16.msra.mxu0 %v974
        %1213 = vmatprep.subr.bf16.mxu0 0
        %1214 = vmatpush2.bf16.msra.mxu0 %v1019
        %1215 = vmatprep.subr.bf16.mxu0 0
        %1216 = vmatpush2.bf16.msra.mxu0 %v1016
        %1217 = vmatprep.subr.bf16.mxu0 0
        %1218 = vmatpush2.bf16.msra.mxu0 %v1013
        %1219 = vmatprep.subr.bf16.mxu0 0
        %1220 = vmatpush2.bf16.msra.mxu0 %v1010
        %1221 = vmatprep.subr.bf16.mxu0 0
        %1222 = vmatpush2.bf16.msra.mxu0 %v1007
        %1223 = vmatprep.subr.bf16.mxu0 0
        %1224 = vmatpush2.bf16.msra.mxu0 %v1004
        %1225 = vmatprep.subr.bf16.mxu0 0
        %1226 = vmatpush2.bf16.msra.mxu0 %v1001
        %1227 = vmatprep.subr.bf16.mxu0 0
        %1228 = vmatpush2.bf16.msra.mxu0 %v998
        %1229 = vmatprep.mubr.bf16.mxu0 %v739
        %1230 = vmatmul.mubr.bf16.gmra.mxu0 %v738
        %v1231 = vpop.f32.mrf.mxu0
        %v1232 = vadd.f32 %v753, %v1231
        %v1233 = vpop.f32.mrf.mxu0
        %v1234 = vpop.f32.mrf.mxu0
        %v1235 = vpop.f32.mrf.mxu0
        %1236 = vdwg.mxu0
        %1237 = vmatprep.subr.bf16.mxu0 0
        %1238 = vmatpush1.bf16.msra.mxu0 0
        %1239 = vmatprep.subr.bf16.mxu0 0
        %1240 = vmatpush1.bf16.msra.mxu0 0
        %1241 = vmatprep.subr.bf16.mxu0 0
        %1242 = vmatpush1.bf16.msra.mxu0 %v1113
        %1243 = vmatprep.subr.bf16.mxu0 0
        %1244 = vmatpush1.bf16.msra.mxu0 %v1034
        %1245 = vmatprep.subr.bf16.mxu0 0
        %1246 = vmatpush1.bf16.msra.mxu0 %v1031
        %1247 = vmatprep.subr.bf16.mxu0 0
        %1248 = vmatpush1.bf16.msra.mxu0 %v1028
        %1249 = vmatprep.subr.bf16.mxu0 0
        %1250 = vmatpush1.bf16.msra.mxu0 %v1025
        %1251 = vmatprep.subr.bf16.mxu0 0
        %1252 = vmatpush1.bf16.msra.mxu0 %v1022
        %1253 = vmatprep.subr.bf16.mxu0 0
        %1254 = vmatpush2.bf16.msra.mxu0 0
        %1255 = vmatprep.subr.bf16.mxu0 0
        %1256 = vmatpush2.bf16.msra.mxu0 0
        %1257 = vmatprep.subr.bf16.mxu0 0
        %1258 = vmatpush2.bf16.msra.mxu0 0
        %1259 = vmatprep.subr.bf16.mxu0 0
        %1260 = vmatpush2.bf16.msra.mxu0 0
        %1261 = vmatprep.subr.bf16.mxu0 0
        %1262 = vmatpush2.bf16.msra.mxu0 0
        %1263 = vmatprep.subr.bf16.mxu0 0
        %1264 = vmatpush2.bf16.msra.mxu0 0
        %1265 = vmatprep.subr.bf16.mxu0 0
        %1266 = vmatpush2.bf16.msra.mxu0 0
        %1267 = vmatprep.subr.bf16.mxu0 0
        %1268 = vmatpush2.bf16.msra.mxu0 0
        %1269 = vmatprep.mubr.bf16.mxu0 0
        %1270 = vmatmul.mubr.bf16.gmra.mxu0 %v1103
        %v1271 = vpop.f32.mrf.mxu0
        %v1272 = vadd.f32 %v1232, %v1271
        %v1273 = vpop.f32.mrf.mxu0
        %v1274 = vpop.f32.mrf.mxu0
        %v1275 = vpop.f32.mrf.mxu0
        %1276 = vdwg.mxu0
        %v1277 = vmin.f32 %v1191, 0.0
        %v1278 = vmin.f32 %v1193, 0.0
        %v1279 = vmin.f32 %v1272, 0.0
        %vm1280 = vcmp.gt.f32.partialorder %v1191, 0.0
        %vm1281 = vcmp.gt.f32.partialorder %v1193, 0.0
        %vm1282 = vcmp.gt.f32.partialorder %v1272, 0.0
        %v1283 = vmul.f32 %v1277, 1.442695
        %v1284 = vpow.pop %v1283
        %v1285 = vmul.f32 %v1278, 1.442695
        %v1286 = vpow.pop %v1285
        %v1287 = vmul.f32 %v1279, 1.442695
        %v1288 = vpow.pop %v1287
        %v1289 = vsub.f32 %v1284, 1.0
        %v1290 = vsub.f32 %v1286, 1.0
        %v1291 = vsub.f32 %v1288, 1.0
        %v1292 = vmul.f32 %v1289, 1.6732632
        %v1293 = vmul.f32 %v1290, 1.6732632
        %v1294 = vmul.f32 %v1291, 1.6732632
        %v1295 = vsel %vm1280, %v1191, %v1292
        %v1296 = vsel %vm1281, %v1193, %v1293
        %v1297 = vsel %vm1282, %v1272, %v1294
        %v1298 = vmul.f32 %v1295, 1.050701
        %v1299 = vmul.f32 %v1296, 1.050701
        %v1300 = vmul.f32 %v1297, 1.050701
        %v1301 = vld [vmem:[%s3] sm:$0xff]
        %v1302 = vld [vmem:[%s3 + $0x8] sm:$0xf]
        %v1303 = vld [vmem:[%s3 + $0xc] sm:$0xff]
        %v1304 = vld [vmem:[%s3 + $0x14] sm:$0xf]
        %v1305 = vld [vmem:[%s3 + $0x18] sm:$0xff]
        %v1306 = vld [vmem:[%s3 + $0x20] sm:$0xf]
        %v1307 = vld [vmem:[%s3 + $0x24] sm:$0xff]
        %v1308 = vld [vmem:[%s3 + $0x2c] sm:$0xf]
        %v1309 = vld [vmem:[%s3 + $0x30] sm:$0xff]
        %v1310 = vld [vmem:[%s3 + $0x38] sm:$0xf]
        %v1311 = vld [vmem:[%s3 + $0x3c] sm:$0xff]
        %v1312 = vld [vmem:[%s3 + $0x44] sm:$0xf]
        %v1313 = vld [vmem:[%s3 + $0x48] sm:$0xff]
        %v1314 = vld [vmem:[%s3 + $0x50] sm:$0xf]
        %v1315 = vld [vmem:[%s3 + $0x54] sm:$0xff]
        %v1316 = vld [vmem:[%s3 + $0x5c] sm:$0xf]
        %v1317 = vld [vmem:[%s3 + $0x60] sm:$0xff]
        %v1318 = vld [vmem:[%s3 + $0x68] sm:$0xf]
        %v1319 = vld [vmem:[%s3 + $0x6c] sm:$0xff]
        %v1320 = vld [vmem:[%s3 + $0x74] sm:$0xf]
        %v1321 = vld [vmem:[%s3 + $0x78] sm:$0xff]
        %v1322 = vld [vmem:[%s3 + $0x80] sm:$0xf]
        %v1323 = vld [vmem:[%s3 + $0x84] sm:$0xff]
        %v1324 = vld [vmem:[%s3 + $0x8c] sm:$0xf]
        %v1325 = vld [vmem:[%s3 + $0x90] sm:$0xff]
        %v1326 = vld [vmem:[%s3 + $0x98] sm:$0xf]
        %v1327 = vld [vmem:[%s3 + $0x9c] sm:$0xff]
        %v1328 = vld [vmem:[%s3 + $0xa4] sm:$0xf]
        %v1329 = vld [vmem:[%s3 + $0xa8] sm:$0xff]
        %v1330 = vld [vmem:[%s3 + $0xb0] sm:$0xf]
        %v1331 = vld [vmem:[%s3 + $0xb4] sm:$0xff]
        %v1332 = vld [vmem:[%s3 + $0xbc] sm:$0xf]
        %v1333 = vld [vmem:[%s3 + $0xc0] sm:$0xff]
        %v1334 = vld [vmem:[%s3 + $0xc8] sm:$0xf]
        %v1335 = vld [vmem:[%s3 + $0xcc] sm:$0xff]
        %v1336 = vld [vmem:[%s3 + $0xd4] sm:$0xf]
        %v1337 = vld [vmem:[%s3 + $0xd8] sm:$0xff]
        %v1338 = vld [vmem:[%s3 + $0xe0] sm:$0xf]
        %v1339 = vld [vmem:[%s3 + $0xe4] sm:$0xff]
        %v1340 = vld [vmem:[%s3 + $0xec] sm:$0xf]
        %v1341 = vld [vmem:[%s3 + $0xf0] sm:$0xff]
        %v1342 = vld [vmem:[%s3 + $0xf8] sm:$0xf]
        %v1343 = vld [vmem:[%s3 + $0xfc] sm:$0xff]
        %v1344 = vld [vmem:[%s3 + $0x104] sm:$0xf]
        %v1345 = vld [vmem:[%s3 + $0x108] sm:$0xff]
        %v1346 = vld [vmem:[%s3 + $0x110] sm:$0xf]
        %v1347 = vld [vmem:[%s3 + $0x114] sm:$0xff]
        %v1348 = vld [vmem:[%s3 + $0x11c] sm:$0xf]
        %v1349 = vld [vmem:[%s3 + $0x120] sm:$0xff]
        %v1350 = vld [vmem:[%s3 + $0x128] sm:$0xf]
        %v1351 = vld [vmem:[%s3 + $0x12c] sm:$0xff]
        %v1352 = vld [vmem:[%s3 + $0x134] sm:$0xf]
        %v1353 = vld [vmem:[%s3 + $0x138] sm:$0xff]
        %v1354 = vld [vmem:[%s3 + $0x140] sm:$0xf]
        %v1355 = vld [vmem:[%s3 + $0x144] sm:$0xff]
        %v1356 = vld [vmem:[%s3 + $0x14c] sm:$0xf]
        %v1357 = vld [vmem:[%s3 + $0x150] sm:$0xff]
        %v1358 = vld [vmem:[%s3 + $0x158] sm:$0xf]
        %v1359 = vld [vmem:[%s3 + $0x15c] sm:$0xff]
        %v1360 = vld [vmem:[%s3 + $0x164] sm:$0xf]
        %v1361 = vld [vmem:[%s3 + $0x168] sm:$0xff]
        %v1362 = vld [vmem:[%s3 + $0x170] sm:$0xf]
        %v1363 = vld [vmem:[%s3 + $0x174] sm:$0xff]
        %v1364 = vld [vmem:[%s3 + $0x17c] sm:$0xf]
        %v1365 = vld [vmem:[%s3 + $0x180] sm:$0xff]
        %v1366 = vld [vmem:[%s3 + $0x188] sm:$0xf]
        %v1367 = vld [vmem:[%s3 + $0x18c] sm:$0xff]
        %v1368 = vld [vmem:[%s3 + $0x194] sm:$0xf]
        %v1369 = vld [vmem:[%s3 + $0x198] sm:$0xff]
        %v1370 = vld [vmem:[%s3 + $0x1a0] sm:$0xf]
        %v1371 = vld [vmem:[%s3 + $0x1a4] sm:$0xff]
        %v1372 = vld [vmem:[%s3 + $0x1ac] sm:$0xf]
        %v1373 = vld [vmem:[%s3 + $0x1b0] sm:$0xff]
        %v1374 = vld [vmem:[%s3 + $0x1b8] sm:$0xf]
        %v1375 = vld [vmem:[%s3 + $0x1bc] sm:$0x33]
        %v1376 = vld [vmem:[%s3 + $0x1c4] sm:$0x3]
        %v1377 = vld [vmem:[%s4] sm:$0x7]
        %v1378 = vpack.c.bf16 %v1298, %v1298
        %v1379 = vpack.c.bf16 %v1299, %v1299
        %v1380 = vpack.c.bf16 %v1300, %v1300
        %v1382 = vlaneseq
        %v1383 = vshrl.u32 %v1382, 7
        %v1384 = vsub.s32 0, %v1383
        %v1385 = vrot.slane %v1377, %v1384
        %v1386 = vlaneseq
        %v1387 = vshrl.u32 %v1386, 7
        %v1388 = vsub.s32 1, %v1387
        %v1389 = vrot.slane %v1377, %v1388
        %v1390 = vlaneseq
        %v1391 = vshrl.u32 %v1390, 7
        %v1392 = vsub.s32 2, %v1391
        %v1393 = vrot.slane %v1377, %v1392
        %v1473 = vunpack.c.l.b16 %v1301
        %v1474 = vunpack.c.h.b16 %v1301
        %v1475 = vunpack.c.l.b16 %v1302
        %v1476 = vunpack.c.l.b16 %v1303
        %v1477 = vunpack.c.h.b16 %v1303
        %v1478 = vunpack.c.l.b16 %v1304
        %v1479 = vunpack.c.l.b16 %v1305
        %v1480 = vunpack.c.h.b16 %v1305
        %v1481 = vunpack.c.l.b16 %v1306
        %v1482 = vunpack.c.l.b16 %v1307
        %v1483 = vunpack.c.h.b16 %v1307
        %v1484 = vunpack.c.l.b16 %v1308
        %v1485 = vunpack.c.l.b16 %v1309
        %v1486 = vunpack.c.h.b16 %v1309
        %v1487 = vunpack.c.l.b16 %v1310
        %v1488 = vunpack.c.l.b16 %v1311
        %v1489 = vunpack.c.h.b16 %v1311
        %v1490 = vunpack.c.l.b16 %v1312
        %v1491 = vunpack.c.l.b16 %v1313
        %v1492 = vunpack.c.h.b16 %v1313
        %v1493 = vunpack.c.l.b16 %v1314
        %v1494 = vunpack.c.l.b16 %v1315
        %v1495 = vunpack.c.h.b16 %v1315
        %v1496 = vunpack.c.l.b16 %v1316
        %v1497 = vunpack.c.l.b16 %v1317
        %v1498 = vunpack.c.h.b16 %v1317
        %v1499 = vunpack.c.l.b16 %v1318
        %v1500 = vunpack.c.l.b16 %v1319
        %v1501 = vunpack.c.h.b16 %v1319
        %v1502 = vunpack.c.l.b16 %v1320
        %v1503 = vunpack.c.l.b16 %v1321
        %v1504 = vunpack.c.h.b16 %v1321
        %v1505 = vunpack.c.l.b16 %v1322
        %v1506 = vunpack.c.l.b16 %v1323
        %v1507 = vunpack.c.h.b16 %v1323
        %v1508 = vunpack.c.l.b16 %v1324
        %v1509 = vunpack.c.l.b16 %v1325
        %v1510 = vunpack.c.h.b16 %v1325
        %v1511 = vunpack.c.l.b16 %v1326
        %v1512 = vunpack.c.l.b16 %v1327
        %v1513 = vunpack.c.h.b16 %v1327
        %v1514 = vunpack.c.l.b16 %v1328
        %v1515 = vunpack.c.l.b16 %v1329
        %v1516 = vunpack.c.h.b16 %v1329
        %v1517 = vunpack.c.l.b16 %v1330
        %v1518 = vunpack.c.l.b16 %v1331
        %v1519 = vunpack.c.h.b16 %v1331
        %v1520 = vunpack.c.l.b16 %v1332
        %v1521 = vunpack.c.l.b16 %v1333
        %v1522 = vunpack.c.h.b16 %v1333
        %v1523 = vunpack.c.l.b16 %v1334
        %v1524 = vunpack.c.l.b16 %v1335
        %v1525 = vunpack.c.h.b16 %v1335
        %v1526 = vunpack.c.l.b16 %v1336
        %v1527 = vunpack.c.l.b16 %v1337
        %v1528 = vunpack.c.h.b16 %v1337
        %v1529 = vunpack.c.l.b16 %v1338
        %v1530 = vunpack.c.l.b16 %v1339
        %v1531 = vunpack.c.h.b16 %v1339
        %v1532 = vunpack.c.l.b16 %v1340
        %v1533 = vunpack.c.l.b16 %v1341
        %v1534 = vunpack.c.h.b16 %v1341
        %v1535 = vunpack.c.l.b16 %v1342
        %v1536 = vunpack.c.l.b16 %v1343
        %v1537 = vunpack.c.h.b16 %v1343
        %v1538 = vunpack.c.l.b16 %v1344
        %v1539 = vunpack.c.l.b16 %v1345
        %v1540 = vunpack.c.h.b16 %v1345
        %v1541 = vunpack.c.l.b16 %v1346
        %v1542 = vunpack.c.l.b16 %v1347
        %v1543 = vunpack.c.h.b16 %v1347
        %v1544 = vunpack.c.l.b16 %v1348
        %v1545 = vunpack.c.l.b16 %v1349
        %v1546 = vunpack.c.h.b16 %v1349
        %v1547 = vunpack.c.l.b16 %v1350
        %v1548 = vunpack.c.l.b16 %v1351
        %v1549 = vunpack.c.h.b16 %v1351
        %v1550 = vunpack.c.l.b16 %v1352
        %v1551 = vunpack.c.l.b16 %v1353
        %v1552 = vunpack.c.h.b16 %v1353
        %v1553 = vunpack.c.l.b16 %v1354
        %v1554 = vunpack.c.l.b16 %v1355
        %v1555 = vunpack.c.h.b16 %v1355
        %v1556 = vunpack.c.l.b16 %v1356
        %v1557 = vunpack.c.l.b16 %v1357
        %v1558 = vunpack.c.h.b16 %v1357
        %v1559 = vunpack.c.l.b16 %v1358
        %v1560 = vunpack.c.l.b16 %v1359
        %v1561 = vunpack.c.h.b16 %v1359
        %v1562 = vunpack.c.l.b16 %v1360
        %v1563 = vunpack.c.l.b16 %v1361
        %v1564 = vunpack.c.h.b16 %v1361
        %v1565 = vunpack.c.l.b16 %v1362
        %v1566 = vunpack.c.l.b16 %v1363
        %v1567 = vunpack.c.h.b16 %v1363
        %v1568 = vunpack.c.l.b16 %v1364
        %v1569 = vunpack.c.l.b16 %v1365
        %v1570 = vunpack.c.h.b16 %v1365
        %v1571 = vunpack.c.l.b16 %v1366
        %v1572 = vunpack.c.l.b16 %v1367
        %v1573 = vunpack.c.h.b16 %v1367
        %v1574 = vunpack.c.l.b16 %v1368
        %v1575 = vunpack.c.l.b16 %v1369
        %v1576 = vunpack.c.h.b16 %v1369
        %v1577 = vunpack.c.l.b16 %v1370
        %v1578 = vunpack.c.l.b16 %v1371
        %v1579 = vunpack.c.h.b16 %v1371
        %v1580 = vunpack.c.l.b16 %v1372
        %v1581 = vunpack.c.l.b16 %v1373
        %v1582 = vunpack.c.h.b16 %v1373
        %v1583 = vunpack.c.l.b16 %v1374
        %v1584 = vunpack.c.l.b16 %v1375
        %v1585 = vunpack.c.h.b16 %v1375
        %v1586 = vunpack.c.l.b16 %v1376
        %v1587 = vpack.c.b16 %v1476, %v1473
        %v1588 = vpack.c.b16 %v1477, %v1474
        %v1589 = vpack.c.b16 %v1478, %v1475
        %v1590 = vpack.c.b16 %v1482, %v1479
        %v1591 = vpack.c.b16 %v1483, %v1480
        %v1592 = vpack.c.b16 %v1484, %v1481
        %v1593 = vpack.c.b16 %v1488, %v1485
        %v1594 = vpack.c.b16 %v1489, %v1486
        %v1595 = vpack.c.b16 %v1490, %v1487
        %v1596 = vpack.c.b16 %v1494, %v1491
        %v1597 = vpack.c.b16 %v1495, %v1492
        %v1598 = vpack.c.b16 %v1496, %v1493
        %v1599 = vpack.c.b16 %v1500, %v1497
        %v1600 = vpack.c.b16 %v1501, %v1498
        %v1601 = vpack.c.b16 %v1502, %v1499
        %v1602 = vpack.c.b16 %v1506, %v1503
        %v1603 = vpack.c.b16 %v1507, %v1504
        %v1604 = vpack.c.b16 %v1508, %v1505
        %v1605 = vpack.c.b16 %v1512, %v1509
        %v1606 = vpack.c.b16 %v1513, %v1510
        %v1607 = vpack.c.b16 %v1514, %v1511
        %v1608 = vpack.c.b16 %v1518, %v1515
        %v1609 = vpack.c.b16 %v1519, %v1516
        %v1610 = vpack.c.b16 %v1520, %v1517
        %v1611 = vpack.c.b16 %v1524, %v1521
        %v1612 = vpack.c.b16 %v1525, %v1522
        %v1613 = vpack.c.b16 %v1526, %v1523
        %v1614 = vpack.c.b16 %v1530, %v1527
        %v1615 = vpack.c.b16 %v1531, %v1528
        %v1616 = vpack.c.b16 %v1532, %v1529
        %v1617 = vpack.c.b16 %v1536, %v1533
        %v1618 = vpack.c.b16 %v1537, %v1534
        %v1619 = vpack.c.b16 %v1538, %v1535
        %v1620 = vpack.c.b16 %v1542, %v1539
        %v1621 = vpack.c.b16 %v1543, %v1540
        %v1622 = vpack.c.b16 %v1544, %v1541
        %v1623 = vpack.c.b16 %v1548, %v1545
        %v1624 = vpack.c.b16 %v1549, %v1546
        %v1625 = vpack.c.b16 %v1550, %v1547
        %v1626 = vpack.c.b16 %v1554, %v1551
        %v1627 = vpack.c.b16 %v1555, %v1552
        %v1628 = vpack.c.b16 %v1556, %v1553
        %v1629 = vpack.c.b16 %v1560, %v1557
        %v1630 = vpack.c.b16 %v1561, %v1558
        %v1631 = vpack.c.b16 %v1562, %v1559
        %v1632 = vpack.c.b16 %v1566, %v1563
        %v1633 = vpack.c.b16 %v1567, %v1564
        %v1634 = vpack.c.b16 %v1568, %v1565
        %v1635 = vpack.c.b16 %v1572, %v1569
        %v1636 = vpack.c.b16 %v1573, %v1570
        %v1637 = vpack.c.b16 %v1574, %v1571
        %v1638 = vpack.c.b16 %v1578, %v1575
        %v1639 = vpack.c.b16 %v1579, %v1576
        %v1640 = vpack.c.b16 %v1580, %v1577
        %v1641 = vpack.c.b16 %v1584, %v1581
        %v1642 = vpack.c.b16 %v1585, %v1582
        %v1643 = vpack.c.b16 %v1586, %v1583
        %vm1698 = vcmask 359424
        %v1700 = vsel %vm1698, %v1380, 0
        %vm1702 = vcmask 1045504
        %v1704 = vsel %vm1702, %v1641, 0
        %v1707 = vsel %vm1702, %v1642, 0
        %v1710 = vsel %vm1702, %v1643, 0
        %1712 = vmatprep.subr.bf16.mxu0 %v1609
        %1713 = vmatpush1.bf16.msra.mxu0 %v1608
        %1714 = vmatprep.subr.bf16.mxu0 %v1606
        %1715 = vmatpush1.bf16.msra.mxu0 %v1605
        %1716 = vmatprep.subr.bf16.mxu0 %v1603
        %1717 = vmatpush1.bf16.msra.mxu0 %v1602
        %1718 = vmatprep.subr.bf16.mxu0 %v1600
        %1719 = vmatpush1.bf16.msra.mxu0 %v1599
        %1720 = vmatprep.subr.bf16.mxu0 %v1597
        %1721 = vmatpush1.bf16.msra.mxu0 %v1596
        %1722 = vmatprep.subr.bf16.mxu0 %v1594
        %1723 = vmatpush1.bf16.msra.mxu0 %v1593
        %1724 = vmatprep.subr.bf16.mxu0 %v1591
        %1725 = vmatpush1.bf16.msra.mxu0 %v1590
        %1726 = vmatprep.subr.bf16.mxu0 %v1588
        %1727 = vmatpush1.bf16.msra.mxu0 %v1587
        %1728 = vmatprep.subr.bf16.mxu0 %v1633
        %1729 = vmatpush2.bf16.msra.mxu0 %v1632
        %1730 = vmatprep.subr.bf16.mxu0 %v1630
        %1731 = vmatpush2.bf16.msra.mxu0 %v1629
        %1732 = vmatprep.subr.bf16.mxu0 %v1627
        %1733 = vmatpush2.bf16.msra.mxu0 %v1626
        %1734 = vmatprep.subr.bf16.mxu0 %v1624
        %1735 = vmatpush2.bf16.msra.mxu0 %v1623
        %1736 = vmatprep.subr.bf16.mxu0 %v1621
        %1737 = vmatpush2.bf16.msra.mxu0 %v1620
        %1738 = vmatprep.subr.bf16.mxu0 %v1618
        %1739 = vmatpush2.bf16.msra.mxu0 %v1617
        %1740 = vmatprep.subr.bf16.mxu0 %v1615
        %1741 = vmatpush2.bf16.msra.mxu0 %v1614
        %1742 = vmatprep.subr.bf16.mxu0 %v1612
        %1743 = vmatpush2.bf16.msra.mxu0 %v1611
        %1744 = vmatprep.mubr.bf16.mxu0 %v1379
        %1745 = vmatmul.mubr.bf16.gmra.mxu0 %v1378
        %v1746 = vpop.f32.mrf.mxu0
        %v1747 = vadd.f32 %v1385, %v1746
        %v1748 = vpop.f32.mrf.mxu0
        %v1749 = vadd.f32 %v1389, %v1748
        %v1750 = vpop.f32.mrf.mxu0
        %v1751 = vpop.f32.mrf.mxu0
        %1752 = vdwg.mxu0
        %1753 = vmatprep.subr.bf16.mxu0 0
        %1754 = vmatpush1.bf16.msra.mxu0 0
        %1755 = vmatprep.subr.bf16.mxu0 0
        %1756 = vmatpush1.bf16.msra.mxu0 0
        %1757 = vmatprep.subr.bf16.mxu0 0
        %1758 = vmatpush1.bf16.msra.mxu0 0
        %1759 = vmatprep.subr.bf16.mxu0 0
        %1760 = vmatpush1.bf16.msra.mxu0 0
        %1761 = vmatprep.subr.bf16.mxu0 0
        %1762 = vmatpush1.bf16.msra.mxu0 0
        %1763 = vmatprep.subr.bf16.mxu0 %v1707
        %1764 = vmatpush1.bf16.msra.mxu0 %v1704
        %1765 = vmatprep.subr.bf16.mxu0 %v1639
        %1766 = vmatpush1.bf16.msra.mxu0 %v1638
        %1767 = vmatprep.subr.bf16.mxu0 %v1636
        %1768 = vmatpush1.bf16.msra.mxu0 %v1635
        %1769 = vmatprep.subr.bf16.mxu0 0
        %1770 = vmatpush2.bf16.msra.mxu0 0
        %1771 = vmatprep.subr.bf16.mxu0 0
        %1772 = vmatpush2.bf16.msra.mxu0 0
        %1773 = vmatprep.subr.bf16.mxu0 0
        %1774 = vmatpush2.bf16.msra.mxu0 0
        %1775 = vmatprep.subr.bf16.mxu0 0
        %1776 = vmatpush2.bf16.msra.mxu0 0
        %1777 = vmatprep.subr.bf16.mxu0 0
        %1778 = vmatpush2.bf16.msra.mxu0 0
        %1779 = vmatprep.subr.bf16.mxu0 0
        %1780 = vmatpush2.bf16.msra.mxu0 0
        %1781 = vmatprep.subr.bf16.mxu0 0
        %1782 = vmatpush2.bf16.msra.mxu0 0
        %1783 = vmatprep.subr.bf16.mxu0 0
        %1784 = vmatpush2.bf16.msra.mxu0 0
        %1785 = vmatprep.mubr.bf16.mxu0 0
        %1786 = vmatmul.mubr.bf16.gmra.mxu0 %v1700
        %v1787 = vpop.f32.mrf.mxu0
        %v1788 = vadd.f32 %v1747, %v1787
        %v1789 = vpop.f32.mrf.mxu0
        %v1790 = vadd.f32 %v1749, %v1789
        %v1791 = vpop.f32.mrf.mxu0
        %v1792 = vpop.f32.mrf.mxu0
        %1793 = vdwg.mxu0
        %1794 = vmatprep.subr.bf16.mxu0 0
        %1795 = vmatpush1.bf16.msra.mxu0 %v1610
        %1796 = vmatprep.subr.bf16.mxu0 0
        %1797 = vmatpush1.bf16.msra.mxu0 %v1607
        %1798 = vmatprep.subr.bf16.mxu0 0
        %1799 = vmatpush1.bf16.msra.mxu0 %v1604
        %1800 = vmatprep.subr.bf16.mxu0 0
        %1801 = vmatpush1.bf16.msra.mxu0 %v1601
        %1802 = vmatprep.subr.bf16.mxu0 0
        %1803 = vmatpush1.bf16.msra.mxu0 %v1598
        %1804 = vmatprep.subr.bf16.mxu0 0
        %1805 = vmatpush1.bf16.msra.mxu0 %v1595
        %1806 = vmatprep.subr.bf16.mxu0 0
        %1807 = vmatpush1.bf16.msra.mxu0 %v1592
        %1808 = vmatprep.subr.bf16.mxu0 0
        %1809 = vmatpush1.bf16.msra.mxu0 %v1589
        %1810 = vmatprep.subr.bf16.mxu0 0
        %1811 = vmatpush2.bf16.msra.mxu0 %v1634
        %1812 = vmatprep.subr.bf16.mxu0 0
        %1813 = vmatpush2.bf16.msra.mxu0 %v1631
        %1814 = vmatprep.subr.bf16.mxu0 0
        %1815 = vmatpush2.bf16.msra.mxu0 %v1628
        %1816 = vmatprep.subr.bf16.mxu0 0
        %1817 = vmatpush2.bf16.msra.mxu0 %v1625
        %1818 = vmatprep.subr.bf16.mxu0 0
        %1819 = vmatpush2.bf16.msra.mxu0 %v1622
        %1820 = vmatprep.subr.bf16.mxu0 0
        %1821 = vmatpush2.bf16.msra.mxu0 %v1619
        %1822 = vmatprep.subr.bf16.mxu0 0
        %1823 = vmatpush2.bf16.msra.mxu0 %v1616
        %1824 = vmatprep.subr.bf16.mxu0 0
        %1825 = vmatpush2.bf16.msra.mxu0 %v1613
        %1826 = vmatprep.mubr.bf16.mxu0 %v1379
        %1827 = vmatmul.mubr.bf16.gmra.mxu0 %v1378
        %v1828 = vpop.f32.mrf.mxu0
        %v1829 = vadd.f32 %v1393, %v1828
        %v1830 = vpop.f32.mrf.mxu0
        %v1831 = vpop.f32.mrf.mxu0
        %v1832 = vpop.f32.mrf.mxu0
        %1833 = vdwg.mxu0
        %1834 = vmatprep.subr.bf16.mxu0 0
        %1835 = vmatpush1.bf16.msra.mxu0 0
        %1836 = vmatprep.subr.bf16.mxu0 0
        %1837 = vmatpush1.bf16.msra.mxu0 0
        %1838 = vmatprep.subr.bf16.mxu0 0
        %1839 = vmatpush1.bf16.msra.mxu0 0
        %1840 = vmatprep.subr.bf16.mxu0 0
        %1841 = vmatpush1.bf16.msra.mxu0 0
        %1842 = vmatprep.subr.bf16.mxu0 0
        %1843 = vmatpush1.bf16.msra.mxu0 0
        %1844 = vmatprep.subr.bf16.mxu0 0
        %1845 = vmatpush1.bf16.msra.mxu0 %v1710
        %1846 = vmatprep.subr.bf16.mxu0 0
        %1847 = vmatpush1.bf16.msra.mxu0 %v1640
        %1848 = vmatprep.subr.bf16.mxu0 0
        %1849 = vmatpush1.bf16.msra.mxu0 %v1637
        %1850 = vmatprep.subr.bf16.mxu0 0
        %1851 = vmatpush2.bf16.msra.mxu0 0
        %1852 = vmatprep.subr.bf16.mxu0 0
        %1853 = vmatpush2.bf16.msra.mxu0 0
        %1854 = vmatprep.subr.bf16.mxu0 0
        %1855 = vmatpush2.bf16.msra.mxu0 0
        %1856 = vmatprep.subr.bf16.mxu0 0
        %1857 = vmatpush2.bf16.msra.mxu0 0
        %1858 = vmatprep.subr.bf16.mxu0 0
        %1859 = vmatpush2.bf16.msra.mxu0 0
        %1860 = vmatprep.subr.bf16.mxu0 0
        %1861 = vmatpush2.bf16.msra.mxu0 0
        %1862 = vmatprep.subr.bf16.mxu0 0
        %1863 = vmatpush2.bf16.msra.mxu0 0
        %1864 = vmatprep.subr.bf16.mxu0 0
        %1865 = vmatpush2.bf16.msra.mxu0 0
        %1866 = vmatprep.mubr.bf16.mxu0 0
        %1867 = vmatmul.mubr.bf16.gmra.mxu0 %v1700
        %v1868 = vpop.f32.mrf.mxu0
        %v1869 = vadd.f32 %v1829, %v1868
        %v1870 = vpop.f32.mrf.mxu0
        %v1871 = vpop.f32.mrf.mxu0
        %v1872 = vpop.f32.mrf.mxu0
        %1873 = vdwg.mxu0
        %v1874 = vmin.f32 %v1788, 0.0
        %v1875 = vmin.f32 %v1790, 0.0
        %v1876 = vmin.f32 %v1869, 0.0
        %vm1877 = vcmp.gt.f32.partialorder %v1788, 0.0
        %vm1878 = vcmp.gt.f32.partialorder %v1790, 0.0
        %vm1879 = vcmp.gt.f32.partialorder %v1869, 0.0
        %v1880 = vmul.f32 %v1874, 1.442695
        %v1881 = vpow.pop %v1880
        %v1882 = vmul.f32 %v1875, 1.442695
        %v1883 = vpow.pop %v1882
        %v1884 = vmul.f32 %v1876, 1.442695
        %v1885 = vpow.pop %v1884
        %v1886 = vsub.f32 %v1881, 1.0
        %v1887 = vsub.f32 %v1883, 1.0
        %v1888 = vsub.f32 %v1885, 1.0
        %v1889 = vmul.f32 %v1886, 1.6732632
        %v1890 = vmul.f32 %v1887, 1.6732632
        %v1891 = vmul.f32 %v1888, 1.6732632
        %v1892 = vsel %vm1877, %v1788, %v1889
        %v1893 = vsel %vm1878, %v1790, %v1890
        %v1894 = vsel %vm1879, %v1869, %v1891
        %v1895 = vmul.f32 %v1892, 1.050701
        %v1896 = vmul.f32 %v1893, 1.050701
        %v1897 = vmul.f32 %v1894, 1.050701
        %v1898 = vld [vmem:[%s5] sm:$0xff]
        %v1899 = vld [vmem:[%s5 + $0x8] sm:$0xf]
        %v1900 = vld [vmem:[%s5 + $0xc] sm:$0xff]
        %v1901 = vld [vmem:[%s5 + $0x14] sm:$0xf]
        %v1902 = vld [vmem:[%s5 + $0x18] sm:$0xff]
        %v1903 = vld [vmem:[%s5 + $0x20] sm:$0xf]
        %v1904 = vld [vmem:[%s5 + $0x24] sm:$0xff]
        %v1905 = vld [vmem:[%s5 + $0x2c] sm:$0xf]
        %v1906 = vld [vmem:[%s5 + $0x30] sm:$0xff]
        %v1907 = vld [vmem:[%s5 + $0x38] sm:$0xf]
        %v1908 = vld [vmem:[%s5 + $0x3c] sm:$0xff]
        %v1909 = vld [vmem:[%s5 + $0x44] sm:$0xf]
        %v1910 = vld [vmem:[%s5 + $0x48] sm:$0xff]
        %v1911 = vld [vmem:[%s5 + $0x50] sm:$0xf]
        %v1912 = vld [vmem:[%s5 + $0x54] sm:$0xff]
        %v1913 = vld [vmem:[%s5 + $0x5c] sm:$0xf]
        %v1914 = vld [vmem:[%s5 + $0x60] sm:$0xff]
        %v1915 = vld [vmem:[%s5 + $0x68] sm:$0xf]
        %v1916 = vld [vmem:[%s5 + $0x6c] sm:$0xff]
        %v1917 = vld [vmem:[%s5 + $0x74] sm:$0xf]
        %v1918 = vld [vmem:[%s5 + $0x78] sm:$0xff]
        %v1919 = vld [vmem:[%s5 + $0x80] sm:$0xf]
        %v1920 = vld [vmem:[%s5 + $0x84] sm:$0xff]
        %v1921 = vld [vmem:[%s5 + $0x8c] sm:$0xf]
        %v1922 = vld [vmem:[%s5 + $0x90] sm:$0xff]
        %v1923 = vld [vmem:[%s5 + $0x98] sm:$0xf]
        %v1924 = vld [vmem:[%s5 + $0x9c] sm:$0xff]
        %v1925 = vld [vmem:[%s5 + $0xa4] sm:$0xf]
        %v1926 = vld [vmem:[%s5 + $0xa8] sm:$0xff]
        %v1927 = vld [vmem:[%s5 + $0xb0] sm:$0xf]
        %v1928 = vld [vmem:[%s5 + $0xb4] sm:$0xff]
        %v1929 = vld [vmem:[%s5 + $0xbc] sm:$0xf]
        %v1930 = vld [vmem:[%s5 + $0xc0] sm:$0xff]
        %v1931 = vld [vmem:[%s5 + $0xc8] sm:$0xf]
        %v1932 = vld [vmem:[%s5 + $0xcc] sm:$0xff]
        %v1933 = vld [vmem:[%s5 + $0xd4] sm:$0xf]
        %v1934 = vld [vmem:[%s5 + $0xd8] sm:$0xff]
        %v1935 = vld [vmem:[%s5 + $0xe0] sm:$0xf]
        %v1936 = vld [vmem:[%s5 + $0xe4] sm:$0xff]
        %v1937 = vld [vmem:[%s5 + $0xec] sm:$0xf]
        %v1938 = vld [vmem:[%s5 + $0xf0] sm:$0xff]
        %v1939 = vld [vmem:[%s5 + $0xf8] sm:$0xf]
        %v1940 = vld [vmem:[%s5 + $0xfc] sm:$0xff]
        %v1941 = vld [vmem:[%s5 + $0x104] sm:$0xf]
        %v1942 = vld [vmem:[%s5 + $0x108] sm:$0xff]
        %v1943 = vld [vmem:[%s5 + $0x110] sm:$0xf]
        %v1944 = vld [vmem:[%s5 + $0x114] sm:$0xff]
        %v1945 = vld [vmem:[%s5 + $0x11c] sm:$0xf]
        %v1946 = vld [vmem:[%s5 + $0x120] sm:$0xff]
        %v1947 = vld [vmem:[%s5 + $0x128] sm:$0xf]
        %v1948 = vld [vmem:[%s5 + $0x12c] sm:$0xff]
        %v1949 = vld [vmem:[%s5 + $0x134] sm:$0xf]
        %v1950 = vld [vmem:[%s5 + $0x138] sm:$0xff]
        %v1951 = vld [vmem:[%s5 + $0x140] sm:$0xf]
        %v1952 = vld [vmem:[%s5 + $0x144] sm:$0xff]
        %v1953 = vld [vmem:[%s5 + $0x14c] sm:$0xf]
        %v1954 = vld [vmem:[%s5 + $0x150] sm:$0xff]
        %v1955 = vld [vmem:[%s5 + $0x158] sm:$0xf]
        %v1956 = vld [vmem:[%s5 + $0x15c] sm:$0xff]
        %v1957 = vld [vmem:[%s5 + $0x164] sm:$0xf]
        %v1958 = vld [vmem:[%s5 + $0x168] sm:$0xff]
        %v1959 = vld [vmem:[%s5 + $0x170] sm:$0xf]
        %v1960 = vld [vmem:[%s5 + $0x174] sm:$0xff]
        %v1961 = vld [vmem:[%s5 + $0x17c] sm:$0xf]
        %v1962 = vld [vmem:[%s5 + $0x180] sm:$0xff]
        %v1963 = vld [vmem:[%s5 + $0x188] sm:$0xf]
        %v1964 = vld [vmem:[%s5 + $0x18c] sm:$0xff]
        %v1965 = vld [vmem:[%s5 + $0x194] sm:$0xf]
        %v1966 = vld [vmem:[%s5 + $0x198] sm:$0xff]
        %v1967 = vld [vmem:[%s5 + $0x1a0] sm:$0xf]
        %v1968 = vld [vmem:[%s5 + $0x1a4] sm:$0xff]
        %v1969 = vld [vmem:[%s5 + $0x1ac] sm:$0xf]
        %v1970 = vld [vmem:[%s5 + $0x1b0] sm:$0xff]
        %v1971 = vld [vmem:[%s5 + $0x1b8] sm:$0xf]
        %v1972 = vld [vmem:[%s5 + $0x1bc] sm:$0x33]
        %v1973 = vld [vmem:[%s5 + $0x1c4] sm:$0x3]
        %v1974 = vld [vmem:[%s6] sm:$0x7]
        %v1975 = vpack.c.bf16 %v1895, %v1895
        %v1976 = vpack.c.bf16 %v1896, %v1896
        %v1977 = vpack.c.bf16 %v1897, %v1897
        %v1979 = vlaneseq
        %v1980 = vshrl.u32 %v1979, 7
        %v1981 = vsub.s32 0, %v1980
        %v1982 = vrot.slane %v1974, %v1981
        %v1983 = vlaneseq
        %v1984 = vshrl.u32 %v1983, 7
        %v1985 = vsub.s32 1, %v1984
        %v1986 = vrot.slane %v1974, %v1985
        %v1987 = vlaneseq
        %v1988 = vshrl.u32 %v1987, 7
        %v1989 = vsub.s32 2, %v1988
        %v1990 = vrot.slane %v1974, %v1989
        %v2070 = vunpack.c.l.b16 %v1898
        %v2071 = vunpack.c.h.b16 %v1898
        %v2072 = vunpack.c.l.b16 %v1899
        %v2073 = vunpack.c.l.b16 %v1900
        %v2074 = vunpack.c.h.b16 %v1900
        %v2075 = vunpack.c.l.b16 %v1901
        %v2076 = vunpack.c.l.b16 %v1902
        %v2077 = vunpack.c.h.b16 %v1902
        %v2078 = vunpack.c.l.b16 %v1903
        %v2079 = vunpack.c.l.b16 %v1904
        %v2080 = vunpack.c.h.b16 %v1904
        %v2081 = vunpack.c.l.b16 %v1905
        %v2082 = vunpack.c.l.b16 %v1906
        %v2083 = vunpack.c.h.b16 %v1906
        %v2084 = vunpack.c.l.b16 %v1907
        %v2085 = vunpack.c.l.b16 %v1908
        %v2086 = vunpack.c.h.b16 %v1908
        %v2087 = vunpack.c.l.b16 %v1909
        %v2088 = vunpack.c.l.b16 %v1910
        %v2089 = vunpack.c.h.b16 %v1910
        %v2090 = vunpack.c.l.b16 %v1911
        %v2091 = vunpack.c.l.b16 %v1912
        %v2092 = vunpack.c.h.b16 %v1912
        %v2093 = vunpack.c.l.b16 %v1913
        %v2094 = vunpack.c.l.b16 %v1914
        %v2095 = vunpack.c.h.b16 %v1914
        %v2096 = vunpack.c.l.b16 %v1915
        %v2097 = vunpack.c.l.b16 %v1916
        %v2098 = vunpack.c.h.b16 %v1916
        %v2099 = vunpack.c.l.b16 %v1917
        %v2100 = vunpack.c.l.b16 %v1918
        %v2101 = vunpack.c.h.b16 %v1918
        %v2102 = vunpack.c.l.b16 %v1919
        %v2103 = vunpack.c.l.b16 %v1920
        %v2104 = vunpack.c.h.b16 %v1920
        %v2105 = vunpack.c.l.b16 %v1921
        %v2106 = vunpack.c.l.b16 %v1922
        %v2107 = vunpack.c.h.b16 %v1922
        %v2108 = vunpack.c.l.b16 %v1923
        %v2109 = vunpack.c.l.b16 %v1924
        %v2110 = vunpack.c.h.b16 %v1924
        %v2111 = vunpack.c.l.b16 %v1925
        %v2112 = vunpack.c.l.b16 %v1926
        %v2113 = vunpack.c.h.b16 %v1926
        %v2114 = vunpack.c.l.b16 %v1927
        %v2115 = vunpack.c.l.b16 %v1928
        %v2116 = vunpack.c.h.b16 %v1928
        %v2117 = vunpack.c.l.b16 %v1929
        %v2118 = vunpack.c.l.b16 %v1930
        %v2119 = vunpack.c.h.b16 %v1930
        %v2120 = vunpack.c.l.b16 %v1931
        %v2121 = vunpack.c.l.b16 %v1932
        %v2122 = vunpack.c.h.b16 %v1932
        %v2123 = vunpack.c.l.b16 %v1933
        %v2124 = vunpack.c.l.b16 %v1934
        %v2125 = vunpack.c.h.b16 %v1934
        %v2126 = vunpack.c.l.b16 %v1935
        %v2127 = vunpack.c.l.b16 %v1936
        %v2128 = vunpack.c.h.b16 %v1936
        %v2129 = vunpack.c.l.b16 %v1937
        %v2130 = vunpack.c.l.b16 %v1938
        %v2131 = vunpack.c.h.b16 %v1938
        %v2132 = vunpack.c.l.b16 %v1939
        %v2133 = vunpack.c.l.b16 %v1940
        %v2134 = vunpack.c.h.b16 %v1940
        %v2135 = vunpack.c.l.b16 %v1941
        %v2136 = vunpack.c.l.b16 %v1942
        %v2137 = vunpack.c.h.b16 %v1942
        %v2138 = vunpack.c.l.b16 %v1943
        %v2139 = vunpack.c.l.b16 %v1944
        %v2140 = vunpack.c.h.b16 %v1944
        %v2141 = vunpack.c.l.b16 %v1945
        %v2142 = vunpack.c.l.b16 %v1946
        %v2143 = vunpack.c.h.b16 %v1946
        %v2144 = vunpack.c.l.b16 %v1947
        %v2145 = vunpack.c.l.b16 %v1948
        %v2146 = vunpack.c.h.b16 %v1948
        %v2147 = vunpack.c.l.b16 %v1949
        %v2148 = vunpack.c.l.b16 %v1950
        %v2149 = vunpack.c.h.b16 %v1950
        %v2150 = vunpack.c.l.b16 %v1951
        %v2151 = vunpack.c.l.b16 %v1952
        %v2152 = vunpack.c.h.b16 %v1952
        %v2153 = vunpack.c.l.b16 %v1953
        %v2154 = vunpack.c.l.b16 %v1954
        %v2155 = vunpack.c.h.b16 %v1954
        %v2156 = vunpack.c.l.b16 %v1955
        %v2157 = vunpack.c.l.b16 %v1956
        %v2158 = vunpack.c.h.b16 %v1956
        %v2159 = vunpack.c.l.b16 %v1957
        %v2160 = vunpack.c.l.b16 %v1958
        %v2161 = vunpack.c.h.b16 %v1958
        %v2162 = vunpack.c.l.b16 %v1959
        %v2163 = vunpack.c.l.b16 %v1960
        %v2164 = vunpack.c.h.b16 %v1960
        %v2165 = vunpack.c.l.b16 %v1961
        %v2166 = vunpack.c.l.b16 %v1962
        %v2167 = vunpack.c.h.b16 %v1962
        %v2168 = vunpack.c.l.b16 %v1963
        %v2169 = vunpack.c.l.b16 %v1964
        %v2170 = vunpack.c.h.b16 %v1964
        %v2171 = vunpack.c.l.b16 %v1965
        %v2172 = vunpack.c.l.b16 %v1966
        %v2173 = vunpack.c.h.b16 %v1966
        %v2174 = vunpack.c.l.b16 %v1967
        %v2175 = vunpack.c.l.b16 %v1968
        %v2176 = vunpack.c.h.b16 %v1968
        %v2177 = vunpack.c.l.b16 %v1969
        %v2178 = vunpack.c.l.b16 %v1970
        %v2179 = vunpack.c.h.b16 %v1970
        %v2180 = vunpack.c.l.b16 %v1971
        %v2181 = vunpack.c.l.b16 %v1972
        %v2182 = vunpack.c.h.b16 %v1972
        %v2183 = vunpack.c.l.b16 %v1973
        %v2184 = vpack.c.b16 %v2073, %v2070
        %v2185 = vpack.c.b16 %v2074, %v2071
        %v2186 = vpack.c.b16 %v2075, %v2072
        %v2187 = vpack.c.b16 %v2079, %v2076
        %v2188 = vpack.c.b16 %v2080, %v2077
        %v2189 = vpack.c.b16 %v2081, %v2078
        %v2190 = vpack.c.b16 %v2085, %v2082
        %v2191 = vpack.c.b16 %v2086, %v2083
        %v2192 = vpack.c.b16 %v2087, %v2084
        %v2193 = vpack.c.b16 %v2091, %v2088
        %v2194 = vpack.c.b16 %v2092, %v2089
        %v2195 = vpack.c.b16 %v2093, %v2090
        %v2196 = vpack.c.b16 %v2097, %v2094
        %v2197 = vpack.c.b16 %v2098, %v2095
        %v2198 = vpack.c.b16 %v2099, %v2096
        %v2199 = vpack.c.b16 %v2103, %v2100
        %v2200 = vpack.c.b16 %v2104, %v2101
        %v2201 = vpack.c.b16 %v2105, %v2102
        %v2202 = vpack.c.b16 %v2109, %v2106
        %v2203 = vpack.c.b16 %v2110, %v2107
        %v2204 = vpack.c.b16 %v2111, %v2108
        %v2205 = vpack.c.b16 %v2115, %v2112
        %v2206 = vpack.c.b16 %v2116, %v2113
        %v2207 = vpack.c.b16 %v2117, %v2114
        %v2208 = vpack.c.b16 %v2121, %v2118
        %v2209 = vpack.c.b16 %v2122, %v2119
        %v2210 = vpack.c.b16 %v2123, %v2120
        %v2211 = vpack.c.b16 %v2127, %v2124
        %v2212 = vpack.c.b16 %v2128, %v2125
        %v2213 = vpack.c.b16 %v2129, %v2126
        %v2214 = vpack.c.b16 %v2133, %v2130
        %v2215 = vpack.c.b16 %v2134, %v2131
        %v2216 = vpack.c.b16 %v2135, %v2132
        %v2217 = vpack.c.b16 %v2139, %v2136
        %v2218 = vpack.c.b16 %v2140, %v2137
        %v2219 = vpack.c.b16 %v2141, %v2138
        %v2220 = vpack.c.b16 %v2145, %v2142
        %v2221 = vpack.c.b16 %v2146, %v2143
        %v2222 = vpack.c.b16 %v2147, %v2144
        %v2223 = vpack.c.b16 %v2151, %v2148
        %v2224 = vpack.c.b16 %v2152, %v2149
        %v2225 = vpack.c.b16 %v2153, %v2150
        %v2226 = vpack.c.b16 %v2157, %v2154
        %v2227 = vpack.c.b16 %v2158, %v2155
        %v2228 = vpack.c.b16 %v2159, %v2156
        %v2229 = vpack.c.b16 %v2163, %v2160
        %v2230 = vpack.c.b16 %v2164, %v2161
        %v2231 = vpack.c.b16 %v2165, %v2162
        %v2232 = vpack.c.b16 %v2169, %v2166
        %v2233 = vpack.c.b16 %v2170, %v2167
        %v2234 = vpack.c.b16 %v2171, %v2168
        %v2235 = vpack.c.b16 %v2175, %v2172
        %v2236 = vpack.c.b16 %v2176, %v2173
        %v2237 = vpack.c.b16 %v2177, %v2174
        %v2238 = vpack.c.b16 %v2181, %v2178
        %v2239 = vpack.c.b16 %v2182, %v2179
        %v2240 = vpack.c.b16 %v2183, %v2180
        %v2296 = vsel %vm1698, %v1977, 0
        %v2299 = vsel %vm1702, %v2238, 0
        %v2302 = vsel %vm1702, %v2239, 0
        %v2305 = vsel %vm1702, %v2240, 0
        %2307 = vmatprep.subr.bf16.mxu0 %v2206
        %2308 = vmatpush1.bf16.msra.mxu0 %v2205
        %2309 = vmatprep.subr.bf16.mxu0 %v2203
        %2310 = vmatpush1.bf16.msra.mxu0 %v2202
        %2311 = vmatprep.subr.bf16.mxu0 %v2200
        %2312 = vmatpush1.bf16.msra.mxu0 %v2199
        %2313 = vmatprep.subr.bf16.mxu0 %v2197
        %2314 = vmatpush1.bf16.msra.mxu0 %v2196
        %2315 = vmatprep.subr.bf16.mxu0 %v2194
        %2316 = vmatpush1.bf16.msra.mxu0 %v2193
        %2317 = vmatprep.subr.bf16.mxu0 %v2191
        %2318 = vmatpush1.bf16.msra.mxu0 %v2190
        %2319 = vmatprep.subr.bf16.mxu0 %v2188
        %2320 = vmatpush1.bf16.msra.mxu0 %v2187
        %2321 = vmatprep.subr.bf16.mxu0 %v2185
        %2322 = vmatpush1.bf16.msra.mxu0 %v2184
        %2323 = vmatprep.subr.bf16.mxu0 %v2230
        %2324 = vmatpush2.bf16.msra.mxu0 %v2229
        %2325 = vmatprep.subr.bf16.mxu0 %v2227
        %2326 = vmatpush2.bf16.msra.mxu0 %v2226
        %2327 = vmatprep.subr.bf16.mxu0 %v2224
        %2328 = vmatpush2.bf16.msra.mxu0 %v2223
        %2329 = vmatprep.subr.bf16.mxu0 %v2221
        %2330 = vmatpush2.bf16.msra.mxu0 %v2220
        %2331 = vmatprep.subr.bf16.mxu0 %v2218
        %2332 = vmatpush2.bf16.msra.mxu0 %v2217
        %2333 = vmatprep.subr.bf16.mxu0 %v2215
        %2334 = vmatpush2.bf16.msra.mxu0 %v2214
        %2335 = vmatprep.subr.bf16.mxu0 %v2212
        %2336 = vmatpush2.bf16.msra.mxu0 %v2211
        %2337 = vmatprep.subr.bf16.mxu0 %v2209
        %2338 = vmatpush2.bf16.msra.mxu0 %v2208
        %2339 = vmatprep.mubr.bf16.mxu0 %v1976
        %2340 = vmatmul.mubr.bf16.gmra.mxu0 %v1975
        %v2341 = vpop.f32.mrf.mxu0
        %v2342 = vadd.f32 %v1982, %v2341
        %v2343 = vpop.f32.mrf.mxu0
        %v2344 = vadd.f32 %v1986, %v2343
        %v2345 = vpop.f32.mrf.mxu0
        %v2346 = vpop.f32.mrf.mxu0
        %2347 = vdwg.mxu0
        %2348 = vmatprep.subr.bf16.mxu0 0
        %2349 = vmatpush1.bf16.msra.mxu0 0
        %2350 = vmatprep.subr.bf16.mxu0 0
        %2351 = vmatpush1.bf16.msra.mxu0 0
        %2352 = vmatprep.subr.bf16.mxu0 0
        %2353 = vmatpush1.bf16.msra.mxu0 0
        %2354 = vmatprep.subr.bf16.mxu0 0
        %2355 = vmatpush1.bf16.msra.mxu0 0
        %2356 = vmatprep.subr.bf16.mxu0 0
        %2357 = vmatpush1.bf16.msra.mxu0 0
        %2358 = vmatprep.subr.bf16.mxu0 %v2302
        %2359 = vmatpush1.bf16.msra.mxu0 %v2299
        %2360 = vmatprep.subr.bf16.mxu0 %v2236
        %2361 = vmatpush1.bf16.msra.mxu0 %v2235
        %2362 = vmatprep.subr.bf16.mxu0 %v2233
        %2363 = vmatpush1.bf16.msra.mxu0 %v2232
        %2364 = vmatprep.subr.bf16.mxu0 0
        %2365 = vmatpush2.bf16.msra.mxu0 0
        %2366 = vmatprep.subr.bf16.mxu0 0
        %2367 = vmatpush2.bf16.msra.mxu0 0
        %2368 = vmatprep.subr.bf16.mxu0 0
        %2369 = vmatpush2.bf16.msra.mxu0 0
        %2370 = vmatprep.subr.bf16.mxu0 0
        %2371 = vmatpush2.bf16.msra.mxu0 0
        %2372 = vmatprep.subr.bf16.mxu0 0
        %2373 = vmatpush2.bf16.msra.mxu0 0
        %2374 = vmatprep.subr.bf16.mxu0 0
        %2375 = vmatpush2.bf16.msra.mxu0 0
        %2376 = vmatprep.subr.bf16.mxu0 0
        %2377 = vmatpush2.bf16.msra.mxu0 0
        %2378 = vmatprep.subr.bf16.mxu0 0
        %2379 = vmatpush2.bf16.msra.mxu0 0
        %2380 = vmatprep.mubr.bf16.mxu0 0
        %2381 = vmatmul.mubr.bf16.gmra.mxu0 %v2296
        %v2382 = vpop.f32.mrf.mxu0
        %v2383 = vadd.f32 %v2342, %v2382
        %v2384 = vpop.f32.mrf.mxu0
        %v2385 = vadd.f32 %v2344, %v2384
        %v2386 = vpop.f32.mrf.mxu0
        %v2387 = vpop.f32.mrf.mxu0
        %2388 = vdwg.mxu0
        %2389 = vmatprep.subr.bf16.mxu0 0
        %2390 = vmatpush1.bf16.msra.mxu0 %v2207
        %2391 = vmatprep.subr.bf16.mxu0 0
        %2392 = vmatpush1.bf16.msra.mxu0 %v2204
        %2393 = vmatprep.subr.bf16.mxu0 0
        %2394 = vmatpush1.bf16.msra.mxu0 %v2201
        %2395 = vmatprep.subr.bf16.mxu0 0
        %2396 = vmatpush1.bf16.msra.mxu0 %v2198
        %2397 = vmatprep.subr.bf16.mxu0 0
        %2398 = vmatpush1.bf16.msra.mxu0 %v2195
        %2399 = vmatprep.subr.bf16.mxu0 0
        %2400 = vmatpush1.bf16.msra.mxu0 %v2192
        %2401 = vmatprep.subr.bf16.mxu0 0
        %2402 = vmatpush1.bf16.msra.mxu0 %v2189
        %2403 = vmatprep.subr.bf16.mxu0 0
        %2404 = vmatpush1.bf16.msra.mxu0 %v2186
        %2405 = vmatprep.subr.bf16.mxu0 0
        %2406 = vmatpush2.bf16.msra.mxu0 %v2231
        %2407 = vmatprep.subr.bf16.mxu0 0
        %2408 = vmatpush2.bf16.msra.mxu0 %v2228
        %2409 = vmatprep.subr.bf16.mxu0 0
        %2410 = vmatpush2.bf16.msra.mxu0 %v2225
        %2411 = vmatprep.subr.bf16.mxu0 0
        %2412 = vmatpush2.bf16.msra.mxu0 %v2222
        %2413 = vmatprep.subr.bf16.mxu0 0
        %2414 = vmatpush2.bf16.msra.mxu0 %v2219
        %2415 = vmatprep.subr.bf16.mxu0 0
        %2416 = vmatpush2.bf16.msra.mxu0 %v2216
        %2417 = vmatprep.subr.bf16.mxu0 0
        %2418 = vmatpush2.bf16.msra.mxu0 %v2213
        %2419 = vmatprep.subr.bf16.mxu0 0
        %2420 = vmatpush2.bf16.msra.mxu0 %v2210
        %2421 = vmatprep.mubr.bf16.mxu0 %v1976
        %2422 = vmatmul.mubr.bf16.gmra.mxu0 %v1975
        %v2423 = vpop.f32.mrf.mxu0
        %v2424 = vadd.f32 %v1990, %v2423
        %v2425 = vpop.f32.mrf.mxu0
        %v2426 = vpop.f32.mrf.mxu0
        %v2427 = vpop.f32.mrf.mxu0
        %2428 = vdwg.mxu0
        %2429 = vmatprep.subr.bf16.mxu0 0
        %2430 = vmatpush1.bf16.msra.mxu0 0
        %2431 = vmatprep.subr.bf16.mxu0 0
        %2432 = vmatpush1.bf16.msra.mxu0 0
        %2433 = vmatprep.subr.bf16.mxu0 0
        %2434 = vmatpush1.bf16.msra.mxu0 0
        %2435 = vmatprep.subr.bf16.mxu0 0
        %2436 = vmatpush1.bf16.msra.mxu0 0
        %2437 = vmatprep.subr.bf16.mxu0 0
        %2438 = vmatpush1.bf16.msra.mxu0 0
        %2439 = vmatprep.subr.bf16.mxu0 0
        %2440 = vmatpush1.bf16.msra.mxu0 %v2305
        %2441 = vmatprep.subr.bf16.mxu0 0
        %2442 = vmatpush1.bf16.msra.mxu0 %v2237
        %2443 = vmatprep.subr.bf16.mxu0 0
        %2444 = vmatpush1.bf16.msra.mxu0 %v2234
        %2445 = vmatprep.subr.bf16.mxu0 0
        %2446 = vmatpush2.bf16.msra.mxu0 0
        %2447 = vmatprep.subr.bf16.mxu0 0
        %2448 = vmatpush2.bf16.msra.mxu0 0
        %2449 = vmatprep.subr.bf16.mxu0 0
        %2450 = vmatpush2.bf16.msra.mxu0 0
        %2451 = vmatprep.subr.bf16.mxu0 0
        %2452 = vmatpush2.bf16.msra.mxu0 0
        %2453 = vmatprep.subr.bf16.mxu0 0
        %2454 = vmatpush2.bf16.msra.mxu0 0
        %2455 = vmatprep.subr.bf16.mxu0 0
        %2456 = vmatpush2.bf16.msra.mxu0 0
        %2457 = vmatprep.subr.bf16.mxu0 0
        %2458 = vmatpush2.bf16.msra.mxu0 0
        %2459 = vmatprep.subr.bf16.mxu0 0
        %2460 = vmatpush2.bf16.msra.mxu0 0
        %2461 = vmatprep.mubr.bf16.mxu0 0
        %2462 = vmatmul.mubr.bf16.gmra.mxu0 %v2296
        %v2463 = vpop.f32.mrf.mxu0
        %v2464 = vadd.f32 %v2424, %v2463
        %v2465 = vpop.f32.mrf.mxu0
        %v2466 = vpop.f32.mrf.mxu0
        %v2467 = vpop.f32.mrf.mxu0
        %2468 = vdwg.mxu0
        %v2469 = vmin.f32 %v2383, 0.0
        %v2470 = vmin.f32 %v2385, 0.0
        %v2471 = vmin.f32 %v2464, 0.0
        %vm2472 = vcmp.gt.f32.partialorder %v2383, 0.0
        %vm2473 = vcmp.gt.f32.partialorder %v2385, 0.0
        %vm2474 = vcmp.gt.f32.partialorder %v2464, 0.0
        %v2475 = vmul.f32 %v2469, 1.442695
        %v2476 = vpow.pop %v2475
        %v2477 = vmul.f32 %v2470, 1.442695
        %v2478 = vpow.pop %v2477
        %v2479 = vmul.f32 %v2471, 1.442695
        %v2480 = vpow.pop %v2479
        %v2481 = vsub.f32 %v2476, 1.0
        %v2482 = vsub.f32 %v2478, 1.0
        %v2483 = vsub.f32 %v2480, 1.0
        %v2484 = vmul.f32 %v2481, 1.6732632
        %v2485 = vmul.f32 %v2482, 1.6732632
        %v2486 = vmul.f32 %v2483, 1.6732632
        %v2487 = vsel %vm2472, %v2383, %v2484
        %v2488 = vsel %vm2473, %v2385, %v2485
        %v2489 = vsel %vm2474, %v2464, %v2486
        %v2490 = vmul.f32 %v2487, 1.050701
        %v2491 = vmul.f32 %v2488, 1.050701
        %v2492 = vmul.f32 %v2489, 1.050701
        %v2493 = vld [vmem:[#allocation3] sm:$0xff]
        %v2494 = vld [vmem:[#allocation3 + $0x8] sm:$0xf]
        %v2495 = vld [vmem:[#allocation3 + $0xc] sm:$0xff]
        %v2496 = vld [vmem:[#allocation3 + $0x14] sm:$0xf]
        %v2497 = vld [vmem:[#allocation3 + $0x18] sm:$0xff]
        %v2498 = vld [vmem:[#allocation3 + $0x20] sm:$0xf]
        %v2499 = vld [vmem:[#allocation3 + $0x24] sm:$0xff]
        %v2500 = vld [vmem:[#allocation3 + $0x2c] sm:$0xf]
        %v2501 = vld [vmem:[#allocation3 + $0x30] sm:$0xff]
        %v2502 = vld [vmem:[#allocation3 + $0x38] sm:$0xf]
        %v2503 = vld [vmem:[#allocation3 + $0x3c] sm:$0xff]
        %v2504 = vld [vmem:[#allocation3 + $0x44] sm:$0xf]
        %v2505 = vld [vmem:[#allocation3 + $0x48] sm:$0xff]
        %v2506 = vld [vmem:[#allocation3 + $0x50] sm:$0xf]
        %v2507 = vld [vmem:[#allocation3 + $0x54] sm:$0xff]
        %v2508 = vld [vmem:[#allocation3 + $0x5c] sm:$0xf]
        %v2509 = vld [vmem:[#allocation3 + $0x60] sm:$0xff]
        %v2510 = vld [vmem:[#allocation3 + $0x68] sm:$0xf]
        %v2511 = vld [vmem:[#allocation3 + $0x6c] sm:$0xff]
        %v2512 = vld [vmem:[#allocation3 + $0x74] sm:$0xf]
        %v2513 = vld [vmem:[#allocation3 + $0x78] sm:$0xff]
        %v2514 = vld [vmem:[#allocation3 + $0x80] sm:$0xf]
        %v2515 = vld [vmem:[#allocation3 + $0x84] sm:$0xff]
        %v2516 = vld [vmem:[#allocation3 + $0x8c] sm:$0xf]
        %v2517 = vld [vmem:[#allocation3 + $0x90] sm:$0xff]
        %v2518 = vld [vmem:[#allocation3 + $0x98] sm:$0xf]
        %v2519 = vld [vmem:[#allocation3 + $0x9c] sm:$0xff]
        %v2520 = vld [vmem:[#allocation3 + $0xa4] sm:$0xf]
        %v2521 = vld [vmem:[#allocation3 + $0xa8] sm:$0xff]
        %v2522 = vld [vmem:[#allocation3 + $0xb0] sm:$0xf]
        %v2523 = vld [vmem:[#allocation3 + $0xb4] sm:$0xff]
        %v2524 = vld [vmem:[#allocation3 + $0xbc] sm:$0xf]
        %v2525 = vld [vmem:[#allocation3 + $0xc0] sm:$0xff]
        %v2526 = vld [vmem:[#allocation3 + $0xc8] sm:$0xf]
        %v2527 = vld [vmem:[#allocation3 + $0xcc] sm:$0xff]
        %v2528 = vld [vmem:[#allocation3 + $0xd4] sm:$0xf]
        %v2529 = vld [vmem:[#allocation3 + $0xd8] sm:$0xff]
        %v2530 = vld [vmem:[#allocation3 + $0xe0] sm:$0xf]
        %v2531 = vld [vmem:[#allocation3 + $0xe4] sm:$0xff]
        %v2532 = vld [vmem:[#allocation3 + $0xec] sm:$0xf]
        %v2533 = vld [vmem:[#allocation3 + $0xf0] sm:$0xff]
        %v2534 = vld [vmem:[#allocation3 + $0xf8] sm:$0xf]
        %v2535 = vld [vmem:[#allocation3 + $0xfc] sm:$0xff]
        %v2536 = vld [vmem:[#allocation3 + $0x104] sm:$0xf]
        %v2537 = vld [vmem:[#allocation3 + $0x108] sm:$0xff]
        %v2538 = vld [vmem:[#allocation3 + $0x110] sm:$0xf]
        %v2539 = vld [vmem:[#allocation3 + $0x114] sm:$0xff]
        %v2540 = vld [vmem:[#allocation3 + $0x11c] sm:$0xf]
        %v2541 = vld [vmem:[#allocation3 + $0x120] sm:$0xff]
        %v2542 = vld [vmem:[#allocation3 + $0x128] sm:$0xf]
        %v2543 = vld [vmem:[#allocation3 + $0x12c] sm:$0xff]
        %v2544 = vld [vmem:[#allocation3 + $0x134] sm:$0xf]
        %v2545 = vld [vmem:[#allocation3 + $0x138] sm:$0xff]
        %v2546 = vld [vmem:[#allocation3 + $0x140] sm:$0xf]
        %v2547 = vld [vmem:[#allocation3 + $0x144] sm:$0xff]
        %v2548 = vld [vmem:[#allocation3 + $0x14c] sm:$0xf]
        %v2549 = vld [vmem:[#allocation3 + $0x150] sm:$0xff]
        %v2550 = vld [vmem:[#allocation3 + $0x158] sm:$0xf]
        %v2551 = vld [vmem:[#allocation3 + $0x15c] sm:$0xff]
        %v2552 = vld [vmem:[#allocation3 + $0x164] sm:$0xf]
        %v2553 = vld [vmem:[#allocation3 + $0x168] sm:$0xff]
        %v2554 = vld [vmem:[#allocation3 + $0x170] sm:$0xf]
        %v2555 = vld [vmem:[#allocation3 + $0x174] sm:$0xff]
        %v2556 = vld [vmem:[#allocation3 + $0x17c] sm:$0xf]
        %v2557 = vld [vmem:[#allocation3 + $0x180] sm:$0xff]
        %v2558 = vld [vmem:[#allocation3 + $0x188] sm:$0xf]
        %v2559 = vld [vmem:[#allocation3 + $0x18c] sm:$0xff]
        %v2560 = vld [vmem:[#allocation3 + $0x194] sm:$0xf]
        %v2561 = vld [vmem:[#allocation3 + $0x198] sm:$0xff]
        %v2562 = vld [vmem:[#allocation3 + $0x1a0] sm:$0xf]
        %v2563 = vld [vmem:[#allocation3 + $0x1a4] sm:$0xff]
        %v2564 = vld [vmem:[#allocation3 + $0x1ac] sm:$0xf]
        %v2565 = vld [vmem:[#allocation3 + $0x1b0] sm:$0xff]
        %v2566 = vld [vmem:[#allocation3 + $0x1b8] sm:$0xf]
        %v2567 = vld [vmem:[#allocation3 + $0x1bc] sm:$0x33]
        %v2568 = vld [vmem:[#allocation3 + $0x1c4] sm:$0x3]
        %v2569 = vld [vmem:[%s8] sm:$0x7]
        %v2570 = vpack.c.bf16 %v2490, %v2490
        %v2571 = vpack.c.bf16 %v2491, %v2491
        %v2572 = vpack.c.bf16 %v2492, %v2492
        %v2574 = vlaneseq
        %v2575 = vshrl.u32 %v2574, 7
        %v2576 = vsub.s32 0, %v2575
        %v2577 = vrot.slane %v2569, %v2576
        %v2578 = vlaneseq
        %v2579 = vshrl.u32 %v2578, 7
        %v2580 = vsub.s32 1, %v2579
        %v2581 = vrot.slane %v2569, %v2580
        %v2582 = vlaneseq
        %v2583 = vshrl.u32 %v2582, 7
        %v2584 = vsub.s32 2, %v2583
        %v2585 = vrot.slane %v2569, %v2584
        %v2665 = vunpack.c.l.b16 %v2493
        %v2666 = vunpack.c.h.b16 %v2493
        %v2667 = vunpack.c.l.b16 %v2494
        %v2668 = vunpack.c.l.b16 %v2495
        %v2669 = vunpack.c.h.b16 %v2495
        %v2670 = vunpack.c.l.b16 %v2496
        %v2671 = vunpack.c.l.b16 %v2497
        %v2672 = vunpack.c.h.b16 %v2497
        %v2673 = vunpack.c.l.b16 %v2498
        %v2674 = vunpack.c.l.b16 %v2499
        %v2675 = vunpack.c.h.b16 %v2499
        %v2676 = vunpack.c.l.b16 %v2500
        %v2677 = vunpack.c.l.b16 %v2501
        %v2678 = vunpack.c.h.b16 %v2501
        %v2679 = vunpack.c.l.b16 %v2502
        %v2680 = vunpack.c.l.b16 %v2503
        %v2681 = vunpack.c.h.b16 %v2503
        %v2682 = vunpack.c.l.b16 %v2504
        %v2683 = vunpack.c.l.b16 %v2505
        %v2684 = vunpack.c.h.b16 %v2505
        %v2685 = vunpack.c.l.b16 %v2506
        %v2686 = vunpack.c.l.b16 %v2507
        %v2687 = vunpack.c.h.b16 %v2507
        %v2688 = vunpack.c.l.b16 %v2508
        %v2689 = vunpack.c.l.b16 %v2509
        %v2690 = vunpack.c.h.b16 %v2509
        %v2691 = vunpack.c.l.b16 %v2510
        %v2692 = vunpack.c.l.b16 %v2511
        %v2693 = vunpack.c.h.b16 %v2511
        %v2694 = vunpack.c.l.b16 %v2512
        %v2695 = vunpack.c.l.b16 %v2513
        %v2696 = vunpack.c.h.b16 %v2513
        %v2697 = vunpack.c.l.b16 %v2514
        %v2698 = vunpack.c.l.b16 %v2515
        %v2699 = vunpack.c.h.b16 %v2515
        %v2700 = vunpack.c.l.b16 %v2516
        %v2701 = vunpack.c.l.b16 %v2517
        %v2702 = vunpack.c.h.b16 %v2517
        %v2703 = vunpack.c.l.b16 %v2518
        %v2704 = vunpack.c.l.b16 %v2519
        %v2705 = vunpack.c.h.b16 %v2519
        %v2706 = vunpack.c.l.b16 %v2520
        %v2707 = vunpack.c.l.b16 %v2521
        %v2708 = vunpack.c.h.b16 %v2521
        %v2709 = vunpack.c.l.b16 %v2522
        %v2710 = vunpack.c.l.b16 %v2523
        %v2711 = vunpack.c.h.b16 %v2523
        %v2712 = vunpack.c.l.b16 %v2524
        %v2713 = vunpack.c.l.b16 %v2525
        %v2714 = vunpack.c.h.b16 %v2525
        %v2715 = vunpack.c.l.b16 %v2526
        %v2716 = vunpack.c.l.b16 %v2527
        %v2717 = vunpack.c.h.b16 %v2527
        %v2718 = vunpack.c.l.b16 %v2528
        %v2719 = vunpack.c.l.b16 %v2529
        %v2720 = vunpack.c.h.b16 %v2529
        %v2721 = vunpack.c.l.b16 %v2530
        %v2722 = vunpack.c.l.b16 %v2531
        %v2723 = vunpack.c.h.b16 %v2531
        %v2724 = vunpack.c.l.b16 %v2532
        %v2725 = vunpack.c.l.b16 %v2533
        %v2726 = vunpack.c.h.b16 %v2533
        %v2727 = vunpack.c.l.b16 %v2534
        %v2728 = vunpack.c.l.b16 %v2535
        %v2729 = vunpack.c.h.b16 %v2535
        %v2730 = vunpack.c.l.b16 %v2536
        %v2731 = vunpack.c.l.b16 %v2537
        %v2732 = vunpack.c.h.b16 %v2537
        %v2733 = vunpack.c.l.b16 %v2538
        %v2734 = vunpack.c.l.b16 %v2539
        %v2735 = vunpack.c.h.b16 %v2539
        %v2736 = vunpack.c.l.b16 %v2540
        %v2737 = vunpack.c.l.b16 %v2541
        %v2738 = vunpack.c.h.b16 %v2541
        %v2739 = vunpack.c.l.b16 %v2542
        %v2740 = vunpack.c.l.b16 %v2543
        %v2741 = vunpack.c.h.b16 %v2543
        %v2742 = vunpack.c.l.b16 %v2544
        %v2743 = vunpack.c.l.b16 %v2545
        %v2744 = vunpack.c.h.b16 %v2545
        %v2745 = vunpack.c.l.b16 %v2546
        %v2746 = vunpack.c.l.b16 %v2547
        %v2747 = vunpack.c.h.b16 %v2547
        %v2748 = vunpack.c.l.b16 %v2548
        %v2749 = vunpack.c.l.b16 %v2549
        %v2750 = vunpack.c.h.b16 %v2549
        %v2751 = vunpack.c.l.b16 %v2550
        %v2752 = vunpack.c.l.b16 %v2551
        %v2753 = vunpack.c.h.b16 %v2551
        %v2754 = vunpack.c.l.b16 %v2552
        %v2755 = vunpack.c.l.b16 %v2553
        %v2756 = vunpack.c.h.b16 %v2553
        %v2757 = vunpack.c.l.b16 %v2554
        %v2758 = vunpack.c.l.b16 %v2555
        %v2759 = vunpack.c.h.b16 %v2555
        %v2760 = vunpack.c.l.b16 %v2556
        %v2761 = vunpack.c.l.b16 %v2557
        %v2762 = vunpack.c.h.b16 %v2557
        %v2763 = vunpack.c.l.b16 %v2558
        %v2764 = vunpack.c.l.b16 %v2559
        %v2765 = vunpack.c.h.b16 %v2559
        %v2766 = vunpack.c.l.b16 %v2560
        %v2767 = vunpack.c.l.b16 %v2561
        %v2768 = vunpack.c.h.b16 %v2561
        %v2769 = vunpack.c.l.b16 %v2562
        %v2770 = vunpack.c.l.b16 %v2563
        %v2771 = vunpack.c.h.b16 %v2563
        %v2772 = vunpack.c.l.b16 %v2564
        %v2773 = vunpack.c.l.b16 %v2565
        %v2774 = vunpack.c.h.b16 %v2565
        %v2775 = vunpack.c.l.b16 %v2566
        %v2776 = vunpack.c.l.b16 %v2567
        %v2777 = vunpack.c.h.b16 %v2567
        %v2778 = vunpack.c.l.b16 %v2568
        %v2779 = vpack.c.b16 %v2668, %v2665
        %v2780 = vpack.c.b16 %v2669, %v2666
        %v2781 = vpack.c.b16 %v2670, %v2667
        %v2782 = vpack.c.b16 %v2674, %v2671
        %v2783 = vpack.c.b16 %v2675, %v2672
        %v2784 = vpack.c.b16 %v2676, %v2673
        %v2785 = vpack.c.b16 %v2680, %v2677
        %v2786 = vpack.c.b16 %v2681, %v2678
        %v2787 = vpack.c.b16 %v2682, %v2679
        %v2788 = vpack.c.b16 %v2686, %v2683
        %v2789 = vpack.c.b16 %v2687, %v2684
        %v2790 = vpack.c.b16 %v2688, %v2685
        %v2791 = vpack.c.b16 %v2692, %v2689
        %v2792 = vpack.c.b16 %v2693, %v2690
        %v2793 = vpack.c.b16 %v2694, %v2691
        %v2794 = vpack.c.b16 %v2698, %v2695
        %v2795 = vpack.c.b16 %v2699, %v2696
        %v2796 = vpack.c.b16 %v2700, %v2697
        %v2797 = vpack.c.b16 %v2704, %v2701
        %v2798 = vpack.c.b16 %v2705, %v2702
        %v2799 = vpack.c.b16 %v2706, %v2703
        %v2800 = vpack.c.b16 %v2710, %v2707
        %v2801 = vpack.c.b16 %v2711, %v2708
        %v2802 = vpack.c.b16 %v2712, %v2709
        %v2803 = vpack.c.b16 %v2716, %v2713
        %v2804 = vpack.c.b16 %v2717, %v2714
        %v2805 = vpack.c.b16 %v2718, %v2715
        %v2806 = vpack.c.b16 %v2722, %v2719
        %v2807 = vpack.c.b16 %v2723, %v2720
        %v2808 = vpack.c.b16 %v2724, %v2721
        %v2809 = vpack.c.b16 %v2728, %v2725
        %v2810 = vpack.c.b16 %v2729, %v2726
        %v2811 = vpack.c.b16 %v2730, %v2727
        %v2812 = vpack.c.b16 %v2734, %v2731
        %v2813 = vpack.c.b16 %v2735, %v2732
        %v2814 = vpack.c.b16 %v2736, %v2733
        %v2815 = vpack.c.b16 %v2740, %v2737
        %v2816 = vpack.c.b16 %v2741, %v2738
        %v2817 = vpack.c.b16 %v2742, %v2739
        %v2818 = vpack.c.b16 %v2746, %v2743
        %v2819 = vpack.c.b16 %v2747, %v2744
        %v2820 = vpack.c.b16 %v2748, %v2745
        %v2821 = vpack.c.b16 %v2752, %v2749
        %v2822 = vpack.c.b16 %v2753, %v2750
        %v2823 = vpack.c.b16 %v2754, %v2751
        %v2824 = vpack.c.b16 %v2758, %v2755
        %v2825 = vpack.c.b16 %v2759, %v2756
        %v2826 = vpack.c.b16 %v2760, %v2757
        %v2827 = vpack.c.b16 %v2764, %v2761
        %v2828 = vpack.c.b16 %v2765, %v2762
        %v2829 = vpack.c.b16 %v2766, %v2763
        %v2830 = vpack.c.b16 %v2770, %v2767
        %v2831 = vpack.c.b16 %v2771, %v2768
        %v2832 = vpack.c.b16 %v2772, %v2769
        %v2833 = vpack.c.b16 %v2776, %v2773
        %v2834 = vpack.c.b16 %v2777, %v2774
        %v2835 = vpack.c.b16 %v2778, %v2775
        %v2891 = vsel %vm1698, %v2572, 0
        %v2894 = vsel %vm1702, %v2833, 0
        %v2897 = vsel %vm1702, %v2834, 0
        %v2900 = vsel %vm1702, %v2835, 0
        %2902 = vmatprep.subr.bf16.mxu0 %v2801
        %2903 = vmatpush1.bf16.msra.mxu0 %v2800
        %2904 = vmatprep.subr.bf16.mxu0 %v2798
        %2905 = vmatpush1.bf16.msra.mxu0 %v2797
        %2906 = vmatprep.subr.bf16.mxu0 %v2795
        %2907 = vmatpush1.bf16.msra.mxu0 %v2794
        %2908 = vmatprep.subr.bf16.mxu0 %v2792
        %2909 = vmatpush1.bf16.msra.mxu0 %v2791
        %2910 = vmatprep.subr.bf16.mxu0 %v2789
        %2911 = vmatpush1.bf16.msra.mxu0 %v2788
        %2912 = vmatprep.subr.bf16.mxu0 %v2786
        %2913 = vmatpush1.bf16.msra.mxu0 %v2785
        %2914 = vmatprep.subr.bf16.mxu0 %v2783
        %2915 = vmatpush1.bf16.msra.mxu0 %v2782
        %2916 = vmatprep.subr.bf16.mxu0 %v2780
        %2917 = vmatpush1.bf16.msra.mxu0 %v2779
        %2918 = vmatprep.subr.bf16.mxu0 %v2825
        %2919 = vmatpush2.bf16.msra.mxu0 %v2824
        %2920 = vmatprep.subr.bf16.mxu0 %v2822
        %2921 = vmatpush2.bf16.msra.mxu0 %v2821
        %2922 = vmatprep.subr.bf16.mxu0 %v2819
        %2923 = vmatpush2.bf16.msra.mxu0 %v2818
        %2924 = vmatprep.subr.bf16.mxu0 %v2816
        %2925 = vmatpush2.bf16.msra.mxu0 %v2815
        %2926 = vmatprep.subr.bf16.mxu0 %v2813
        %2927 = vmatpush2.bf16.msra.mxu0 %v2812
        %2928 = vmatprep.subr.bf16.mxu0 %v2810
        %2929 = vmatpush2.bf16.msra.mxu0 %v2809
        %2930 = vmatprep.subr.bf16.mxu0 %v2807
        %2931 = vmatpush2.bf16.msra.mxu0 %v2806
        %2932 = vmatprep.subr.bf16.mxu0 %v2804
        %2933 = vmatpush2.bf16.msra.mxu0 %v2803
        %2934 = vmatprep.mubr.bf16.mxu0 %v2571
        %2935 = vmatmul.mubr.bf16.gmra.mxu0 %v2570
        %v2936 = vpop.f32.mrf.mxu0
        %v2937 = vadd.f32 %v2577, %v2936
        %v2938 = vpop.f32.mrf.mxu0
        %v2939 = vadd.f32 %v2581, %v2938
        %v2940 = vpop.f32.mrf.mxu0
        %v2941 = vpop.f32.mrf.mxu0
        %2942 = vdwg.mxu0
        %2943 = vmatprep.subr.bf16.mxu0 0
        %2944 = vmatpush1.bf16.msra.mxu0 0
        %2945 = vmatprep.subr.bf16.mxu0 0
        %2946 = vmatpush1.bf16.msra.mxu0 0
        %2947 = vmatprep.subr.bf16.mxu0 0
        %2948 = vmatpush1.bf16.msra.mxu0 0
        %2949 = vmatprep.subr.bf16.mxu0 0
        %2950 = vmatpush1.bf16.msra.mxu0 0
        %2951 = vmatprep.subr.bf16.mxu0 0
        %2952 = vmatpush1.bf16.msra.mxu0 0
        %2953 = vmatprep.subr.bf16.mxu0 %v2897
        %2954 = vmatpush1.bf16.msra.mxu0 %v2894
        %2955 = vmatprep.subr.bf16.mxu0 %v2831
        %2956 = vmatpush1.bf16.msra.mxu0 %v2830
        %2957 = vmatprep.subr.bf16.mxu0 %v2828
        %2958 = vmatpush1.bf16.msra.mxu0 %v2827
        %2959 = vmatprep.subr.bf16.mxu0 0
        %2960 = vmatpush2.bf16.msra.mxu0 0
        %2961 = vmatprep.subr.bf16.mxu0 0
        %2962 = vmatpush2.bf16.msra.mxu0 0
        %2963 = vmatprep.subr.bf16.mxu0 0
        %2964 = vmatpush2.bf16.msra.mxu0 0
        %2965 = vmatprep.subr.bf16.mxu0 0
        %2966 = vmatpush2.bf16.msra.mxu0 0
        %2967 = vmatprep.subr.bf16.mxu0 0
        %2968 = vmatpush2.bf16.msra.mxu0 0
        %2969 = vmatprep.subr.bf16.mxu0 0
        %2970 = vmatpush2.bf16.msra.mxu0 0
        %2971 = vmatprep.subr.bf16.mxu0 0
        %2972 = vmatpush2.bf16.msra.mxu0 0
        %2973 = vmatprep.subr.bf16.mxu0 0
        %2974 = vmatpush2.bf16.msra.mxu0 0
        %2975 = vmatprep.mubr.bf16.mxu0 0
        %2976 = vmatmul.mubr.bf16.gmra.mxu0 %v2891
        %v2977 = vpop.f32.mrf.mxu0
        %v2978 = vadd.f32 %v2937, %v2977
        %v2979 = vpop.f32.mrf.mxu0
        %v2980 = vadd.f32 %v2939, %v2979
        %v2981 = vpop.f32.mrf.mxu0
        %v2982 = vpop.f32.mrf.mxu0
        %2983 = vdwg.mxu0
        %2984 = vmatprep.subr.bf16.mxu0 0
        %2985 = vmatpush1.bf16.msra.mxu0 %v2802
        %2986 = vmatprep.subr.bf16.mxu0 0
        %2987 = vmatpush1.bf16.msra.mxu0 %v2799
        %2988 = vmatprep.subr.bf16.mxu0 0
        %2989 = vmatpush1.bf16.msra.mxu0 %v2796
        %2990 = vmatprep.subr.bf16.mxu0 0
        %2991 = vmatpush1.bf16.msra.mxu0 %v2793
        %2992 = vmatprep.subr.bf16.mxu0 0
        %2993 = vmatpush1.bf16.msra.mxu0 %v2790
        %2994 = vmatprep.subr.bf16.mxu0 0
        %2995 = vmatpush1.bf16.msra.mxu0 %v2787
        %2996 = vmatprep.subr.bf16.mxu0 0
        %2997 = vmatpush1.bf16.msra.mxu0 %v2784
        %2998 = vmatprep.subr.bf16.mxu0 0
        %2999 = vmatpush1.bf16.msra.mxu0 %v2781
        %3000 = vmatprep.subr.bf16.mxu0 0
        %3001 = vmatpush2.bf16.msra.mxu0 %v2826
        %3002 = vmatprep.subr.bf16.mxu0 0
        %3003 = vmatpush2.bf16.msra.mxu0 %v2823
        %3004 = vmatprep.subr.bf16.mxu0 0
        %3005 = vmatpush2.bf16.msra.mxu0 %v2820
        %3006 = vmatprep.subr.bf16.mxu0 0
        %3007 = vmatpush2.bf16.msra.mxu0 %v2817
        %3008 = vmatprep.subr.bf16.mxu0 0
        %3009 = vmatpush2.bf16.msra.mxu0 %v2814
        %3010 = vmatprep.subr.bf16.mxu0 0
        %3011 = vmatpush2.bf16.msra.mxu0 %v2811
        %3012 = vmatprep.subr.bf16.mxu0 0
        %3013 = vmatpush2.bf16.msra.mxu0 %v2808
        %3014 = vmatprep.subr.bf16.mxu0 0
        %3015 = vmatpush2.bf16.msra.mxu0 %v2805
        %3016 = vmatprep.mubr.bf16.mxu0 %v2571
        %3017 = vmatmul.mubr.bf16.gmra.mxu0 %v2570
        %v3018 = vpop.f32.mrf.mxu0
        %v3019 = vadd.f32 %v2585, %v3018
        %v3020 = vpop.f32.mrf.mxu0
        %v3021 = vpop.f32.mrf.mxu0
        %v3022 = vpop.f32.mrf.mxu0
        %3023 = vdwg.mxu0
        %3024 = vmatprep.subr.bf16.mxu0 0
        %3025 = vmatpush1.bf16.msra.mxu0 0
        %3026 = vmatprep.subr.bf16.mxu0 0
        %3027 = vmatpush1.bf16.msra.mxu0 0
        %3028 = vmatprep.subr.bf16.mxu0 0
        %3029 = vmatpush1.bf16.msra.mxu0 0
        %3030 = vmatprep.subr.bf16.mxu0 0
        %3031 = vmatpush1.bf16.msra.mxu0 0
        %3032 = vmatprep.subr.bf16.mxu0 0
        %3033 = vmatpush1.bf16.msra.mxu0 0
        %3034 = vmatprep.subr.bf16.mxu0 0
        %3035 = vmatpush1.bf16.msra.mxu0 %v2900
        %3036 = vmatprep.subr.bf16.mxu0 0
        %3037 = vmatpush1.bf16.msra.mxu0 %v2832
        %3038 = vmatprep.subr.bf16.mxu0 0
        %3039 = vmatpush1.bf16.msra.mxu0 %v2829
        %3040 = vmatprep.subr.bf16.mxu0 0
        %3041 = vmatpush2.bf16.msra.mxu0 0
        %3042 = vmatprep.subr.bf16.mxu0 0
        %3043 = vmatpush2.bf16.msra.mxu0 0
        %3044 = vmatprep.subr.bf16.mxu0 0
        %3045 = vmatpush2.bf16.msra.mxu0 0
        %3046 = vmatprep.subr.bf16.mxu0 0
        %3047 = vmatpush2.bf16.msra.mxu0 0
        %3048 = vmatprep.subr.bf16.mxu0 0
        %3049 = vmatpush2.bf16.msra.mxu0 0
        %3050 = vmatprep.subr.bf16.mxu0 0
        %3051 = vmatpush2.bf16.msra.mxu0 0
        %3052 = vmatprep.subr.bf16.mxu0 0
        %3053 = vmatpush2.bf16.msra.mxu0 0
        %3054 = vmatprep.subr.bf16.mxu0 0
        %3055 = vmatpush2.bf16.msra.mxu0 0
        %3056 = vmatprep.mubr.bf16.mxu0 0
        %3057 = vmatmul.mubr.bf16.gmra.mxu0 %v2891
        %v3058 = vpop.f32.mrf.mxu0
        %v3059 = vadd.f32 %v3019, %v3058
        %v3060 = vpop.f32.mrf.mxu0
        %v3061 = vpop.f32.mrf.mxu0
        %v3062 = vpop.f32.mrf.mxu0
        %3063 = vdwg.mxu0
        %v3064 = vmin.f32 %v2978, 0.0
        %v3065 = vmin.f32 %v2980, 0.0
        %v3066 = vmin.f32 %v3059, 0.0
        %vm3067 = vcmp.gt.f32.partialorder %v2978, 0.0
        %vm3068 = vcmp.gt.f32.partialorder %v2980, 0.0
        %vm3069 = vcmp.gt.f32.partialorder %v3059, 0.0
        %v3070 = vmul.f32 %v3064, 1.442695
        %v3071 = vpow.pop %v3070
        %v3072 = vmul.f32 %v3065, 1.442695
        %v3073 = vpow.pop %v3072
        %v3074 = vmul.f32 %v3066, 1.442695
        %v3075 = vpow.pop %v3074
        %v3076 = vsub.f32 %v3071, 1.0
        %v3077 = vsub.f32 %v3073, 1.0
        %v3078 = vsub.f32 %v3075, 1.0
        %v3079 = vmul.f32 %v3076, 1.6732632
        %v3080 = vmul.f32 %v3077, 1.6732632
        %v3081 = vmul.f32 %v3078, 1.6732632
        %v3082 = vsel %vm3067, %v2978, %v3079
        %v3083 = vsel %vm3068, %v2980, %v3080
        %v3084 = vsel %vm3069, %v3059, %v3081
        %v3085 = vmul.f32 %v3082, 1.050701
        %v3086 = vmul.f32 %v3083, 1.050701
        %v3087 = vmul.f32 %v3084, 1.050701
        %v3088 = vld [vmem:[#allocation5] sm:$0xff]
        %v3089 = vld [vmem:[#allocation5 + $0x8] sm:$0xf]
        %v3090 = vld [vmem:[#allocation5 + $0xc] sm:$0xff]
        %v3091 = vld [vmem:[#allocation5 + $0x14] sm:$0xf]
        %v3092 = vld [vmem:[#allocation5 + $0x18] sm:$0xff]
        %v3093 = vld [vmem:[#allocation5 + $0x20] sm:$0xf]
        %v3094 = vld [vmem:[#allocation5 + $0x24] sm:$0xff]
        %v3095 = vld [vmem:[#allocation5 + $0x2c] sm:$0xf]
        %v3096 = vld [vmem:[#allocation5 + $0x30] sm:$0xff]
        %v3097 = vld [vmem:[#allocation5 + $0x38] sm:$0xf]
        %v3098 = vld [vmem:[#allocation5 + $0x3c] sm:$0xff]
        %v3099 = vld [vmem:[#allocation5 + $0x44] sm:$0xf]
        %v3100 = vld [vmem:[#allocation5 + $0x48] sm:$0xff]
        %v3101 = vld [vmem:[#allocation5 + $0x50] sm:$0xf]
        %v3102 = vld [vmem:[#allocation5 + $0x54] sm:$0xff]
        %v3103 = vld [vmem:[#allocation5 + $0x5c] sm:$0xf]
        %v3104 = vld [vmem:[#allocation5 + $0x60] sm:$0xff]
        %v3105 = vld [vmem:[#allocation5 + $0x68] sm:$0xf]
        %v3106 = vld [vmem:[#allocation5 + $0x6c] sm:$0xff]
        %v3107 = vld [vmem:[#allocation5 + $0x74] sm:$0xf]
        %v3108 = vld [vmem:[#allocation5 + $0x78] sm:$0xff]
        %v3109 = vld [vmem:[#allocation5 + $0x80] sm:$0xf]
        %v3110 = vld [vmem:[#allocation5 + $0x84] sm:$0xff]
        %v3111 = vld [vmem:[#allocation5 + $0x8c] sm:$0xf]
        %v3112 = vld [vmem:[#allocation5 + $0x90] sm:$0xff]
        %v3113 = vld [vmem:[#allocation5 + $0x98] sm:$0xf]
        %v3114 = vld [vmem:[#allocation5 + $0x9c] sm:$0xff]
        %v3115 = vld [vmem:[#allocation5 + $0xa4] sm:$0xf]
        %v3116 = vld [vmem:[#allocation5 + $0xa8] sm:$0xff]
        %v3117 = vld [vmem:[#allocation5 + $0xb0] sm:$0xf]
        %v3118 = vld [vmem:[#allocation5 + $0xb4] sm:$0xff]
        %v3119 = vld [vmem:[#allocation5 + $0xbc] sm:$0xf]
        %v3120 = vld [vmem:[#allocation5 + $0xc0] sm:$0xff]
        %v3121 = vld [vmem:[#allocation5 + $0xc8] sm:$0xf]
        %v3122 = vld [vmem:[#allocation5 + $0xcc] sm:$0xff]
        %v3123 = vld [vmem:[#allocation5 + $0xd4] sm:$0xf]
        %v3124 = vld [vmem:[#allocation5 + $0xd8] sm:$0xff]
        %v3125 = vld [vmem:[#allocation5 + $0xe0] sm:$0xf]
        %v3126 = vld [vmem:[#allocation5 + $0xe4] sm:$0xff]
        %v3127 = vld [vmem:[#allocation5 + $0xec] sm:$0xf]
        %v3128 = vld [vmem:[#allocation5 + $0xf0] sm:$0xff]
        %v3129 = vld [vmem:[#allocation5 + $0xf8] sm:$0xf]
        %v3130 = vld [vmem:[#allocation5 + $0xfc] sm:$0xff]
        %v3131 = vld [vmem:[#allocation5 + $0x104] sm:$0xf]
        %v3132 = vld [vmem:[#allocation5 + $0x108] sm:$0xff]
        %v3133 = vld [vmem:[#allocation5 + $0x110] sm:$0xf]
        %v3134 = vld [vmem:[#allocation5 + $0x114] sm:$0xff]
        %v3135 = vld [vmem:[#allocation5 + $0x11c] sm:$0xf]
        %v3136 = vld [vmem:[#allocation5 + $0x120] sm:$0xff]
        %v3137 = vld [vmem:[#allocation5 + $0x128] sm:$0xf]
        %v3138 = vld [vmem:[#allocation5 + $0x12c] sm:$0xff]
        %v3139 = vld [vmem:[#allocation5 + $0x134] sm:$0xf]
        %v3140 = vld [vmem:[#allocation5 + $0x138] sm:$0xff]
        %v3141 = vld [vmem:[#allocation5 + $0x140] sm:$0xf]
        %v3142 = vld [vmem:[#allocation5 + $0x144] sm:$0xff]
        %v3143 = vld [vmem:[#allocation5 + $0x14c] sm:$0xf]
        %v3144 = vld [vmem:[#allocation5 + $0x150] sm:$0xff]
        %v3145 = vld [vmem:[#allocation5 + $0x158] sm:$0xf]
        %v3146 = vld [vmem:[#allocation5 + $0x15c] sm:$0xff]
        %v3147 = vld [vmem:[#allocation5 + $0x164] sm:$0xf]
        %v3148 = vld [vmem:[#allocation5 + $0x168] sm:$0xff]
        %v3149 = vld [vmem:[#allocation5 + $0x170] sm:$0xf]
        %v3150 = vld [vmem:[#allocation5 + $0x174] sm:$0xff]
        %v3151 = vld [vmem:[#allocation5 + $0x17c] sm:$0xf]
        %v3152 = vld [vmem:[#allocation5 + $0x180] sm:$0xff]
        %v3153 = vld [vmem:[#allocation5 + $0x188] sm:$0xf]
        %v3154 = vld [vmem:[#allocation5 + $0x18c] sm:$0xff]
        %v3155 = vld [vmem:[#allocation5 + $0x194] sm:$0xf]
        %v3156 = vld [vmem:[#allocation5 + $0x198] sm:$0xff]
        %v3157 = vld [vmem:[#allocation5 + $0x1a0] sm:$0xf]
        %v3158 = vld [vmem:[#allocation5 + $0x1a4] sm:$0xff]
        %v3159 = vld [vmem:[#allocation5 + $0x1ac] sm:$0xf]
        %v3160 = vld [vmem:[#allocation5 + $0x1b0] sm:$0xff]
        %v3161 = vld [vmem:[#allocation5 + $0x1b8] sm:$0xf]
        %v3162 = vld [vmem:[#allocation5 + $0x1bc] sm:$0x33]
        %v3163 = vld [vmem:[#allocation5 + $0x1c4] sm:$0x3]
        %v3164 = vld [vmem:[%s10] sm:$0x7]
        %v3165 = vpack.c.bf16 %v3085, %v3085
        %v3166 = vpack.c.bf16 %v3086, %v3086
        %v3167 = vpack.c.bf16 %v3087, %v3087
        %v3169 = vlaneseq
        %v3170 = vshrl.u32 %v3169, 7
        %v3171 = vsub.s32 0, %v3170
        %v3172 = vrot.slane %v3164, %v3171
        %v3173 = vlaneseq
        %v3174 = vshrl.u32 %v3173, 7
        %v3175 = vsub.s32 1, %v3174
        %v3176 = vrot.slane %v3164, %v3175
        %v3177 = vlaneseq
        %v3178 = vshrl.u32 %v3177, 7
        %v3179 = vsub.s32 2, %v3178
        %v3180 = vrot.slane %v3164, %v3179
        %v3260 = vunpack.c.l.b16 %v3088
        %v3261 = vunpack.c.h.b16 %v3088
        %v3262 = vunpack.c.l.b16 %v3089
        %v3263 = vunpack.c.l.b16 %v3090
        %v3264 = vunpack.c.h.b16 %v3090
        %v3265 = vunpack.c.l.b16 %v3091
        %v3266 = vunpack.c.l.b16 %v3092
        %v3267 = vunpack.c.h.b16 %v3092
        %v3268 = vunpack.c.l.b16 %v3093
        %v3269 = vunpack.c.l.b16 %v3094
        %v3270 = vunpack.c.h.b16 %v3094
        %v3271 = vunpack.c.l.b16 %v3095
        %v3272 = vunpack.c.l.b16 %v3096
        %v3273 = vunpack.c.h.b16 %v3096
        %v3274 = vunpack.c.l.b16 %v3097
        %v3275 = vunpack.c.l.b16 %v3098
        %v3276 = vunpack.c.h.b16 %v3098
        %v3277 = vunpack.c.l.b16 %v3099
        %v3278 = vunpack.c.l.b16 %v3100
        %v3279 = vunpack.c.h.b16 %v3100
        %v3280 = vunpack.c.l.b16 %v3101
        %v3281 = vunpack.c.l.b16 %v3102
        %v3282 = vunpack.c.h.b16 %v3102
        %v3283 = vunpack.c.l.b16 %v3103
        %v3284 = vunpack.c.l.b16 %v3104
        %v3285 = vunpack.c.h.b16 %v3104
        %v3286 = vunpack.c.l.b16 %v3105
        %v3287 = vunpack.c.l.b16 %v3106
        %v3288 = vunpack.c.h.b16 %v3106
        %v3289 = vunpack.c.l.b16 %v3107
        %v3290 = vunpack.c.l.b16 %v3108
        %v3291 = vunpack.c.h.b16 %v3108
        %v3292 = vunpack.c.l.b16 %v3109
        %v3293 = vunpack.c.l.b16 %v3110
        %v3294 = vunpack.c.h.b16 %v3110
        %v3295 = vunpack.c.l.b16 %v3111
        %v3296 = vunpack.c.l.b16 %v3112
        %v3297 = vunpack.c.h.b16 %v3112
        %v3298 = vunpack.c.l.b16 %v3113
        %v3299 = vunpack.c.l.b16 %v3114
        %v3300 = vunpack.c.h.b16 %v3114
        %v3301 = vunpack.c.l.b16 %v3115
        %v3302 = vunpack.c.l.b16 %v3116
        %v3303 = vunpack.c.h.b16 %v3116
        %v3304 = vunpack.c.l.b16 %v3117
        %v3305 = vunpack.c.l.b16 %v3118
        %v3306 = vunpack.c.h.b16 %v3118
        %v3307 = vunpack.c.l.b16 %v3119
        %v3308 = vunpack.c.l.b16 %v3120
        %v3309 = vunpack.c.h.b16 %v3120
        %v3310 = vunpack.c.l.b16 %v3121
        %v3311 = vunpack.c.l.b16 %v3122
        %v3312 = vunpack.c.h.b16 %v3122
        %v3313 = vunpack.c.l.b16 %v3123
        %v3314 = vunpack.c.l.b16 %v3124
        %v3315 = vunpack.c.h.b16 %v3124
        %v3316 = vunpack.c.l.b16 %v3125
        %v3317 = vunpack.c.l.b16 %v3126
        %v3318 = vunpack.c.h.b16 %v3126
        %v3319 = vunpack.c.l.b16 %v3127
        %v3320 = vunpack.c.l.b16 %v3128
        %v3321 = vunpack.c.h.b16 %v3128
        %v3322 = vunpack.c.l.b16 %v3129
        %v3323 = vunpack.c.l.b16 %v3130
        %v3324 = vunpack.c.h.b16 %v3130
        %v3325 = vunpack.c.l.b16 %v3131
        %v3326 = vunpack.c.l.b16 %v3132
        %v3327 = vunpack.c.h.b16 %v3132
        %v3328 = vunpack.c.l.b16 %v3133
        %v3329 = vunpack.c.l.b16 %v3134
        %v3330 = vunpack.c.h.b16 %v3134
        %v3331 = vunpack.c.l.b16 %v3135
        %v3332 = vunpack.c.l.b16 %v3136
        %v3333 = vunpack.c.h.b16 %v3136
        %v3334 = vunpack.c.l.b16 %v3137
        %v3335 = vunpack.c.l.b16 %v3138
        %v3336 = vunpack.c.h.b16 %v3138
        %v3337 = vunpack.c.l.b16 %v3139
        %v3338 = vunpack.c.l.b16 %v3140
        %v3339 = vunpack.c.h.b16 %v3140
        %v3340 = vunpack.c.l.b16 %v3141
        %v3341 = vunpack.c.l.b16 %v3142
        %v3342 = vunpack.c.h.b16 %v3142
        %v3343 = vunpack.c.l.b16 %v3143
        %v3344 = vunpack.c.l.b16 %v3144
        %v3345 = vunpack.c.h.b16 %v3144
        %v3346 = vunpack.c.l.b16 %v3145
        %v3347 = vunpack.c.l.b16 %v3146
        %v3348 = vunpack.c.h.b16 %v3146
        %v3349 = vunpack.c.l.b16 %v3147
        %v3350 = vunpack.c.l.b16 %v3148
        %v3351 = vunpack.c.h.b16 %v3148
        %v3352 = vunpack.c.l.b16 %v3149
        %v3353 = vunpack.c.l.b16 %v3150
        %v3354 = vunpack.c.h.b16 %v3150
        %v3355 = vunpack.c.l.b16 %v3151
        %v3356 = vunpack.c.l.b16 %v3152
        %v3357 = vunpack.c.h.b16 %v3152
        %v3358 = vunpack.c.l.b16 %v3153
        %v3359 = vunpack.c.l.b16 %v3154
        %v3360 = vunpack.c.h.b16 %v3154
        %v3361 = vunpack.c.l.b16 %v3155
        %v3362 = vunpack.c.l.b16 %v3156
        %v3363 = vunpack.c.h.b16 %v3156
        %v3364 = vunpack.c.l.b16 %v3157
        %v3365 = vunpack.c.l.b16 %v3158
        %v3366 = vunpack.c.h.b16 %v3158
        %v3367 = vunpack.c.l.b16 %v3159
        %v3368 = vunpack.c.l.b16 %v3160
        %v3369 = vunpack.c.h.b16 %v3160
        %v3370 = vunpack.c.l.b16 %v3161
        %v3371 = vunpack.c.l.b16 %v3162
        %v3372 = vunpack.c.h.b16 %v3162
        %v3373 = vunpack.c.l.b16 %v3163
        %v3374 = vpack.c.b16 %v3263, %v3260
        %v3375 = vpack.c.b16 %v3264, %v3261
        %v3376 = vpack.c.b16 %v3265, %v3262
        %v3377 = vpack.c.b16 %v3269, %v3266
        %v3378 = vpack.c.b16 %v3270, %v3267
        %v3379 = vpack.c.b16 %v3271, %v3268
        %v3380 = vpack.c.b16 %v3275, %v3272
        %v3381 = vpack.c.b16 %v3276, %v3273
        %v3382 = vpack.c.b16 %v3277, %v3274
        %v3383 = vpack.c.b16 %v3281, %v3278
        %v3384 = vpack.c.b16 %v3282, %v3279
        %v3385 = vpack.c.b16 %v3283, %v3280
        %v3386 = vpack.c.b16 %v3287, %v3284
        %v3387 = vpack.c.b16 %v3288, %v3285
        %v3388 = vpack.c.b16 %v3289, %v3286
        %v3389 = vpack.c.b16 %v3293, %v3290
        %v3390 = vpack.c.b16 %v3294, %v3291
        %v3391 = vpack.c.b16 %v3295, %v3292
        %v3392 = vpack.c.b16 %v3299, %v3296
        %v3393 = vpack.c.b16 %v3300, %v3297
        %v3394 = vpack.c.b16 %v3301, %v3298
        %v3395 = vpack.c.b16 %v3305, %v3302
        %v3396 = vpack.c.b16 %v3306, %v3303
        %v3397 = vpack.c.b16 %v3307, %v3304
        %v3398 = vpack.c.b16 %v3311, %v3308
        %v3399 = vpack.c.b16 %v3312, %v3309
        %v3400 = vpack.c.b16 %v3313, %v3310
        %v3401 = vpack.c.b16 %v3317, %v3314
        %v3402 = vpack.c.b16 %v3318, %v3315
        %v3403 = vpack.c.b16 %v3319, %v3316
        %v3404 = vpack.c.b16 %v3323, %v3320
        %v3405 = vpack.c.b16 %v3324, %v3321
        %v3406 = vpack.c.b16 %v3325, %v3322
        %v3407 = vpack.c.b16 %v3329, %v3326
        %v3408 = vpack.c.b16 %v3330, %v3327
        %v3409 = vpack.c.b16 %v3331, %v3328
        %v3410 = vpack.c.b16 %v3335, %v3332
        %v3411 = vpack.c.b16 %v3336, %v3333
        %v3412 = vpack.c.b16 %v3337, %v3334
        %v3413 = vpack.c.b16 %v3341, %v3338
        %v3414 = vpack.c.b16 %v3342, %v3339
        %v3415 = vpack.c.b16 %v3343, %v3340
        %v3416 = vpack.c.b16 %v3347, %v3344
        %v3417 = vpack.c.b16 %v3348, %v3345
        %v3418 = vpack.c.b16 %v3349, %v3346
        %v3419 = vpack.c.b16 %v3353, %v3350
        %v3420 = vpack.c.b16 %v3354, %v3351
        %v3421 = vpack.c.b16 %v3355, %v3352
        %v3422 = vpack.c.b16 %v3359, %v3356
        %v3423 = vpack.c.b16 %v3360, %v3357
        %v3424 = vpack.c.b16 %v3361, %v3358
        %v3425 = vpack.c.b16 %v3365, %v3362
        %v3426 = vpack.c.b16 %v3366, %v3363
        %v3427 = vpack.c.b16 %v3367, %v3364
        %v3428 = vpack.c.b16 %v3371, %v3368
        %v3429 = vpack.c.b16 %v3372, %v3369
        %v3430 = vpack.c.b16 %v3373, %v3370
        %v3486 = vsel %vm1698, %v3167, 0
        %v3489 = vsel %vm1702, %v3428, 0
        %v3492 = vsel %vm1702, %v3429, 0
        %v3495 = vsel %vm1702, %v3430, 0
        %3497 = vmatprep.subr.bf16.mxu0 %v3396
        %3498 = vmatpush1.bf16.msra.mxu0 %v3395
        %3499 = vmatprep.subr.bf16.mxu0 %v3393
        %3500 = vmatpush1.bf16.msra.mxu0 %v3392
        %3501 = vmatprep.subr.bf16.mxu0 %v3390
        %3502 = vmatpush1.bf16.msra.mxu0 %v3389
        %3503 = vmatprep.subr.bf16.mxu0 %v3387
        %3504 = vmatpush1.bf16.msra.mxu0 %v3386
        %3505 = vmatprep.subr.bf16.mxu0 %v3384
        %3506 = vmatpush1.bf16.msra.mxu0 %v3383
        %3507 = vmatprep.subr.bf16.mxu0 %v3381
        %3508 = vmatpush1.bf16.msra.mxu0 %v3380
        %3509 = vmatprep.subr.bf16.mxu0 %v3378
        %3510 = vmatpush1.bf16.msra.mxu0 %v3377
        %3511 = vmatprep.subr.bf16.mxu0 %v3375
        %3512 = vmatpush1.bf16.msra.mxu0 %v3374
        %3513 = vmatprep.subr.bf16.mxu0 %v3420
        %3514 = vmatpush2.bf16.msra.mxu0 %v3419
        %3515 = vmatprep.subr.bf16.mxu0 %v3417
        %3516 = vmatpush2.bf16.msra.mxu0 %v3416
        %3517 = vmatprep.subr.bf16.mxu0 %v3414
        %3518 = vmatpush2.bf16.msra.mxu0 %v3413
        %3519 = vmatprep.subr.bf16.mxu0 %v3411
        %3520 = vmatpush2.bf16.msra.mxu0 %v3410
        %3521 = vmatprep.subr.bf16.mxu0 %v3408
        %3522 = vmatpush2.bf16.msra.mxu0 %v3407
        %3523 = vmatprep.subr.bf16.mxu0 %v3405
        %3524 = vmatpush2.bf16.msra.mxu0 %v3404
        %3525 = vmatprep.subr.bf16.mxu0 %v3402
        %3526 = vmatpush2.bf16.msra.mxu0 %v3401
        %3527 = vmatprep.subr.bf16.mxu0 %v3399
        %3528 = vmatpush2.bf16.msra.mxu0 %v3398
        %3529 = vmatprep.mubr.bf16.mxu0 %v3166
        %3530 = vmatmul.mubr.bf16.gmra.mxu0 %v3165
        %v3531 = vpop.f32.mrf.mxu0
        %v3532 = vadd.f32 %v3172, %v3531
        %v3533 = vpop.f32.mrf.mxu0
        %v3534 = vadd.f32 %v3176, %v3533
        %v3535 = vpop.f32.mrf.mxu0
        %v3536 = vpop.f32.mrf.mxu0
        %3537 = vdwg.mxu0
        %3538 = vmatprep.subr.bf16.mxu0 0
        %3539 = vmatpush1.bf16.msra.mxu0 0
        %3540 = vmatprep.subr.bf16.mxu0 0
        %3541 = vmatpush1.bf16.msra.mxu0 0
        %3542 = vmatprep.subr.bf16.mxu0 0
        %3543 = vmatpush1.bf16.msra.mxu0 0
        %3544 = vmatprep.subr.bf16.mxu0 0
        %3545 = vmatpush1.bf16.msra.mxu0 0
        %3546 = vmatprep.subr.bf16.mxu0 0
        %3547 = vmatpush1.bf16.msra.mxu0 0
        %3548 = vmatprep.subr.bf16.mxu0 %v3492
        %3549 = vmatpush1.bf16.msra.mxu0 %v3489
        %3550 = vmatprep.subr.bf16.mxu0 %v3426
        %3551 = vmatpush1.bf16.msra.mxu0 %v3425
        %3552 = vmatprep.subr.bf16.mxu0 %v3423
        %3553 = vmatpush1.bf16.msra.mxu0 %v3422
        %3554 = vmatprep.subr.bf16.mxu0 0
        %3555 = vmatpush2.bf16.msra.mxu0 0
        %3556 = vmatprep.subr.bf16.mxu0 0
        %3557 = vmatpush2.bf16.msra.mxu0 0
        %3558 = vmatprep.subr.bf16.mxu0 0
        %3559 = vmatpush2.bf16.msra.mxu0 0
        %3560 = vmatprep.subr.bf16.mxu0 0
        %3561 = vmatpush2.bf16.msra.mxu0 0
        %3562 = vmatprep.subr.bf16.mxu0 0
        %3563 = vmatpush2.bf16.msra.mxu0 0
        %3564 = vmatprep.subr.bf16.mxu0 0
        %3565 = vmatpush2.bf16.msra.mxu0 0
        %3566 = vmatprep.subr.bf16.mxu0 0
        %3567 = vmatpush2.bf16.msra.mxu0 0
        %3568 = vmatprep.subr.bf16.mxu0 0
        %3569 = vmatpush2.bf16.msra.mxu0 0
        %3570 = vmatprep.mubr.bf16.mxu0 0
        %3571 = vmatmul.mubr.bf16.gmra.mxu0 %v3486
        %v3572 = vpop.f32.mrf.mxu0
        %v3573 = vadd.f32 %v3532, %v3572
        %v3574 = vpop.f32.mrf.mxu0
        %v3575 = vadd.f32 %v3534, %v3574
        %v3576 = vpop.f32.mrf.mxu0
        %v3577 = vpop.f32.mrf.mxu0
        %3578 = vdwg.mxu0
        %3579 = vmatprep.subr.bf16.mxu0 0
        %3580 = vmatpush1.bf16.msra.mxu0 %v3397
        %3581 = vmatprep.subr.bf16.mxu0 0
        %3582 = vmatpush1.bf16.msra.mxu0 %v3394
        %3583 = vmatprep.subr.bf16.mxu0 0
        %3584 = vmatpush1.bf16.msra.mxu0 %v3391
        %3585 = vmatprep.subr.bf16.mxu0 0
        %3586 = vmatpush1.bf16.msra.mxu0 %v3388
        %3587 = vmatprep.subr.bf16.mxu0 0
        %3588 = vmatpush1.bf16.msra.mxu0 %v3385
        %3589 = vmatprep.subr.bf16.mxu0 0
        %3590 = vmatpush1.bf16.msra.mxu0 %v3382
        %3591 = vmatprep.subr.bf16.mxu0 0
        %3592 = vmatpush1.bf16.msra.mxu0 %v3379
        %3593 = vmatprep.subr.bf16.mxu0 0
        %3594 = vmatpush1.bf16.msra.mxu0 %v3376
        %3595 = vmatprep.subr.bf16.mxu0 0
        %3596 = vmatpush2.bf16.msra.mxu0 %v3421
        %3597 = vmatprep.subr.bf16.mxu0 0
        %3598 = vmatpush2.bf16.msra.mxu0 %v3418
        %3599 = vmatprep.subr.bf16.mxu0 0
        %3600 = vmatpush2.bf16.msra.mxu0 %v3415
        %3601 = vmatprep.subr.bf16.mxu0 0
        %3602 = vmatpush2.bf16.msra.mxu0 %v3412
        %3603 = vmatprep.subr.bf16.mxu0 0
        %3604 = vmatpush2.bf16.msra.mxu0 %v3409
        %3605 = vmatprep.subr.bf16.mxu0 0
        %3606 = vmatpush2.bf16.msra.mxu0 %v3406
        %3607 = vmatprep.subr.bf16.mxu0 0
        %3608 = vmatpush2.bf16.msra.mxu0 %v3403
        %3609 = vmatprep.subr.bf16.mxu0 0
        %3610 = vmatpush2.bf16.msra.mxu0 %v3400
        %3611 = vmatprep.mubr.bf16.mxu0 %v3166
        %3612 = vmatmul.mubr.bf16.gmra.mxu0 %v3165
        %v3613 = vpop.f32.mrf.mxu0
        %v3614 = vadd.f32 %v3180, %v3613
        %v3615 = vpop.f32.mrf.mxu0
        %v3616 = vpop.f32.mrf.mxu0
        %v3617 = vpop.f32.mrf.mxu0
        %3618 = vdwg.mxu0
        %3619 = vmatprep.subr.bf16.mxu0 0
        %3620 = vmatpush1.bf16.msra.mxu0 0
        %3621 = vmatprep.subr.bf16.mxu0 0
        %3622 = vmatpush1.bf16.msra.mxu0 0
        %3623 = vmatprep.subr.bf16.mxu0 0
        %3624 = vmatpush1.bf16.msra.mxu0 0
        %3625 = vmatprep.subr.bf16.mxu0 0
        %3626 = vmatpush1.bf16.msra.mxu0 0
        %3627 = vmatprep.subr.bf16.mxu0 0
        %3628 = vmatpush1.bf16.msra.mxu0 0
        %3629 = vmatprep.subr.bf16.mxu0 0
        %3630 = vmatpush1.bf16.msra.mxu0 %v3495
        %3631 = vmatprep.subr.bf16.mxu0 0
        %3632 = vmatpush1.bf16.msra.mxu0 %v3427
        %3633 = vmatprep.subr.bf16.mxu0 0
        %3634 = vmatpush1.bf16.msra.mxu0 %v3424
        %3635 = vmatprep.subr.bf16.mxu0 0
        %3636 = vmatpush2.bf16.msra.mxu0 0
        %3637 = vmatprep.subr.bf16.mxu0 0
        %3638 = vmatpush2.bf16.msra.mxu0 0
        %3639 = vmatprep.subr.bf16.mxu0 0
        %3640 = vmatpush2.bf16.msra.mxu0 0
        %3641 = vmatprep.subr.bf16.mxu0 0
        %3642 = vmatpush2.bf16.msra.mxu0 0
        %3643 = vmatprep.subr.bf16.mxu0 0
        %3644 = vmatpush2.bf16.msra.mxu0 0
        %3645 = vmatprep.subr.bf16.mxu0 0
        %3646 = vmatpush2.bf16.msra.mxu0 0
        %3647 = vmatprep.subr.bf16.mxu0 0
        %3648 = vmatpush2.bf16.msra.mxu0 0
        %3649 = vmatprep.subr.bf16.mxu0 0
        %3650 = vmatpush2.bf16.msra.mxu0 0
        %3651 = vmatprep.mubr.bf16.mxu0 0
        %3652 = vmatmul.mubr.bf16.gmra.mxu0 %v3486
        %v3653 = vpop.f32.mrf.mxu0
        %v3654 = vadd.f32 %v3614, %v3653
        %v3655 = vpop.f32.mrf.mxu0
        %v3656 = vpop.f32.mrf.mxu0
        %v3657 = vpop.f32.mrf.mxu0
        %3658 = vdwg.mxu0
        %v3659 = vmin.f32 %v3573, 0.0
        %v3660 = vmin.f32 %v3575, 0.0
        %v3661 = vmin.f32 %v3654, 0.0
        %vm3662 = vcmp.gt.f32.partialorder %v3573, 0.0
        %vm3663 = vcmp.gt.f32.partialorder %v3575, 0.0
        %vm3664 = vcmp.gt.f32.partialorder %v3654, 0.0
        %v3665 = vmul.f32 %v3659, 1.442695
        %v3666 = vpow.pop %v3665
        %v3667 = vmul.f32 %v3660, 1.442695
        %v3668 = vpow.pop %v3667
        %v3669 = vmul.f32 %v3661, 1.442695
        %v3670 = vpow.pop %v3669
        %v3671 = vsub.f32 %v3666, 1.0
        %v3672 = vsub.f32 %v3668, 1.0
        %v3673 = vsub.f32 %v3670, 1.0
        %v3674 = vmul.f32 %v3671, 1.6732632
        %v3675 = vmul.f32 %v3672, 1.6732632
        %v3676 = vmul.f32 %v3673, 1.6732632
        %v3677 = vsel %vm3662, %v3573, %v3674
        %v3678 = vsel %vm3663, %v3575, %v3675
        %v3679 = vsel %vm3664, %v3654, %v3676
        %v3680 = vmul.f32 %v3677, 1.050701
        %v3681 = vmul.f32 %v3678, 1.050701
        %v3682 = vmul.f32 %v3679, 1.050701
        %v3683 = vld [vmem:[#allocation7] sm:$0xff]
        %v3684 = vld [vmem:[#allocation7 + $0x8] sm:$0xf]
        %v3685 = vld [vmem:[#allocation7 + $0xc] sm:$0xff]
        %v3686 = vld [vmem:[#allocation7 + $0x14] sm:$0xf]
        %v3687 = vld [vmem:[#allocation7 + $0x18] sm:$0xff]
        %v3688 = vld [vmem:[#allocation7 + $0x20] sm:$0xf]
        %v3689 = vld [vmem:[#allocation7 + $0x24] sm:$0xff]
        %v3690 = vld [vmem:[#allocation7 + $0x2c] sm:$0xf]
        %v3691 = vld [vmem:[#allocation7 + $0x30] sm:$0xff]
        %v3692 = vld [vmem:[#allocation7 + $0x38] sm:$0xf]
        %v3693 = vld [vmem:[#allocation7 + $0x3c] sm:$0xff]
        %v3694 = vld [vmem:[#allocation7 + $0x44] sm:$0xf]
        %v3695 = vld [vmem:[#allocation7 + $0x48] sm:$0xff]
        %v3696 = vld [vmem:[#allocation7 + $0x50] sm:$0xf]
        %v3697 = vld [vmem:[#allocation7 + $0x54] sm:$0xff]
        %v3698 = vld [vmem:[#allocation7 + $0x5c] sm:$0xf]
        %v3699 = vld [vmem:[#allocation7 + $0x60] sm:$0xff]
        %v3700 = vld [vmem:[#allocation7 + $0x68] sm:$0xf]
        %v3701 = vld [vmem:[#allocation7 + $0x6c] sm:$0xff]
        %v3702 = vld [vmem:[#allocation7 + $0x74] sm:$0xf]
        %v3703 = vld [vmem:[#allocation7 + $0x78] sm:$0xff]
        %v3704 = vld [vmem:[#allocation7 + $0x80] sm:$0xf]
        %v3705 = vld [vmem:[#allocation7 + $0x84] sm:$0xff]
        %v3706 = vld [vmem:[#allocation7 + $0x8c] sm:$0xf]
        %v3707 = vld [vmem:[#allocation7 + $0x90] sm:$0xff]
        %v3708 = vld [vmem:[#allocation7 + $0x98] sm:$0xf]
        %v3709 = vld [vmem:[#allocation7 + $0x9c] sm:$0xff]
        %v3710 = vld [vmem:[#allocation7 + $0xa4] sm:$0xf]
        %v3711 = vld [vmem:[#allocation7 + $0xa8] sm:$0xff]
        %v3712 = vld [vmem:[#allocation7 + $0xb0] sm:$0xf]
        %v3713 = vld [vmem:[#allocation7 + $0xb4] sm:$0xff]
        %v3714 = vld [vmem:[#allocation7 + $0xbc] sm:$0xf]
        %v3715 = vld [vmem:[#allocation7 + $0xc0] sm:$0xff]
        %v3716 = vld [vmem:[#allocation7 + $0xc8] sm:$0xf]
        %v3717 = vld [vmem:[#allocation7 + $0xcc] sm:$0xff]
        %v3718 = vld [vmem:[#allocation7 + $0xd4] sm:$0xf]
        %v3719 = vld [vmem:[#allocation7 + $0xd8] sm:$0xff]
        %v3720 = vld [vmem:[#allocation7 + $0xe0] sm:$0xf]
        %v3721 = vld [vmem:[#allocation7 + $0xe4] sm:$0xff]
        %v3722 = vld [vmem:[#allocation7 + $0xec] sm:$0xf]
        %v3723 = vld [vmem:[#allocation7 + $0xf0] sm:$0xff]
        %v3724 = vld [vmem:[#allocation7 + $0xf8] sm:$0xf]
        %v3725 = vld [vmem:[#allocation7 + $0xfc] sm:$0xff]
        %v3726 = vld [vmem:[#allocation7 + $0x104] sm:$0xf]
        %v3727 = vld [vmem:[#allocation7 + $0x108] sm:$0xff]
        %v3728 = vld [vmem:[#allocation7 + $0x110] sm:$0xf]
        %v3729 = vld [vmem:[#allocation7 + $0x114] sm:$0xff]
        %v3730 = vld [vmem:[#allocation7 + $0x11c] sm:$0xf]
        %v3731 = vld [vmem:[#allocation7 + $0x120] sm:$0xff]
        %v3732 = vld [vmem:[#allocation7 + $0x128] sm:$0xf]
        %v3733 = vld [vmem:[#allocation7 + $0x12c] sm:$0xff]
        %v3734 = vld [vmem:[#allocation7 + $0x134] sm:$0xf]
        %v3735 = vld [vmem:[#allocation7 + $0x138] sm:$0xff]
        %v3736 = vld [vmem:[#allocation7 + $0x140] sm:$0xf]
        %v3737 = vld [vmem:[#allocation7 + $0x144] sm:$0xff]
        %v3738 = vld [vmem:[#allocation7 + $0x14c] sm:$0xf]
        %v3739 = vld [vmem:[#allocation7 + $0x150] sm:$0xff]
        %v3740 = vld [vmem:[#allocation7 + $0x158] sm:$0xf]
        %v3741 = vld [vmem:[#allocation7 + $0x15c] sm:$0xff]
        %v3742 = vld [vmem:[#allocation7 + $0x164] sm:$0xf]
        %v3743 = vld [vmem:[#allocation7 + $0x168] sm:$0xff]
        %v3744 = vld [vmem:[#allocation7 + $0x170] sm:$0xf]
        %v3745 = vld [vmem:[#allocation7 + $0x174] sm:$0xff]
        %v3746 = vld [vmem:[#allocation7 + $0x17c] sm:$0xf]
        %v3747 = vld [vmem:[#allocation7 + $0x180] sm:$0xff]
        %v3748 = vld [vmem:[#allocation7 + $0x188] sm:$0xf]
        %v3749 = vld [vmem:[#allocation7 + $0x18c] sm:$0xff]
        %v3750 = vld [vmem:[#allocation7 + $0x194] sm:$0xf]
        %v3751 = vld [vmem:[#allocation7 + $0x198] sm:$0xff]
        %v3752 = vld [vmem:[#allocation7 + $0x1a0] sm:$0xf]
        %v3753 = vld [vmem:[#allocation7 + $0x1a4] sm:$0xff]
        %v3754 = vld [vmem:[#allocation7 + $0x1ac] sm:$0xf]
        %v3755 = vld [vmem:[#allocation7 + $0x1b0] sm:$0xff]
        %v3756 = vld [vmem:[#allocation7 + $0x1b8] sm:$0xf]
        %v3757 = vld [vmem:[#allocation7 + $0x1bc] sm:$0x33]
        %v3758 = vld [vmem:[#allocation7 + $0x1c4] sm:$0x3]
        %v3759 = vld [vmem:[%s12] sm:$0x7]
        %v3760 = vpack.c.bf16 %v3680, %v3680
        %v3761 = vpack.c.bf16 %v3681, %v3681
        %v3762 = vpack.c.bf16 %v3682, %v3682
        %v3764 = vlaneseq
        %v3765 = vshrl.u32 %v3764, 7
        %v3766 = vsub.s32 0, %v3765
        %v3767 = vrot.slane %v3759, %v3766
        %v3768 = vlaneseq
        %v3769 = vshrl.u32 %v3768, 7
        %v3770 = vsub.s32 1, %v3769
        %v3771 = vrot.slane %v3759, %v3770
        %v3772 = vlaneseq
        %v3773 = vshrl.u32 %v3772, 7
        %v3774 = vsub.s32 2, %v3773
        %v3775 = vrot.slane %v3759, %v3774
        %v3855 = vunpack.c.l.b16 %v3683
        %v3856 = vunpack.c.h.b16 %v3683
        %v3857 = vunpack.c.l.b16 %v3684
        %v3858 = vunpack.c.l.b16 %v3685
        %v3859 = vunpack.c.h.b16 %v3685
        %v3860 = vunpack.c.l.b16 %v3686
        %v3861 = vunpack.c.l.b16 %v3687
        %v3862 = vunpack.c.h.b16 %v3687
        %v3863 = vunpack.c.l.b16 %v3688
        %v3864 = vunpack.c.l.b16 %v3689
        %v3865 = vunpack.c.h.b16 %v3689
        %v3866 = vunpack.c.l.b16 %v3690
        %v3867 = vunpack.c.l.b16 %v3691
        %v3868 = vunpack.c.h.b16 %v3691
        %v3869 = vunpack.c.l.b16 %v3692
        %v3870 = vunpack.c.l.b16 %v3693
        %v3871 = vunpack.c.h.b16 %v3693
        %v3872 = vunpack.c.l.b16 %v3694
        %v3873 = vunpack.c.l.b16 %v3695
        %v3874 = vunpack.c.h.b16 %v3695
        %v3875 = vunpack.c.l.b16 %v3696
        %v3876 = vunpack.c.l.b16 %v3697
        %v3877 = vunpack.c.h.b16 %v3697
        %v3878 = vunpack.c.l.b16 %v3698
        %v3879 = vunpack.c.l.b16 %v3699
        %v3880 = vunpack.c.h.b16 %v3699
        %v3881 = vunpack.c.l.b16 %v3700
        %v3882 = vunpack.c.l.b16 %v3701
        %v3883 = vunpack.c.h.b16 %v3701
        %v3884 = vunpack.c.l.b16 %v3702
        %v3885 = vunpack.c.l.b16 %v3703
        %v3886 = vunpack.c.h.b16 %v3703
        %v3887 = vunpack.c.l.b16 %v3704
        %v3888 = vunpack.c.l.b16 %v3705
        %v3889 = vunpack.c.h.b16 %v3705
        %v3890 = vunpack.c.l.b16 %v3706
        %v3891 = vunpack.c.l.b16 %v3707
        %v3892 = vunpack.c.h.b16 %v3707
        %v3893 = vunpack.c.l.b16 %v3708
        %v3894 = vunpack.c.l.b16 %v3709
        %v3895 = vunpack.c.h.b16 %v3709
        %v3896 = vunpack.c.l.b16 %v3710
        %v3897 = vunpack.c.l.b16 %v3711
        %v3898 = vunpack.c.h.b16 %v3711
        %v3899 = vunpack.c.l.b16 %v3712
        %v3900 = vunpack.c.l.b16 %v3713
        %v3901 = vunpack.c.h.b16 %v3713
        %v3902 = vunpack.c.l.b16 %v3714
        %v3903 = vunpack.c.l.b16 %v3715
        %v3904 = vunpack.c.h.b16 %v3715
        %v3905 = vunpack.c.l.b16 %v3716
        %v3906 = vunpack.c.l.b16 %v3717
        %v3907 = vunpack.c.h.b16 %v3717
        %v3908 = vunpack.c.l.b16 %v3718
        %v3909 = vunpack.c.l.b16 %v3719
        %v3910 = vunpack.c.h.b16 %v3719
        %v3911 = vunpack.c.l.b16 %v3720
        %v3912 = vunpack.c.l.b16 %v3721
        %v3913 = vunpack.c.h.b16 %v3721
        %v3914 = vunpack.c.l.b16 %v3722
        %v3915 = vunpack.c.l.b16 %v3723
        %v3916 = vunpack.c.h.b16 %v3723
        %v3917 = vunpack.c.l.b16 %v3724
        %v3918 = vunpack.c.l.b16 %v3725
        %v3919 = vunpack.c.h.b16 %v3725
        %v3920 = vunpack.c.l.b16 %v3726
        %v3921 = vunpack.c.l.b16 %v3727
        %v3922 = vunpack.c.h.b16 %v3727
        %v3923 = vunpack.c.l.b16 %v3728
        %v3924 = vunpack.c.l.b16 %v3729
        %v3925 = vunpack.c.h.b16 %v3729
        %v3926 = vunpack.c.l.b16 %v3730
        %v3927 = vunpack.c.l.b16 %v3731
        %v3928 = vunpack.c.h.b16 %v3731
        %v3929 = vunpack.c.l.b16 %v3732
        %v3930 = vunpack.c.l.b16 %v3733
        %v3931 = vunpack.c.h.b16 %v3733
        %v3932 = vunpack.c.l.b16 %v3734
        %v3933 = vunpack.c.l.b16 %v3735
        %v3934 = vunpack.c.h.b16 %v3735
        %v3935 = vunpack.c.l.b16 %v3736
        %v3936 = vunpack.c.l.b16 %v3737
        %v3937 = vunpack.c.h.b16 %v3737
        %v3938 = vunpack.c.l.b16 %v3738
        %v3939 = vunpack.c.l.b16 %v3739
        %v3940 = vunpack.c.h.b16 %v3739
        %v3941 = vunpack.c.l.b16 %v3740
        %v3942 = vunpack.c.l.b16 %v3741
        %v3943 = vunpack.c.h.b16 %v3741
        %v3944 = vunpack.c.l.b16 %v3742
        %v3945 = vunpack.c.l.b16 %v3743
        %v3946 = vunpack.c.h.b16 %v3743
        %v3947 = vunpack.c.l.b16 %v3744
        %v3948 = vunpack.c.l.b16 %v3745
        %v3949 = vunpack.c.h.b16 %v3745
        %v3950 = vunpack.c.l.b16 %v3746
        %v3951 = vunpack.c.l.b16 %v3747
        %v3952 = vunpack.c.h.b16 %v3747
        %v3953 = vunpack.c.l.b16 %v3748
        %v3954 = vunpack.c.l.b16 %v3749
        %v3955 = vunpack.c.h.b16 %v3749
        %v3956 = vunpack.c.l.b16 %v3750
        %v3957 = vunpack.c.l.b16 %v3751
        %v3958 = vunpack.c.h.b16 %v3751
        %v3959 = vunpack.c.l.b16 %v3752
        %v3960 = vunpack.c.l.b16 %v3753
        %v3961 = vunpack.c.h.b16 %v3753
        %v3962 = vunpack.c.l.b16 %v3754
        %v3963 = vunpack.c.l.b16 %v3755
        %v3964 = vunpack.c.h.b16 %v3755
        %v3965 = vunpack.c.l.b16 %v3756
        %v3966 = vunpack.c.l.b16 %v3757
        %v3967 = vunpack.c.h.b16 %v3757
        %v3968 = vunpack.c.l.b16 %v3758
        %v3969 = vpack.c.b16 %v3858, %v3855
        %v3970 = vpack.c.b16 %v3859, %v3856
        %v3971 = vpack.c.b16 %v3860, %v3857
        %v3972 = vpack.c.b16 %v3864, %v3861
        %v3973 = vpack.c.b16 %v3865, %v3862
        %v3974 = vpack.c.b16 %v3866, %v3863
        %v3975 = vpack.c.b16 %v3870, %v3867
        %v3976 = vpack.c.b16 %v3871, %v3868
        %v3977 = vpack.c.b16 %v3872, %v3869
        %v3978 = vpack.c.b16 %v3876, %v3873
        %v3979 = vpack.c.b16 %v3877, %v3874
        %v3980 = vpack.c.b16 %v3878, %v3875
        %v3981 = vpack.c.b16 %v3882, %v3879
        %v3982 = vpack.c.b16 %v3883, %v3880
        %v3983 = vpack.c.b16 %v3884, %v3881
        %v3984 = vpack.c.b16 %v3888, %v3885
        %v3985 = vpack.c.b16 %v3889, %v3886
        %v3986 = vpack.c.b16 %v3890, %v3887
        %v3987 = vpack.c.b16 %v3894, %v3891
        %v3988 = vpack.c.b16 %v3895, %v3892
        %v3989 = vpack.c.b16 %v3896, %v3893
        %v3990 = vpack.c.b16 %v3900, %v3897
        %v3991 = vpack.c.b16 %v3901, %v3898
        %v3992 = vpack.c.b16 %v3902, %v3899
        %v3993 = vpack.c.b16 %v3906, %v3903
        %v3994 = vpack.c.b16 %v3907, %v3904
        %v3995 = vpack.c.b16 %v3908, %v3905
        %v3996 = vpack.c.b16 %v3912, %v3909
        %v3997 = vpack.c.b16 %v3913, %v3910
        %v3998 = vpack.c.b16 %v3914, %v3911
        %v3999 = vpack.c.b16 %v3918, %v3915
        %v4000 = vpack.c.b16 %v3919, %v3916
        %v4001 = vpack.c.b16 %v3920, %v3917
        %v4002 = vpack.c.b16 %v3924, %v3921
        %v4003 = vpack.c.b16 %v3925, %v3922
        %v4004 = vpack.c.b16 %v3926, %v3923
        %v4005 = vpack.c.b16 %v3930, %v3927
        %v4006 = vpack.c.b16 %v3931, %v3928
        %v4007 = vpack.c.b16 %v3932, %v3929
        %v4008 = vpack.c.b16 %v3936, %v3933
        %v4009 = vpack.c.b16 %v3937, %v3934
        %v4010 = vpack.c.b16 %v3938, %v3935
        %v4011 = vpack.c.b16 %v3942, %v3939
        %v4012 = vpack.c.b16 %v3943, %v3940
        %v4013 = vpack.c.b16 %v3944, %v3941
        %v4014 = vpack.c.b16 %v3948, %v3945
        %v4015 = vpack.c.b16 %v3949, %v3946
        %v4016 = vpack.c.b16 %v3950, %v3947
        %v4017 = vpack.c.b16 %v3954, %v3951
        %v4018 = vpack.c.b16 %v3955, %v3952
        %v4019 = vpack.c.b16 %v3956, %v3953
        %v4020 = vpack.c.b16 %v3960, %v3957
        %v4021 = vpack.c.b16 %v3961, %v3958
        %v4022 = vpack.c.b16 %v3962, %v3959
        %v4023 = vpack.c.b16 %v3966, %v3963
        %v4024 = vpack.c.b16 %v3967, %v3964
        %v4025 = vpack.c.b16 %v3968, %v3965
        %v4081 = vsel %vm1698, %v3762, 0
        %v4084 = vsel %vm1702, %v4023, 0
        %v4087 = vsel %vm1702, %v4024, 0
        %v4090 = vsel %vm1702, %v4025, 0
        %4092 = vmatprep.subr.bf16.mxu0 %v3991
        %4093 = vmatpush1.bf16.msra.mxu0 %v3990
        %4094 = vmatprep.subr.bf16.mxu0 %v3988
        %4095 = vmatpush1.bf16.msra.mxu0 %v3987
        %4096 = vmatprep.subr.bf16.mxu0 %v3985
        %4097 = vmatpush1.bf16.msra.mxu0 %v3984
        %4098 = vmatprep.subr.bf16.mxu0 %v3982
        %4099 = vmatpush1.bf16.msra.mxu0 %v3981
        %4100 = vmatprep.subr.bf16.mxu0 %v3979
        %4101 = vmatpush1.bf16.msra.mxu0 %v3978
        %4102 = vmatprep.subr.bf16.mxu0 %v3976
        %4103 = vmatpush1.bf16.msra.mxu0 %v3975
        %4104 = vmatprep.subr.bf16.mxu0 %v3973
        %4105 = vmatpush1.bf16.msra.mxu0 %v3972
        %4106 = vmatprep.subr.bf16.mxu0 %v3970
        %4107 = vmatpush1.bf16.msra.mxu0 %v3969
        %4108 = vmatprep.subr.bf16.mxu0 %v4015
        %4109 = vmatpush2.bf16.msra.mxu0 %v4014
        %4110 = vmatprep.subr.bf16.mxu0 %v4012
        %4111 = vmatpush2.bf16.msra.mxu0 %v4011
        %4112 = vmatprep.subr.bf16.mxu0 %v4009
        %4113 = vmatpush2.bf16.msra.mxu0 %v4008
        %4114 = vmatprep.subr.bf16.mxu0 %v4006
        %4115 = vmatpush2.bf16.msra.mxu0 %v4005
        %4116 = vmatprep.subr.bf16.mxu0 %v4003
        %4117 = vmatpush2.bf16.msra.mxu0 %v4002
        %4118 = vmatprep.subr.bf16.mxu0 %v4000
        %4119 = vmatpush2.bf16.msra.mxu0 %v3999
        %4120 = vmatprep.subr.bf16.mxu0 %v3997
        %4121 = vmatpush2.bf16.msra.mxu0 %v3996
        %4122 = vmatprep.subr.bf16.mxu0 %v3994
        %4123 = vmatpush2.bf16.msra.mxu0 %v3993
        %4124 = vmatprep.mubr.bf16.mxu0 %v3761
        %4125 = vmatmul.mubr.bf16.gmra.mxu0 %v3760
        %v4126 = vpop.f32.mrf.mxu0
        %v4127 = vadd.f32 %v3767, %v4126
        %v4128 = vpop.f32.mrf.mxu0
        %v4129 = vadd.f32 %v3771, %v4128
        %v4130 = vpop.f32.mrf.mxu0
        %v4131 = vpop.f32.mrf.mxu0
        %4132 = vdwg.mxu0
        %4133 = vmatprep.subr.bf16.mxu0 0
        %4134 = vmatpush1.bf16.msra.mxu0 0
        %4135 = vmatprep.subr.bf16.mxu0 0
        %4136 = vmatpush1.bf16.msra.mxu0 0
        %4137 = vmatprep.subr.bf16.mxu0 0
        %4138 = vmatpush1.bf16.msra.mxu0 0
        %4139 = vmatprep.subr.bf16.mxu0 0
        %4140 = vmatpush1.bf16.msra.mxu0 0
        %4141 = vmatprep.subr.bf16.mxu0 0
        %4142 = vmatpush1.bf16.msra.mxu0 0
        %4143 = vmatprep.subr.bf16.mxu0 %v4087
        %4144 = vmatpush1.bf16.msra.mxu0 %v4084
        %4145 = vmatprep.subr.bf16.mxu0 %v4021
        %4146 = vmatpush1.bf16.msra.mxu0 %v4020
        %4147 = vmatprep.subr.bf16.mxu0 %v4018
        %4148 = vmatpush1.bf16.msra.mxu0 %v4017
        %4149 = vmatprep.subr.bf16.mxu0 0
        %4150 = vmatpush2.bf16.msra.mxu0 0
        %4151 = vmatprep.subr.bf16.mxu0 0
        %4152 = vmatpush2.bf16.msra.mxu0 0
        %4153 = vmatprep.subr.bf16.mxu0 0
        %4154 = vmatpush2.bf16.msra.mxu0 0
        %4155 = vmatprep.subr.bf16.mxu0 0
        %4156 = vmatpush2.bf16.msra.mxu0 0
        %4157 = vmatprep.subr.bf16.mxu0 0
        %4158 = vmatpush2.bf16.msra.mxu0 0
        %4159 = vmatprep.subr.bf16.mxu0 0
        %4160 = vmatpush2.bf16.msra.mxu0 0
        %4161 = vmatprep.subr.bf16.mxu0 0
        %4162 = vmatpush2.bf16.msra.mxu0 0
        %4163 = vmatprep.subr.bf16.mxu0 0
        %4164 = vmatpush2.bf16.msra.mxu0 0
        %4165 = vmatprep.mubr.bf16.mxu0 0
        %4166 = vmatmul.mubr.bf16.gmra.mxu0 %v4081
        %v4167 = vpop.f32.mrf.mxu0
        %v4168 = vadd.f32 %v4127, %v4167
        %v4169 = vpop.f32.mrf.mxu0
        %v4170 = vadd.f32 %v4129, %v4169
        %v4171 = vpop.f32.mrf.mxu0
        %v4172 = vpop.f32.mrf.mxu0
        %4173 = vdwg.mxu0
        %4174 = vmatprep.subr.bf16.mxu0 0
        %4175 = vmatpush1.bf16.msra.mxu0 %v3992
        %4176 = vmatprep.subr.bf16.mxu0 0
        %4177 = vmatpush1.bf16.msra.mxu0 %v3989
        %4178 = vmatprep.subr.bf16.mxu0 0
        %4179 = vmatpush1.bf16.msra.mxu0 %v3986
        %4180 = vmatprep.subr.bf16.mxu0 0
        %4181 = vmatpush1.bf16.msra.mxu0 %v3983
        %4182 = vmatprep.subr.bf16.mxu0 0
        %4183 = vmatpush1.bf16.msra.mxu0 %v3980
        %4184 = vmatprep.subr.bf16.mxu0 0
        %4185 = vmatpush1.bf16.msra.mxu0 %v3977
        %4186 = vmatprep.subr.bf16.mxu0 0
        %4187 = vmatpush1.bf16.msra.mxu0 %v3974
        %4188 = vmatprep.subr.bf16.mxu0 0
        %4189 = vmatpush1.bf16.msra.mxu0 %v3971
        %4190 = vmatprep.subr.bf16.mxu0 0
        %4191 = vmatpush2.bf16.msra.mxu0 %v4016
        %4192 = vmatprep.subr.bf16.mxu0 0
        %4193 = vmatpush2.bf16.msra.mxu0 %v4013
        %4194 = vmatprep.subr.bf16.mxu0 0
        %4195 = vmatpush2.bf16.msra.mxu0 %v4010
        %4196 = vmatprep.subr.bf16.mxu0 0
        %4197 = vmatpush2.bf16.msra.mxu0 %v4007
        %4198 = vmatprep.subr.bf16.mxu0 0
        %4199 = vmatpush2.bf16.msra.mxu0 %v4004
        %4200 = vmatprep.subr.bf16.mxu0 0
        %4201 = vmatpush2.bf16.msra.mxu0 %v4001
        %4202 = vmatprep.subr.bf16.mxu0 0
        %4203 = vmatpush2.bf16.msra.mxu0 %v3998
        %4204 = vmatprep.subr.bf16.mxu0 0
        %4205 = vmatpush2.bf16.msra.mxu0 %v3995
        %4206 = vmatprep.mubr.bf16.mxu0 %v3761
        %4207 = vmatmul.mubr.bf16.gmra.mxu0 %v3760
        %v4208 = vpop.f32.mrf.mxu0
        %v4209 = vadd.f32 %v3775, %v4208
        %v4210 = vpop.f32.mrf.mxu0
        %v4211 = vpop.f32.mrf.mxu0
        %v4212 = vpop.f32.mrf.mxu0
        %4213 = vdwg.mxu0
        %4214 = vmatprep.subr.bf16.mxu0 0
        %4215 = vmatpush1.bf16.msra.mxu0 0
        %4216 = vmatprep.subr.bf16.mxu0 0
        %4217 = vmatpush1.bf16.msra.mxu0 0
        %4218 = vmatprep.subr.bf16.mxu0 0
        %4219 = vmatpush1.bf16.msra.mxu0 0
        %4220 = vmatprep.subr.bf16.mxu0 0
        %4221 = vmatpush1.bf16.msra.mxu0 0
        %4222 = vmatprep.subr.bf16.mxu0 0
        %4223 = vmatpush1.bf16.msra.mxu0 0
        %4224 = vmatprep.subr.bf16.mxu0 0
        %4225 = vmatpush1.bf16.msra.mxu0 %v4090
        %4226 = vmatprep.subr.bf16.mxu0 0
        %4227 = vmatpush1.bf16.msra.mxu0 %v4022
        %4228 = vmatprep.subr.bf16.mxu0 0
        %4229 = vmatpush1.bf16.msra.mxu0 %v4019
        %4230 = vmatprep.subr.bf16.mxu0 0
        %4231 = vmatpush2.bf16.msra.mxu0 0
        %4232 = vmatprep.subr.bf16.mxu0 0
        %4233 = vmatpush2.bf16.msra.mxu0 0
        %4234 = vmatprep.subr.bf16.mxu0 0
        %4235 = vmatpush2.bf16.msra.mxu0 0
        %4236 = vmatprep.subr.bf16.mxu0 0
        %4237 = vmatpush2.bf16.msra.mxu0 0
        %4238 = vmatprep.subr.bf16.mxu0 0
        %4239 = vmatpush2.bf16.msra.mxu0 0
        %4240 = vmatprep.subr.bf16.mxu0 0
        %4241 = vmatpush2.bf16.msra.mxu0 0
        %4242 = vmatprep.subr.bf16.mxu0 0
        %4243 = vmatpush2.bf16.msra.mxu0 0
        %4244 = vmatprep.subr.bf16.mxu0 0
        %4245 = vmatpush2.bf16.msra.mxu0 0
        %4246 = vmatprep.mubr.bf16.mxu0 0
        %4247 = vmatmul.mubr.bf16.gmra.mxu0 %v4081
        %v4248 = vpop.f32.mrf.mxu0
        %v4249 = vadd.f32 %v4209, %v4248
        %v4250 = vpop.f32.mrf.mxu0
        %v4251 = vpop.f32.mrf.mxu0
        %v4252 = vpop.f32.mrf.mxu0
        %4253 = vdwg.mxu0
        %v4254 = vmin.f32 %v4168, 0.0
        %v4255 = vmin.f32 %v4170, 0.0
        %v4256 = vmin.f32 %v4249, 0.0
        %vm4257 = vcmp.gt.f32.partialorder %v4168, 0.0
        %vm4258 = vcmp.gt.f32.partialorder %v4170, 0.0
        %vm4259 = vcmp.gt.f32.partialorder %v4249, 0.0
        %v4260 = vmul.f32 %v4254, 1.442695
        %v4261 = vpow.pop %v4260
        %v4262 = vmul.f32 %v4255, 1.442695
        %v4263 = vpow.pop %v4262
        %v4264 = vmul.f32 %v4256, 1.442695
        %v4265 = vpow.pop %v4264
        %v4266 = vsub.f32 %v4261, 1.0
        %v4267 = vsub.f32 %v4263, 1.0
        %v4268 = vsub.f32 %v4265, 1.0
        %v4269 = vmul.f32 %v4266, 1.6732632
        %v4270 = vmul.f32 %v4267, 1.6732632
        %v4271 = vmul.f32 %v4268, 1.6732632
        %v4272 = vsel %vm4257, %v4168, %v4269
        %v4273 = vsel %vm4258, %v4170, %v4270
        %v4274 = vsel %vm4259, %v4249, %v4271
        %v4275 = vmul.f32 %v4272, 1.050701
        %v4276 = vmul.f32 %v4273, 1.050701
        %v4277 = vmul.f32 %v4274, 1.050701
        %v4278 = vld [vmem:[%s13] sm:$0xff]
        %v4279 = vld [vmem:[%s13 + $0x8] sm:$0xff]
        %v4280 = vld [vmem:[%s13 + $0x10] sm:$0xff]
        %v4281 = vld [vmem:[%s13 + $0x18] sm:$0xff]
        %v4282 = vld [vmem:[%s13 + $0x20] sm:$0xff]
        %v4283 = vld [vmem:[%s13 + $0x28] sm:$0xff]
        %v4284 = vld [vmem:[%s13 + $0x30] sm:$0xff]
        %v4285 = vld [vmem:[%s13 + $0x38] sm:$0xff]
        %v4286 = vld [vmem:[%s13 + $0x40] sm:$0xff]
        %v4287 = vld [vmem:[%s13 + $0x48] sm:$0xff]
        %v4288 = vld [vmem:[%s13 + $0x50] sm:$0xff]
        %v4289 = vld [vmem:[%s13 + $0x58] sm:$0xff]
        %v4290 = vld [vmem:[%s13 + $0x60] sm:$0xff]
        %v4291 = vld [vmem:[%s13 + $0x68] sm:$0xff]
        %v4292 = vld [vmem:[%s13 + $0x70] sm:$0xff]
        %v4293 = vld [vmem:[%s13 + $0x78] sm:$0xff]
        %v4294 = vld [vmem:[%s13 + $0x80] sm:$0xff]
        %v4295 = vld [vmem:[%s13 + $0x88] sm:$0xff]
        %v4296 = vld [vmem:[%s13 + $0x90] sm:$0xff]
        %v4297 = vld [vmem:[%s13 + $0x98] sm:$0xff]
        %v4298 = vld [vmem:[%s13 + $0xa0] sm:$0xff]
        %v4299 = vld [vmem:[%s13 + $0xa8] sm:$0xff]
        %v4300 = vld [vmem:[%s13 + $0xb0] sm:$0xff]
        %v4301 = vld [vmem:[%s13 + $0xb8] sm:$0xff]
        %v4302 = vld [vmem:[%s13 + $0xc0] sm:$0xff]
        %v4303 = vld [vmem:[%s13 + $0xc8] sm:$0xff]
        %v4304 = vld [vmem:[%s13 + $0xd0] sm:$0xff]
        %v4305 = vld [vmem:[%s13 + $0xd8] sm:$0xff]
        %v4306 = vld [vmem:[%s13 + $0xe0] sm:$0xff]
        %v4307 = vld [vmem:[%s13 + $0xe8] sm:$0xff]
        %v4308 = vld [vmem:[%s13 + $0xf0] sm:$0xff]
        %v4309 = vld [vmem:[%s13 + $0xf8] sm:$0xff]
        %v4310 = vld [vmem:[%s13 + $0x100] sm:$0xff]
        %v4311 = vld [vmem:[%s13 + $0x108] sm:$0xff]
        %v4312 = vld [vmem:[%s13 + $0x110] sm:$0xff]
        %v4313 = vld [vmem:[%s13 + $0x118] sm:$0xff]
        %v4314 = vld [vmem:[%s13 + $0x120] sm:$0xff]
        %v4315 = vld [vmem:[%s13 + $0x128] sm:$0x33]
        %v4316 = vld [vmem:[%s14] sm:$0x3]
        %v4317 = vpack.c.bf16 %v4275, %v4275
        %v4318 = vpack.c.bf16 %v4276, %v4276
        %v4319 = vpack.c.bf16 %v4277, %v4277
        %v4321 = vlaneseq
        %v4322 = vshrl.u32 %v4321, 7
        %v4323 = vsub.s32 0, %v4322
        %v4324 = vrot.slane %v4316, %v4323
        %v4325 = vlaneseq
        %v4326 = vshrl.u32 %v4325, 7
        %v4327 = vsub.s32 1, %v4326
        %v4328 = vrot.slane %v4316, %v4327
        %v4369 = vunpack.c.l.b16 %v4278
        %v4370 = vunpack.c.h.b16 %v4278
        %v4371 = vunpack.c.l.b16 %v4279
        %v4372 = vunpack.c.h.b16 %v4279
        %v4373 = vunpack.c.l.b16 %v4280
        %v4374 = vunpack.c.h.b16 %v4280
        %v4375 = vunpack.c.l.b16 %v4281
        %v4376 = vunpack.c.h.b16 %v4281
        %v4377 = vunpack.c.l.b16 %v4282
        %v4378 = vunpack.c.h.b16 %v4282
        %v4379 = vunpack.c.l.b16 %v4283
        %v4380 = vunpack.c.h.b16 %v4283
        %v4381 = vunpack.c.l.b16 %v4284
        %v4382 = vunpack.c.h.b16 %v4284
        %v4383 = vunpack.c.l.b16 %v4285
        %v4384 = vunpack.c.h.b16 %v4285
        %v4385 = vunpack.c.l.b16 %v4286
        %v4386 = vunpack.c.h.b16 %v4286
        %v4387 = vunpack.c.l.b16 %v4287
        %v4388 = vunpack.c.h.b16 %v4287
        %v4389 = vunpack.c.l.b16 %v4288
        %v4390 = vunpack.c.h.b16 %v4288
        %v4391 = vunpack.c.l.b16 %v4289
        %v4392 = vunpack.c.h.b16 %v4289
        %v4393 = vunpack.c.l.b16 %v4290
        %v4394 = vunpack.c.h.b16 %v4290
        %v4395 = vunpack.c.l.b16 %v4291
        %v4396 = vunpack.c.h.b16 %v4291
        %v4397 = vunpack.c.l.b16 %v4292
        %v4398 = vunpack.c.h.b16 %v4292
        %v4399 = vunpack.c.l.b16 %v4293
        %v4400 = vunpack.c.h.b16 %v4293
        %v4401 = vunpack.c.l.b16 %v4294
        %v4402 = vunpack.c.h.b16 %v4294
        %v4403 = vunpack.c.l.b16 %v4295
        %v4404 = vunpack.c.h.b16 %v4295
        %v4405 = vunpack.c.l.b16 %v4296
        %v4406 = vunpack.c.h.b16 %v4296
        %v4407 = vunpack.c.l.b16 %v4297
        %v4408 = vunpack.c.h.b16 %v4297
        %v4409 = vunpack.c.l.b16 %v4298
        %v4410 = vunpack.c.h.b16 %v4298
        %v4411 = vunpack.c.l.b16 %v4299
        %v4412 = vunpack.c.h.b16 %v4299
        %v4413 = vunpack.c.l.b16 %v4300
        %v4414 = vunpack.c.h.b16 %v4300
        %v4415 = vunpack.c.l.b16 %v4301
        %v4416 = vunpack.c.h.b16 %v4301
        %v4417 = vunpack.c.l.b16 %v4302
        %v4418 = vunpack.c.h.b16 %v4302
        %v4419 = vunpack.c.l.b16 %v4303
        %v4420 = vunpack.c.h.b16 %v4303
        %v4421 = vunpack.c.l.b16 %v4304
        %v4422 = vunpack.c.h.b16 %v4304
        %v4423 = vunpack.c.l.b16 %v4305
        %v4424 = vunpack.c.h.b16 %v4305
        %v4425 = vunpack.c.l.b16 %v4306
        %v4426 = vunpack.c.h.b16 %v4306
        %v4427 = vunpack.c.l.b16 %v4307
        %v4428 = vunpack.c.h.b16 %v4307
        %v4429 = vunpack.c.l.b16 %v4308
        %v4430 = vunpack.c.h.b16 %v4308
        %v4431 = vunpack.c.l.b16 %v4309
        %v4432 = vunpack.c.h.b16 %v4309
        %v4433 = vunpack.c.l.b16 %v4310
        %v4434 = vunpack.c.h.b16 %v4310
        %v4435 = vunpack.c.l.b16 %v4311
        %v4436 = vunpack.c.h.b16 %v4311
        %v4437 = vunpack.c.l.b16 %v4312
        %v4438 = vunpack.c.h.b16 %v4312
        %v4439 = vunpack.c.l.b16 %v4313
        %v4440 = vunpack.c.h.b16 %v4313
        %v4441 = vunpack.c.l.b16 %v4314
        %v4442 = vunpack.c.h.b16 %v4314
        %v4443 = vunpack.c.l.b16 %v4315
        %v4444 = vunpack.c.h.b16 %v4315
        %v4445 = vpack.c.b16 %v4371, %v4369
        %v4446 = vpack.c.b16 %v4372, %v4370
        %v4447 = vpack.c.b16 %v4375, %v4373
        %v4448 = vpack.c.b16 %v4376, %v4374
        %v4449 = vpack.c.b16 %v4379, %v4377
        %v4450 = vpack.c.b16 %v4380, %v4378
        %v4451 = vpack.c.b16 %v4383, %v4381
        %v4452 = vpack.c.b16 %v4384, %v4382
        %v4453 = vpack.c.b16 %v4387, %v4385
        %v4454 = vpack.c.b16 %v4388, %v4386
        %v4455 = vpack.c.b16 %v4391, %v4389
        %v4456 = vpack.c.b16 %v4392, %v4390
        %v4457 = vpack.c.b16 %v4395, %v4393
        %v4458 = vpack.c.b16 %v4396, %v4394
        %v4459 = vpack.c.b16 %v4399, %v4397
        %v4460 = vpack.c.b16 %v4400, %v4398
        %v4461 = vpack.c.b16 %v4403, %v4401
        %v4462 = vpack.c.b16 %v4404, %v4402
        %v4463 = vpack.c.b16 %v4407, %v4405
        %v4464 = vpack.c.b16 %v4408, %v4406
        %v4465 = vpack.c.b16 %v4411, %v4409
        %v4466 = vpack.c.b16 %v4412, %v4410
        %v4467 = vpack.c.b16 %v4415, %v4413
        %v4468 = vpack.c.b16 %v4416, %v4414
        %v4469 = vpack.c.b16 %v4419, %v4417
        %v4470 = vpack.c.b16 %v4420, %v4418
        %v4471 = vpack.c.b16 %v4423, %v4421
        %v4472 = vpack.c.b16 %v4424, %v4422
        %v4473 = vpack.c.b16 %v4427, %v4425
        %v4474 = vpack.c.b16 %v4428, %v4426
        %v4475 = vpack.c.b16 %v4431, %v4429
        %v4476 = vpack.c.b16 %v4432, %v4430
        %v4477 = vpack.c.b16 %v4435, %v4433
        %v4478 = vpack.c.b16 %v4436, %v4434
        %v4479 = vpack.c.b16 %v4439, %v4437
        %v4480 = vpack.c.b16 %v4440, %v4438
        %v4481 = vpack.c.b16 %v4443, %v4441
        %v4482 = vpack.c.b16 %v4444, %v4442
        %v4520 = vsel %vm1698, %v4319, 0
        %v4523 = vsel %vm1702, %v4481, 0
        %v4526 = vsel %vm1702, %v4482, 0
        %4528 = vmatprep.subr.bf16.mxu0 %v4460
        %4529 = vmatpush1.bf16.msra.mxu0 %v4459
        %4530 = vmatprep.subr.bf16.mxu0 %v4458
        %4531 = vmatpush1.bf16.msra.mxu0 %v4457
        %4532 = vmatprep.subr.bf16.mxu0 %v4456
        %4533 = vmatpush1.bf16.msra.mxu0 %v4455
        %4534 = vmatprep.subr.bf16.mxu0 %v4454
        %4535 = vmatpush1.bf16.msra.mxu0 %v4453
        %4536 = vmatprep.subr.bf16.mxu0 %v4452
        %4537 = vmatpush1.bf16.msra.mxu0 %v4451
        %4538 = vmatprep.subr.bf16.mxu0 %v4450
        %4539 = vmatpush1.bf16.msra.mxu0 %v4449
        %4540 = vmatprep.subr.bf16.mxu0 %v4448
        %4541 = vmatpush1.bf16.msra.mxu0 %v4447
        %4542 = vmatprep.subr.bf16.mxu0 %v4446
        %4543 = vmatpush1.bf16.msra.mxu0 %v4445
        %4544 = vmatprep.subr.bf16.mxu0 %v4476
        %4545 = vmatpush2.bf16.msra.mxu0 %v4475
        %4546 = vmatprep.subr.bf16.mxu0 %v4474
        %4547 = vmatpush2.bf16.msra.mxu0 %v4473
        %4548 = vmatprep.subr.bf16.mxu0 %v4472
        %4549 = vmatpush2.bf16.msra.mxu0 %v4471
        %4550 = vmatprep.subr.bf16.mxu0 %v4470
        %4551 = vmatpush2.bf16.msra.mxu0 %v4469
        %4552 = vmatprep.subr.bf16.mxu0 %v4468
        %4553 = vmatpush2.bf16.msra.mxu0 %v4467
        %4554 = vmatprep.subr.bf16.mxu0 %v4466
        %4555 = vmatpush2.bf16.msra.mxu0 %v4465
        %4556 = vmatprep.subr.bf16.mxu0 %v4464
        %4557 = vmatpush2.bf16.msra.mxu0 %v4463
        %4558 = vmatprep.subr.bf16.mxu0 %v4462
        %4559 = vmatpush2.bf16.msra.mxu0 %v4461
        %4560 = vmatprep.mubr.bf16.mxu0 %v4318
        %4561 = vmatmul.mubr.bf16.gmra.mxu0 %v4317
        %v4562 = vpop.f32.mrf.mxu0
        %v4563 = vadd.f32 %v4324, %v4562
        %v4564 = vpop.f32.mrf.mxu0
        %v4565 = vadd.f32 %v4328, %v4564
        %v4566 = vpop.f32.mrf.mxu0
        %v4567 = vpop.f32.mrf.mxu0
        %4568 = vdwg.mxu0
        %4569 = vmatprep.subr.bf16.mxu0 0
        %4570 = vmatpush1.bf16.msra.mxu0 0
        %4571 = vmatprep.subr.bf16.mxu0 0
        %4572 = vmatpush1.bf16.msra.mxu0 0
        %4573 = vmatprep.subr.bf16.mxu0 0
        %4574 = vmatpush1.bf16.msra.mxu0 0
        %4575 = vmatprep.subr.bf16.mxu0 0
        %4576 = vmatpush1.bf16.msra.mxu0 0
        %4577 = vmatprep.subr.bf16.mxu0 0
        %4578 = vmatpush1.bf16.msra.mxu0 0
        %4579 = vmatprep.subr.bf16.mxu0 %v4526
        %4580 = vmatpush1.bf16.msra.mxu0 %v4523
        %4581 = vmatprep.subr.bf16.mxu0 %v4480
        %4582 = vmatpush1.bf16.msra.mxu0 %v4479
        %4583 = vmatprep.subr.bf16.mxu0 %v4478
        %4584 = vmatpush1.bf16.msra.mxu0 %v4477
        %4585 = vmatprep.subr.bf16.mxu0 0
        %4586 = vmatpush2.bf16.msra.mxu0 0
        %4587 = vmatprep.subr.bf16.mxu0 0
        %4588 = vmatpush2.bf16.msra.mxu0 0
        %4589 = vmatprep.subr.bf16.mxu0 0
        %4590 = vmatpush2.bf16.msra.mxu0 0
        %4591 = vmatprep.subr.bf16.mxu0 0
        %4592 = vmatpush2.bf16.msra.mxu0 0
        %4593 = vmatprep.subr.bf16.mxu0 0
        %4594 = vmatpush2.bf16.msra.mxu0 0
        %4595 = vmatprep.subr.bf16.mxu0 0
        %4596 = vmatpush2.bf16.msra.mxu0 0
        %4597 = vmatprep.subr.bf16.mxu0 0
        %4598 = vmatpush2.bf16.msra.mxu0 0
        %4599 = vmatprep.subr.bf16.mxu0 0
        %4600 = vmatpush2.bf16.msra.mxu0 0
        %4601 = vmatprep.mubr.bf16.mxu0 0
        %4602 = vmatmul.mubr.bf16.gmra.mxu0 %v4520
        %v4603 = vpop.f32.mrf.mxu0
        %v4604 = vadd.f32 %v4563, %v4603
        %v4605 = vpop.f32.mrf.mxu0
        %v4606 = vadd.f32 %v4565, %v4605
        %v4607 = vpop.f32.mrf.mxu0
        %v4608 = vpop.f32.mrf.mxu0
        %4609 = vdwg.mxu0
        %v4610 = vmin.f32 %v4604, 0.0
        %v4611 = vmin.f32 %v4606, 0.0
        %vm4612 = vcmp.gt.f32.partialorder %v4604, 0.0
        %vm4613 = vcmp.gt.f32.partialorder %v4606, 0.0
        %v4614 = vmul.f32 %v4610, 1.442695
        %v4615 = vpow.pop %v4614
        %v4616 = vmul.f32 %v4611, 1.442695
        %v4617 = vpow.pop %v4616
        %v4618 = vsub.f32 %v4615, 1.0
        %v4619 = vsub.f32 %v4617, 1.0
        %v4620 = vmul.f32 %v4618, 1.6732632
        %v4621 = vmul.f32 %v4619, 1.6732632
        %v4622 = vsel %vm4612, %v4604, %v4620
        %v4623 = vsel %vm4613, %v4606, %v4621
        %v4624 = vmul.f32 %v4622, 1.050701
        %v4625 = vmul.f32 %v4623, 1.050701
        %v4626 = vld [vmem:[%s15] sm:$0xf]
        %v4627 = vld [vmem:[%s15 + $0x4] sm:$0xf]
        %v4628 = vld [vmem:[%s15 + $0x8] sm:$0xf]
        %v4629 = vld [vmem:[%s15 + $0xc] sm:$0xf]
        %v4630 = vld [vmem:[%s15 + $0x10] sm:$0xf]
        %v4631 = vld [vmem:[%s15 + $0x14] sm:$0xf]
        %v4632 = vld [vmem:[%s15 + $0x18] sm:$0xf]
        %v4633 = vld [vmem:[%s15 + $0x1c] sm:$0xf]
        %v4634 = vld [vmem:[%s15 + $0x20] sm:$0xf]
        %v4635 = vld [vmem:[%s15 + $0x24] sm:$0xf]
        %v4636 = vld [vmem:[%s15 + $0x28] sm:$0xf]
        %v4637 = vld [vmem:[%s15 + $0x2c] sm:$0xf]
        %v4638 = vld [vmem:[%s15 + $0x30] sm:$0xf]
        %v4639 = vld [vmem:[%s15 + $0x34] sm:$0xf]
        %v4640 = vld [vmem:[%s15 + $0x38] sm:$0xf]
        %v4641 = vld [vmem:[%s15 + $0x3c] sm:$0xf]
        %v4642 = vld [vmem:[%s15 + $0x40] sm:$0xf]
        %v4643 = vld [vmem:[%s15 + $0x44] sm:$0xf]
        %v4644 = vld [vmem:[%s15 + $0x48] sm:$0x7]
        %v4645 = vld [vmem:[%s16] sm:$0x1]
        %v4646 = vpack.c.bf16 %v4624, %v4624
        %v4647 = vpack.c.bf16 %v4625, %v4625
        %v4649 = vlaneseq
        %v4650 = vshrl.u32 %v4649, 7
        %v4651 = vsub.s32 0, %v4650
        %v4652 = vrot.slane %v4645, %v4651
        %v4673 = vunpack.c.l.b16 %v4626
        %v4674 = vunpack.c.l.b16 %v4627
        %v4675 = vunpack.c.l.b16 %v4628
        %v4676 = vunpack.c.l.b16 %v4629
        %v4677 = vunpack.c.l.b16 %v4630
        %v4678 = vunpack.c.l.b16 %v4631
        %v4679 = vunpack.c.l.b16 %v4632
        %v4680 = vunpack.c.l.b16 %v4633
        %v4681 = vunpack.c.l.b16 %v4634
        %v4682 = vunpack.c.l.b16 %v4635
        %v4683 = vunpack.c.l.b16 %v4636
        %v4684 = vunpack.c.l.b16 %v4637
        %v4685 = vunpack.c.l.b16 %v4638
        %v4686 = vunpack.c.l.b16 %v4639
        %v4687 = vunpack.c.l.b16 %v4640
        %v4688 = vunpack.c.l.b16 %v4641
        %v4689 = vunpack.c.l.b16 %v4642
        %v4690 = vunpack.c.l.b16 %v4643
        %v4691 = vunpack.c.l.b16 %v4644
        %v4692 = vpack.c.b16 %v4674, %v4673
        %v4693 = vpack.c.b16 %v4676, %v4675
        %v4694 = vpack.c.b16 %v4678, %v4677
        %v4695 = vpack.c.b16 %v4680, %v4679
        %v4696 = vpack.c.b16 %v4682, %v4681
        %v4697 = vpack.c.b16 %v4684, %v4683
        %v4698 = vpack.c.b16 %v4686, %v4685
        %v4699 = vpack.c.b16 %v4688, %v4687
        %v4700 = vpack.c.b16 %v4690, %v4689
        %v4701 = vpack.c.b16 %v4691, %v4691
        %vm4711 = vcmask 179200
        %v4713 = vsel %vm4711, %v4647, 0
        %vm4715 = vcmask 1042432
        %v4717 = vsel %vm4715, %v4701, 0
        %4719 = vmatprep.subr.bf16.mxu0 0
        %4720 = vmatpush1.bf16.msra.mxu0 %v4699
        %4721 = vmatprep.subr.bf16.mxu0 0
        %4722 = vmatpush1.bf16.msra.mxu0 %v4698
        %4723 = vmatprep.subr.bf16.mxu0 0
        %4724 = vmatpush1.bf16.msra.mxu0 %v4697
        %4725 = vmatprep.subr.bf16.mxu0 0
        %4726 = vmatpush1.bf16.msra.mxu0 %v4696
        %4727 = vmatprep.subr.bf16.mxu0 0
        %4728 = vmatpush1.bf16.msra.mxu0 %v4695
        %4729 = vmatprep.subr.bf16.mxu0 0
        %4730 = vmatpush1.bf16.msra.mxu0 %v4694
        %4731 = vmatprep.subr.bf16.mxu0 0
        %4732 = vmatpush1.bf16.msra.mxu0 %v4693
        %4733 = vmatprep.subr.bf16.mxu0 0
        %4734 = vmatpush1.bf16.msra.mxu0 %v4692
        %4735 = vmatprep.subr.bf16.mxu0 0
        %4736 = vmatpush2.bf16.msra.mxu0 0
        %4737 = vmatprep.subr.bf16.mxu0 0
        %4738 = vmatpush2.bf16.msra.mxu0 0
        %4739 = vmatprep.subr.bf16.mxu0 0
        %4740 = vmatpush2.bf16.msra.mxu0 0
        %4741 = vmatprep.subr.bf16.mxu0 0
        %4742 = vmatpush2.bf16.msra.mxu0 0
        %4743 = vmatprep.subr.bf16.mxu0 0
        %4744 = vmatpush2.bf16.msra.mxu0 0
        %4745 = vmatprep.subr.bf16.mxu0 0
        %4746 = vmatpush2.bf16.msra.mxu0 0
        %4747 = vmatprep.subr.bf16.mxu0 0
        %4748 = vmatpush2.bf16.msra.mxu0 %v4717
        %4749 = vmatprep.subr.bf16.mxu0 0
        %4750 = vmatpush2.bf16.msra.mxu0 %v4700
        %4751 = vmatprep.mubr.bf16.mxu0 %v4713
        %4752 = vmatmul.mubr.bf16.gmra.mxu0 %v4646
        %v4753 = vpop.f32.mrf.mxu0
        %v4754 = vadd.f32 %v4652, %v4753
        %v4755 = vpop.f32.mrf.mxu0
        %v4756 = vpop.f32.mrf.mxu0
        %v4757 = vpop.f32.mrf.mxu0
        %4758 = vdwg.mxu0
        %v4759 = vmin.f32 %v4754, 0.0
        %vm4760 = vcmp.gt.f32.partialorder %v4754, 0.0
        %v4761 = vmul.f32 %v4759, 1.442695
        %v4762 = vpow.pop %v4761
        %v4763 = vsub.f32 %v4762, 1.0
        %v4764 = vmul.f32 %v4763, 1.6732632
        %v4765 = vsel %vm4760, %v4754, %v4764
        %v4766 = vmul.f32 %v4765, 1.050701
        %v4767 = vld [vmem:[%s17] sm:$0x1]
        %v4768 = vld [vmem:[#allocation2] sm:$0x1]
        %v4770 = vlaneseq
        %v4771 = vshrl.u32 %v4770, 7
        %v4772 = vsub.s32 0, %v4771
        %v4773 = vrot.slane %v4767, %v4772
        %v4775 = vmul.f32 %v4766, %v4773
        %vm4776 = vcmask 343040
        %v4777 = vsel %vm4776, %v4775, 0.0
        %4778 = vadd.xlane.f32.xlu0 %v4777
        %v4779 = vpop.xlane.xlu0 %4778
        %v4781 = vlaneseq
        %v4782 = vshrl.u32 %v4781, 7
        %v4783 = vsub.s32 0, %v4782
        %v4784 = vrot.slane %v4768, %v4783
        %v4786 = vadd.f32 %v4779, %v4784
        %vm4787 = vcmask 7168
        %4788 = vst.msk [vmem:[%s646] sm:$0xff] %vm4787, %v4786
        %p4789 = scmp.lt.s32.totalorder %s34, 2
        %s4790 = scalar_select %p4789, %s34, 2
        %s4791 = smul.addr %s4790, 8
        %s4792 = scalar_lea.vmem %s19, %s4791
        // Predicated region
        $region109: #{deep_deep_surv_forward.1} parent=95 // pred_check
          %p4793 = pneg %p456
        $region110: #{deep_deep_surv_forward.1} parent=95 // pred_check_branch
          %4795 = sbr.rel (%p4793) target = $region112
        $region111: #{deep_deep_surv_forward.1} parent=95 // pred_region
          _
        $region112: #{deep_deep_surv_forward.1} parent=95 // pred_fallthru
          _
      $region96: #{deep_deep_surv_forward.1} parent=5 // pred_fallthru
        _
      %p4796 = scmp.le.s32.totalorder 2, %s29
      // Predicated region
      $region113: #{deep_deep_surv_forward.1} parent=5 // pred_check
        %p4797 = pneg %p4796
      $region114: #{deep_deep_surv_forward.1} parent=5 // pred_check_branch
        %4799 = sbr.rel (%p4797) target = $region116
      $region115: #{deep_deep_surv_forward.1} parent=5 // pred_region
        %s4800 = ssub.s32 %s29, 2
        // Predicated region
        $region117: #{deep_deep_surv_forward.1} parent=115 // pred_check
          %p4801 = pneg %p462
        $region118: #{deep_deep_surv_forward.1} parent=115 // pred_check_branch
          %4803 = sbr.rel (%p4801) target = $region120
        $region119: #{deep_deep_surv_forward.1} parent=115 // pred_region
          %p4804 = scmp.lt.s32.totalorder %s35, 2
          %s4805 = scalar_select %p4804, %s35, 2
          %s4806 = smul.addr %s4805, 8
          %s4807 = scalar_lea.vmem %s19, %s4806
        $region120: #{deep_deep_surv_forward.1} parent=115 // pred_fallthru
          _
      $region116: #{deep_deep_surv_forward.1} parent=5 // pred_fallthru
        _
    $region6: #{deep_deep_surv_forward.1} parent=1 // loop_footer
      %s33 = sadd.s32 1, %s29
    $region7: #{deep_deep_surv_forward.1} parent=1 // loop_footer_branch
      %28 = sbr.rel target = $region3
    $region8: #{deep_deep_surv_forward.1} parent=1 // loop_exit
      _
    %4808 = vsyncpa [#allocation4], 1
    %s4809 = scalar_lea.sflag [#allocation4], 1
    %4810 = vsyncpa %s4809, 1
    %4811 = vsyncpa [#allocation6], 1

</llo_original>
